<compile_context>
chip_gen: v7x
topology: tpu7x:2x2x1
jax: 0.10.0
libtpu: 0.0.40
codegen_flags: <defaults>
</compile_context>

<pallas_src>
import functools

import numpy as np

import jax
import jax.numpy as jnp
from jax import lax
from jax.experimental import pallas as pl
from jax.experimental.pallas import tpu as pltpu


# ------------------------------- Pallas kernel ------------------------------ #

def _resdown_kernel(xs_ref, mask_ref, w1a_ref, w1b_ref, w2_ref, w3a_ref,
                    w3b_ref, bias_ref, bn1_ref, bns_ref, bnb_ref,
                    o_ref, slab_ref, *, oh, ow):
    """Whole ResDown block for one image; all intermediates stay on-chip."""
    f32, bf16 = jnp.float32, jnp.bfloat16
    m = oh * ow                    # spatial positions per image (OH*OW)
    cp = o_ref.shape[2]            # padded channel (lane) width, 128

    xs = xs_ref[0]                 # (m, 4*n_in) f32 space-to-depth input slab

    # 3x3 tap flat offsets in row-major (h*ow + w) coordinates; boundary
    # validity masks are precomputed 0/1 floats of shape (9, m, 1).
    offs = [di * ow + dj for di in (-1, 0, 1) for dj in (-1, 0, 1)]

    def window(act, t):
        # Shifted, zero-padded spatial window: XLU roll + VPU mask multiply
        # (replaces the old O(m^2) constant shift-matrix matmuls on the MXU).
        off = offs[t]
        if off == 0:
            return act
        return pltpu.roll(act, (-off) % m, 0) * mask_ref[t]

    def bn_relu(x, scale, shift):
        # single FMA + max on the VPU, kept in f32 (v5e has no bf16 VPU)
        return jnp.maximum(x * scale + shift, 0.0)

    b = lambda k: bias_ref[k:k + 1, :]      # (1, cp)
    bn_s = lambda k: bns_ref[k:k + 1, :]    # (1, cp)
    bn_b = lambda k: bnb_ref[k:k + 1, :]    # (1, cp)

    def conv3x3_small(act, w_ref, bvec):
        # act: (m, cs) with tiny cs -> 9 per-tap bf16 MXU matmuls, f32 acc.
        acc = jnp.broadcast_to(bvec, (m, cp))          # init acc with bias
        for t in range(9):
            acc = acc + jnp.dot(window(act, t).astype(bf16), w_ref[t],
                                preferred_element_type=f32)
        return acc

    def conv3x3_folded(act, w_ref, bvec):
        # act: (m, cp) -> fold the 9 taps into the contraction dim: build a
        # (m, 9*cp) bf16 windowed slab in VMEM scratch (lane-aligned chunk
        # stores), then ONE long-K MXU matmul with f32 accumulation.
        for t in range(9):
            slab_ref[:, t * cp:(t + 1) * cp] = window(act, t).astype(bf16)
        return jnp.dot(slab_ref[...], w_ref[...],
                       preferred_element_type=f32) + bvec

    # line2: 1x1 stride-2 conv on the raw input == plain matmul on the s2d slab
    x2 = (jnp.dot(xs.astype(bf16), w2_ref[...], preferred_element_type=f32)
          + b(2))

    # line1: BN1+ReLU -> (5x5 s2 p2 conv == 3x3 s1 p1 conv on s2d)
    #        -> BN2+ReLU -> 1x1 conv
    t1 = bn_relu(xs, bn1_ref[0:1, :], bn1_ref[1:2, :])
    x1a = conv3x3_small(t1, w1a_ref, b(0))
    t2 = bn_relu(x1a, bn_s(0), bn_b(0))
    x1 = (jnp.dot(t2.astype(bf16), w1b_ref[...], preferred_element_type=f32)
          + b(1))

    x3 = x1 + x2

    # line3: BN3+ReLU -> 3x3 same -> BN4+ReLU -> 3x3 same
    t3 = bn_relu(x3, bn_s(1), bn_b(1))
    x4a = conv3x3_folded(t3, w3a_ref, b(3))
    t4 = bn_relu(x4a, bn_s(2), bn_b(2))
    x4 = conv3x3_folded(t4, w3b_ref, b(4))

    # single lane-dense (128-wide) f32 store
    o_ref[0] = x3 + x4


# ------------------------- one-time parameter prep -------------------------- #

def _tap_masks(oh, ow):
    # mask[t, r, 0] = 1 iff 3x3 tap t (di=t//3-1, dj=t%3-1) of output position
    # r = h*ow + w reads an in-bounds source (zero padding otherwise).
    m = oh * ow
    hh, ww = np.divmod(np.arange(m), ow)
    masks = np.zeros((9, m, 1), np.float32)
    t = 0
    for di in (-1, 0, 1):
        for dj in (-1, 0, 1):
            valid = ((hh + di >= 0) & (hh + di < oh) &
                     (ww + dj >= 0) & (ww + dj < ow))
            masks[t, :, 0] = valid.astype(np.float32)
            t += 1
    return jnp.asarray(masks)


def prepare_params(params, out_hw, eps=1e-5, cp=128):
    """Hoisted, one-time weight/BN preprocessing (nothing re-done per call)."""
    p = params
    oh, ow = out_hw
    co = p["conv_l1a"]["w"].shape[0]      # n_out
    ci = p["conv_l1a"]["w"].shape[1]      # n_in
    f32, bf16 = jnp.float32, jnp.bfloat16

    def bn_ss(bn):
        inv = 1.0 / jnp.sqrt(bn["var"] + eps)
        s = bn["gamma"] * inv
        return s, bn["beta"] - bn["mean"] * s

    def padc(v):
        return jnp.zeros((cp,), f32).at[: v.shape[0]].set(v)

    # BN1 acts on the space-to-depth input: tile per-channel params over the
    # 4 sub-pixel replicas (s2d channel order is (ri, rj, cin), cin fastest).
    s1, h1 = bn_ss(p["bn1"])
    bn1 = jnp.stack([jnp.tile(s1, 4), jnp.tile(h1, 4)])            # (2, 4*ci)

    bns, bnb = [], []
    for name in ("bn2", "bn3", "bn4"):
        s, h = bn_ss(p[name])
        bns.append(padc(s))
        bnb.append(padc(h))
    bn_scale, bn_shift = jnp.stack(bns), jnp.stack(bnb)            # (3, cp)

    # 5x5 stride-2 pad-2 conv == 3x3 stride-1 pad-1 conv on the s2d input.
    w = jnp.pad(p["conv_l1a"]["w"], ((0, 0), (0, 0), (0, 1), (0, 1)))
    w = w.reshape(co, ci, 3, 2, 3, 2)                 # (co, ci, di, ri, dj, rj)
    w = jnp.transpose(w, (2, 4, 3, 5, 1, 0))          # (di, dj, ri, rj, ci, co)
    w1a = jnp.pad(w.reshape(9, 4 * ci, co),
                  ((0, 0), (0, 0), (0, cp - co))).astype(bf16)

    # 1x1 stride-2 conv: reads only the (ri=0, rj=0) s2d channels.
    w2 = jnp.zeros((4 * ci, cp), f32).at[:ci, :co].set(
        p["conv_l2"]["w"][:, :, 0, 0].T).astype(bf16)

    # 1x1 stride-1 conv (line1 tail).
    w1b = jnp.zeros((cp, cp), f32).at[:co, :co].set(
        p["conv_l1b"]["w"][:, :, 0, 0].T).astype(bf16)

    # 3x3 same convs: per-tap (cp, cp) matrices folded along K -> (9*cp, cp).
    def taps3x3(wc):
        wt = jnp.transpose(wc, (2, 3, 1, 0)).reshape(9, co, co)
        wt = jnp.pad(wt, ((0, 0), (0, cp - co), (0, cp - co)))
        return wt.reshape(9 * cp, cp).astype(bf16)

    bias = jnp.stack([padc(p["conv_l1a"]["b"]), padc(p["conv_l1b"]["b"]),
                      padc(p["conv_l2"]["b"]), padc(p["conv_l3a"]["b"]),
                      padc(p["conv_l3b"]["b"])])                    # (5, cp)

    return dict(bn1=bn1, bn_scale=bn_scale, bn_shift=bn_shift,
                w1a=w1a, w1b=w1b, w2=w2,
                w3a=taps3x3(p["conv_l3a"]["w"]),
                w3b=taps3x3(p["conv_l3b"]["w"]),
                bias=bias, mask=_tap_masks(oh, ow))


# ------------------------------ forward wrapper ------------------------------ #

def _space_to_depth(x_nhwc):
    # (N, H, W, C) -> (N, H/2, W/2, 4C); pure layout op, no data expansion.
    # TODO(synk): at production sizes fuse this into the producer op (it is an
    #             extra HBM read+write of the input done by XLA here).
    n, h, w, c = x_nhwc.shape
    x = x_nhwc.reshape(n, h // 2, 2, w // 2, 2, c)
    x = jnp.transpose(x, (0, 1, 3, 2, 4, 5))          # (n, h/2, w/2, ri, rj, c)
    return x.reshape(n, h // 2, w // 2, 4 * c)


@functools.partial(jax.jit, static_argnames=("n_out",))
def resdown_forward(prep, x_nhwc, *, n_out):
    n, h, w, _ = x_nhwc.shape
    if h % 2 or w % 2:
        raise ValueError("ResDown stride-2 path requires even H and W")
    oh, ow = h // 2, w // 2
    m = oh * ow
    cp = prep["bias"].shape[1]        # 128
    cs = prep["w2"].shape[0]          # 4 * n_in

    xs = _space_to_depth(x_nhwc).reshape(n, m, cs)

    def full(shape):
        return pl.BlockSpec(shape, lambda i, _s=len(shape): (0,) * _s)

    kernel = functools.partial(_resdown_kernel, oh=oh, ow=ow)

    # At production spatial sizes, add a blocked spatial grid axis (with a
    # 1-row halo for the 3x3 taps) and mark it "parallel" too; tile sizes then
    # need separate VMEM budgets for v7x (64 MiB) vs v5e/v6e (128 MiB).
    out = pl.pallas_call(
        kernel,
        out_shape=jax.ShapeDtypeStruct((n, m, cp), jnp.float32),
        grid_spec=pltpu.PrefetchScalarGridSpec(
            num_scalar_prefetch=0,
            grid=(n,),
            in_specs=[
                pl.BlockSpec((1, m, cs), lambda i: (i, 0, 0)),   # xs per image
                full(prep["mask"].shape),
                full(prep["w1a"].shape),
                full(prep["w1b"].shape),
                full(prep["w2"].shape),
                full(prep["w3a"].shape),
                full(prep["w3b"].shape),
                full(prep["bias"].shape),
                full(prep["bn1"].shape),
                full(prep["bn_scale"].shape),
                full(prep["bn_shift"].shape),
            ],
            out_specs=pl.BlockSpec((1, m, cp), lambda i: (i, 0, 0)),
            scratch_shapes=[pltpu.VMEM((m, 9 * cp), jnp.bfloat16)],
        ),
        compiler_params=pltpu.CompilerParams(
            dimension_semantics=("parallel",),
            vmem_limit_bytes=32 * 1024 * 1024),
    )(xs, prep["mask"], prep["w1a"], prep["w1b"], prep["w2"],
      prep["w3a"], prep["w3b"], prep["bias"], prep["bn1"],
      prep["bn_scale"], prep["bn_shift"])

    return out[:, :, :n_out].reshape(n, oh, ow, n_out)


# -------------------------------- parameters -------------------------------- #

def init_params(key, n_in, n_out):
    ks = jax.random.split(key, 16)
    f32 = jnp.float32

    def bn(k, c):
        k1, k2, k3, k4 = jax.random.split(k, 4)
        return dict(
            gamma=1.0 + 0.1 * jax.random.normal(k1, (c,), f32),
            beta=0.1 * jax.random.normal(k2, (c,), f32),
            mean=0.1 * jax.random.normal(k3, (c,), f32),
            var=1.0 + 0.1 * jnp.abs(jax.random.normal(k4, (c,), f32)),
        )

    def conv(k, co, ci, kh, kw):
        k1, k2 = jax.random.split(k)
        fan_in = ci * kh * kw
        return dict(
            w=jax.random.normal(k1, (co, ci, kh, kw), f32) / jnp.sqrt(fan_in),
            b=0.1 * jax.random.normal(k2, (co,), f32),
        )

    return dict(
        bn1=bn(ks[0], n_in),
        conv_l1a=conv(ks[1], n_out, n_in, 5, 5),
        bn2=bn(ks[2], n_out),
        conv_l1b=conv(ks[3], n_out, n_out, 1, 1),
        conv_l2=conv(ks[4], n_out, n_in, 1, 1),
        bn3=bn(ks[5], n_out),
        conv_l3a=conv(ks[6], n_out, n_out, 3, 3),
        bn4=bn(ks[7], n_out),
        conv_l3b=conv(ks[8], n_out, n_out, 3, 3),
    )


# ----------------------------- pure-JAX reference ---------------------------- #

def _conv_ref(x, w_oihw, b, stride, pad, dtype=jnp.float32):
    w_hwio = jnp.transpose(w_oihw, (2, 3, 1, 0))
    y = lax.conv_general_dilated(
        x.astype(dtype), w_hwio.astype(dtype), (stride, stride),
        [(pad, pad), (pad, pad)],
        dimension_numbers=("NHWC", "HWIO", "NHWC"),
        preferred_element_type=jnp.float32)
    return y + b.reshape(1, 1, 1, -1)


def _bn_relu_ref(x, gamma, beta, mean, var, eps=1e-5):
    y = (x - mean) / jnp.sqrt(var + eps) * gamma + beta
    return jnp.maximum(y, 0.0)


def resdown_reference(params, x, dtype=jnp.float32):
    p = params
    conv = functools.partial(_conv_ref, dtype=dtype)
    x2 = conv(x, p["conv_l2"]["w"], p["conv_l2"]["b"], 2, 0)
    t = _bn_relu_ref(x, **p["bn1"])
    t = conv(t, p["conv_l1a"]["w"], p["conv_l1a"]["b"], 2, 2)
    t = _bn_relu_ref(t, **p["bn2"])
    x1 = conv(t, p["conv_l1b"]["w"], p["conv_l1b"]["b"], 1, 0)
    x3 = x1 + x2
    t = _bn_relu_ref(x3, **p["bn3"])
    t = conv(t, p["conv_l3a"]["w"], p["conv_l3a"]["b"], 1, 1)
    t = _bn_relu_ref(t, **p["bn4"])
    x4 = conv(t, p["conv_l3b"]["w"], p["conv_l3b"]["b"], 1, 1)
    return x3 + x4


# ---------------------------------- main ------------------------------------ #

if __name__ == "__main__":
    key = jax.random.PRNGKey(0)
    k_x, k_p = jax.random.split(key)

    N, n_in, n_out, H, W = 2, 4, 8, 16, 16
    # PyTorch input is NCHW (2, 4, 16, 16); transpose to NHWC for the kernel.
    x_nchw = jax.random.normal(k_x, (N, n_in, H, W), jnp.float32)
    x_nhwc = jnp.transpose(x_nchw, (0, 2, 3, 1))

    params = init_params(k_p, n_in, n_out)
    prep = prepare_params(params, out_hw=(H // 2, W // 2))

    out = resdown_forward(prep, x_nhwc, n_out=n_out)
    out = jax.block_until_ready(out)
    assert out.shape == (N, H // 2, W // 2, n_out), out.shape

    # Tight check against a reference whose conv operands are quantized to
    # bf16 exactly like the kernel's MXU path (f32 accumulation everywhere).
    ref_bf16 = jax.block_until_ready(
        resdown_reference(params, x_nhwc, dtype=jnp.bfloat16))
    err_b = float(jnp.max(jnp.abs(out - ref_bf16)))
    assert jnp.allclose(out, ref_bf16, atol=5e-3, rtol=5e-3), err_b

    # Looser check against exact f32 module semantics (bounds the deliberate
    # bf16 MXU-operand quantization error).
    ref_f32 = jax.block_until_ready(resdown_reference(params, x_nhwc))
    err_f = float(jnp.max(jnp.abs(out - ref_f32)))
    assert jnp.allclose(out, ref_f32, atol=1e-1, rtol=5e-2), err_f

    print("KERNEL_OK")
</pallas_src>

<mosaic_0001>
module attributes {stable_mosaic.version = 11 : i64} {
  func.func @_resdown_kernel(%arg0: i32, %arg1: memref<1x64x16xf32, #tpu.memory_space<vmem>>, %arg2: memref<9x64x1xf32, #tpu.memory_space<vmem>>, %arg3: memref<9x16x128xbf16, #tpu.memory_space<vmem>>, %arg4: memref<128x128xbf16, #tpu.memory_space<vmem>>, %arg5: memref<16x128xbf16, #tpu.memory_space<vmem>>, %arg6: memref<1152x128xbf16, #tpu.memory_space<vmem>>, %arg7: memref<1152x128xbf16, #tpu.memory_space<vmem>>, %arg8: memref<5x128xf32, #tpu.memory_space<vmem>>, %arg9: memref<2x16xf32, #tpu.memory_space<vmem>>, %arg10: memref<3x128xf32, #tpu.memory_space<vmem>>, %arg11: memref<3x128xf32, #tpu.memory_space<vmem>>, %arg12: memref<1x64x128xf32, #tpu.memory_space<vmem>>, %arg13: memref<64x1152xbf16, #tpu.memory_space<vmem>>) attributes {dimension_semantics = [#tpu.dimension_semantics<parallel>], iteration_bounds = array<i64: 2>, scalar_prefetch = 0 : i64, scratch_operands = 1 : i64, tpu.core_type = #tpu.core_type<tc>, window_params = [{transform_indices = @transform_0, window_bounds = array<i64: 1, 64, 16>}, {pipeline_mode = #tpu.pipeline_mode<synchronous>, transform_indices = @transform_1, window_bounds = array<i64: 9, 64, 1>}, {pipeline_mode = #tpu.pipeline_mode<synchronous>, transform_indices = @transform_2, window_bounds = array<i64: 9, 16, 128>}, {pipeline_mode = #tpu.pipeline_mode<synchronous>, transform_indices = @transform_3, window_bounds = array<i64: 128, 128>}, {pipeline_mode = #tpu.pipeline_mode<synchronous>, transform_indices = @transform_4, window_bounds = array<i64: 16, 128>}, {pipeline_mode = #tpu.pipeline_mode<synchronous>, transform_indices = @transform_5, window_bounds = array<i64: 1152, 128>}, {pipeline_mode = #tpu.pipeline_mode<synchronous>, transform_indices = @transform_6, window_bounds = array<i64: 1152, 128>}, {pipeline_mode = #tpu.pipeline_mode<synchronous>, transform_indices = @transform_7, window_bounds = array<i64: 5, 128>}, {pipeline_mode = #tpu.pipeline_mode<synchronous>, transform_indices = @transform_8, window_bounds = array<i64: 2, 16>}, {pipeline_mode = #tpu.pipeline_mode<synchronous>, transform_indices = @transform_9, window_bounds = array<i64: 3, 128>}, {pipeline_mode = #tpu.pipeline_mode<synchronous>, transform_indices = @transform_10, window_bounds = array<i64: 3, 128>}, {transform_indices = @transform_11, window_bounds = array<i64: 1, 64, 128>}]} {
    %c0 = arith.constant 0 : index
    %c0_0 = arith.constant 0 : index
    %c0_1 = arith.constant 0 : index
    %0 = vector.load %arg1[%c0, %c0_0, %c0_1] : memref<1x64x16xf32, #tpu.memory_space<vmem>>, vector<1x64x16xf32>
    %1 = vector.shape_cast %0 : vector<1x64x16xf32> to vector<64x16xf32>
    %2 = arith.truncf %1 : vector<64x16xf32> to vector<64x16xbf16>
    %c0_2 = arith.constant 0 : index
    %c0_3 = arith.constant 0 : index
    %3 = vector.load %arg5[%c0_2, %c0_3] : memref<16x128xbf16, #tpu.memory_space<vmem>>, vector<16x128xbf16>
    %cst = arith.constant dense<0.000000e+00> : vector<64x128xf32>
    %4 = tpu.matmul %2, %3, %cst {dimension_numbers = #tpu.dot_dimension_numbers<[1], [0], [0], [1], [0, 0, 1, 1], [], []>} : vector<64x16xbf16>, vector<16x128xbf16>, vector<64x128xf32> -> vector<64x128xf32>
    %c2 = arith.constant 2 : index
    %c0_4 = arith.constant 0 : index
    %5 = vector.load %arg8[%c2, %c0_4] : memref<5x128xf32, #tpu.memory_space<vmem>>, vector<1x128xf32>
    %6 = vector.broadcast %5 : vector<1x128xf32> to vector<64x128xf32>
    %7 = arith.addf %4, %6 : vector<64x128xf32>
    %c0_5 = arith.constant 0 : index
    %c0_6 = arith.constant 0 : index
    %8 = vector.load %arg9[%c0_5, %c0_6] : memref<2x16xf32, #tpu.memory_space<vmem>>, vector<1x16xf32>
    %c1 = arith.constant 1 : index
    %c0_7 = arith.constant 0 : index
    %9 = vector.load %arg9[%c1, %c0_7] : memref<2x16xf32, #tpu.memory_space<vmem>>, vector<1x16xf32>
    %10 = vector.broadcast %8 : vector<1x16xf32> to vector<64x16xf32>
    %11 = arith.mulf %1, %10 : vector<64x16xf32>
    %12 = vector.broadcast %9 : vector<1x16xf32> to vector<64x16xf32>
    %13 = arith.addf %11, %12 : vector<64x16xf32>
    %cst_8 = arith.constant 0.000000e+00 : f32
    %14 = vector.broadcast %cst_8 : f32 to vector<64x16xf32>
    %15 = arith.maximumf %13, %14 : vector<64x16xf32>
    %c0_9 = arith.constant 0 : index
    %c0_10 = arith.constant 0 : index
    %16 = vector.load %arg8[%c0_9, %c0_10] : memref<5x128xf32, #tpu.memory_space<vmem>>, vector<1x128xf32>
    %17 = vector.shape_cast %16 : vector<1x128xf32> to vector<1x128xf32>
    %18 = vector.broadcast %17 : vector<1x128xf32> to vector<64x128xf32>
    %c9_i32 = arith.constant 9 : i32
    %19 = tpu.dynamic_rotate %15 by %c9_i32 dim 0 : vector<64x16xf32>, i32 -> vector<64x16xf32>
    %c0_11 = arith.constant 0 : index
    %c0_12 = arith.constant 0 : index
    %c0_13 = arith.constant 0 : index
    %20 = vector.load %arg2[%c0_11, %c0_12, %c0_13] : memref<9x64x1xf32, #tpu.memory_space<vmem>>, vector<1x64x1xf32>
    %21 = vector.shape_cast %20 : vector<1x64x1xf32> to vector<64x1xf32>
    %22 = vector.broadcast %21 : vector<64x1xf32> to vector<64x16xf32>
    %23 = arith.mulf %19, %22 : vector<64x16xf32>
    %24 = arith.truncf %23 : vector<64x16xf32> to vector<64x16xbf16>
    %c0_14 = arith.constant 0 : index
    %c0_15 = arith.constant 0 : index
    %c0_16 = arith.constant 0 : index
    %25 = vector.load %arg3[%c0_14, %c0_15, %c0_16] : memref<9x16x128xbf16, #tpu.memory_space<vmem>>, vector<1x16x128xbf16>
    %26 = vector.shape_cast %25 : vector<1x16x128xbf16> to vector<16x128xbf16>
    %cst_17 = arith.constant dense<0.000000e+00> : vector<64x128xf32>
    %27 = tpu.matmul %24, %26, %cst_17 {dimension_numbers = #tpu.dot_dimension_numbers<[1], [0], [0], [1], [0, 0, 1, 1], [], []>} : vector<64x16xbf16>, vector<16x128xbf16>, vector<64x128xf32> -> vector<64x128xf32>
    %28 = arith.addf %18, %27 : vector<64x128xf32>
    %c8_i32 = arith.constant 8 : i32
    %29 = tpu.dynamic_rotate %15 by %c8_i32 dim 0 : vector<64x16xf32>, i32 -> vector<64x16xf32>
    %c1_18 = arith.constant 1 : index
    %c0_19 = arith.constant 0 : index
    %c0_20 = arith.constant 0 : index
    %30 = vector.load %arg2[%c1_18, %c0_19, %c0_20] : memref<9x64x1xf32, #tpu.memory_space<vmem>>, vector<1x64x1xf32>
    %31 = vector.shape_cast %30 : vector<1x64x1xf32> to vector<64x1xf32>
    %32 = vector.broadcast %31 : vector<64x1xf32> to vector<64x16xf32>
    %33 = arith.mulf %29, %32 : vector<64x16xf32>
    %34 = arith.truncf %33 : vector<64x16xf32> to vector<64x16xbf16>
    %c1_21 = arith.constant 1 : index
    %c0_22 = arith.constant 0 : index
    %c0_23 = arith.constant 0 : index
    %35 = vector.load %arg3[%c1_21, %c0_22, %c0_23] : memref<9x16x128xbf16, #tpu.memory_space<vmem>>, vector<1x16x128xbf16>
    %36 = vector.shape_cast %35 : vector<1x16x128xbf16> to vector<16x128xbf16>
    %cst_24 = arith.constant dense<0.000000e+00> : vector<64x128xf32>
    %37 = tpu.matmul %34, %36, %cst_24 {dimension_numbers = #tpu.dot_dimension_numbers<[1], [0], [0], [1], [0, 0, 1, 1], [], []>} : vector<64x16xbf16>, vector<16x128xbf16>, vector<64x128xf32> -> vector<64x128xf32>
    %38 = arith.addf %28, %37 : vector<64x128xf32>
    %c7_i32 = arith.constant 7 : i32
    %39 = tpu.dynamic_rotate %15 by %c7_i32 dim 0 : vector<64x16xf32>, i32 -> vector<64x16xf32>
    %c2_25 = arith.constant 2 : index
    %c0_26 = arith.constant 0 : index
    %c0_27 = arith.constant 0 : index
    %40 = vector.load %arg2[%c2_25, %c0_26, %c0_27] : memref<9x64x1xf32, #tpu.memory_space<vmem>>, vector<1x64x1xf32>
    %41 = vector.shape_cast %40 : vector<1x64x1xf32> to vector<64x1xf32>
    %42 = vector.broadcast %41 : vector<64x1xf32> to vector<64x16xf32>
    %43 = arith.mulf %39, %42 : vector<64x16xf32>
    %44 = arith.truncf %43 : vector<64x16xf32> to vector<64x16xbf16>
    %c2_28 = arith.constant 2 : index
    %c0_29 = arith.constant 0 : index
    %c0_30 = arith.constant 0 : index
    %45 = vector.load %arg3[%c2_28, %c0_29, %c0_30] : memref<9x16x128xbf16, #tpu.memory_space<vmem>>, vector<1x16x128xbf16>
    %46 = vector.shape_cast %45 : vector<1x16x128xbf16> to vector<16x128xbf16>
    %cst_31 = arith.constant dense<0.000000e+00> : vector<64x128xf32>
    %47 = tpu.matmul %44, %46, %cst_31 {dimension_numbers = #tpu.dot_dimension_numbers<[1], [0], [0], [1], [0, 0, 1, 1], [], []>} : vector<64x16xbf16>, vector<16x128xbf16>, vector<64x128xf32> -> vector<64x128xf32>
    %48 = arith.addf %38, %47 : vector<64x128xf32>
    %c1_i32 = arith.constant 1 : i32
    %49 = tpu.dynamic_rotate %15 by %c1_i32 dim 0 : vector<64x16xf32>, i32 -> vector<64x16xf32>
    %c3 = arith.constant 3 : index
    %c0_32 = arith.constant 0 : index
    %c0_33 = arith.constant 0 : index
    %50 = vector.load %arg2[%c3, %c0_32, %c0_33] : memref<9x64x1xf32, #tpu.memory_space<vmem>>, vector<1x64x1xf32>
    %51 = vector.shape_cast %50 : vector<1x64x1xf32> to vector<64x1xf32>
    %52 = vector.broadcast %51 : vector<64x1xf32> to vector<64x16xf32>
    %53 = arith.mulf %49, %52 : vector<64x16xf32>
    %54 = arith.truncf %53 : vector<64x16xf32> to vector<64x16xbf16>
    %c3_34 = arith.constant 3 : index
    %c0_35 = arith.constant 0 : index
    %c0_36 = arith.constant 0 : index
    %55 = vector.load %arg3[%c3_34, %c0_35, %c0_36] : memref<9x16x128xbf16, #tpu.memory_space<vmem>>, vector<1x16x128xbf16>
    %56 = vector.shape_cast %55 : vector<1x16x128xbf16> to vector<16x128xbf16>
    %cst_37 = arith.constant dense<0.000000e+00> : vector<64x128xf32>
    %57 = tpu.matmul %54, %56, %cst_37 {dimension_numbers = #tpu.dot_dimension_numbers<[1], [0], [0], [1], [0, 0, 1, 1], [], []>} : vector<64x16xbf16>, vector<16x128xbf16>, vector<64x128xf32> -> vector<64x128xf32>
    %58 = arith.addf %48, %57 : vector<64x128xf32>
    %59 = arith.truncf %15 : vector<64x16xf32> to vector<64x16xbf16>
    %c4 = arith.constant 4 : index
    %c0_38 = arith.constant 0 : index
    %c0_39 = arith.constant 0 : index
    %60 = vector.load %arg3[%c4, %c0_38, %c0_39] : memref<9x16x128xbf16, #tpu.memory_space<vmem>>, vector<1x16x128xbf16>
    %61 = vector.shape_cast %60 : vector<1x16x128xbf16> to vector<16x128xbf16>
    %cst_40 = arith.constant dense<0.000000e+00> : vector<64x128xf32>
    %62 = tpu.matmul %59, %61, %cst_40 {dimension_numbers = #tpu.dot_dimension_numbers<[1], [0], [0], [1], [0, 0, 1, 1], [], []>} : vector<64x16xbf16>, vector<16x128xbf16>, vector<64x128xf32> -> vector<64x128xf32>
    %63 = arith.addf %58, %62 : vector<64x128xf32>
    %c63_i32 = arith.constant 63 : i32
    %64 = tpu.dynamic_rotate %15 by %c63_i32 dim 0 : vector<64x16xf32>, i32 -> vector<64x16xf32>
    %c5 = arith.constant 5 : index
    %c0_41 = arith.constant 0 : index
    %c0_42 = arith.constant 0 : index
    %65 = vector.load %arg2[%c5, %c0_41, %c0_42] : memref<9x64x1xf32, #tpu.memory_space<vmem>>, vector<1x64x1xf32>
    %66 = vector.shape_cast %65 : vector<1x64x1xf32> to vector<64x1xf32>
    %67 = vector.broadcast %66 : vector<64x1xf32> to vector<64x16xf32>
    %68 = arith.mulf %64, %67 : vector<64x16xf32>
    %69 = arith.truncf %68 : vector<64x16xf32> to vector<64x16xbf16>
    %c5_43 = arith.constant 5 : index
    %c0_44 = arith.constant 0 : index
    %c0_45 = arith.constant 0 : index
    %70 = vector.load %arg3[%c5_43, %c0_44, %c0_45] : memref<9x16x128xbf16, #tpu.memory_space<vmem>>, vector<1x16x128xbf16>
    %71 = vector.shape_cast %70 : vector<1x16x128xbf16> to vector<16x128xbf16>
    %cst_46 = arith.constant dense<0.000000e+00> : vector<64x128xf32>
    %72 = tpu.matmul %69, %71, %cst_46 {dimension_numbers = #tpu.dot_dimension_numbers<[1], [0], [0], [1], [0, 0, 1, 1], [], []>} : vector<64x16xbf16>, vector<16x128xbf16>, vector<64x128xf32> -> vector<64x128xf32>
    %73 = arith.addf %63, %72 : vector<64x128xf32>
    %c57_i32 = arith.constant 57 : i32
    %74 = tpu.dynamic_rotate %15 by %c57_i32 dim 0 : vector<64x16xf32>, i32 -> vector<64x16xf32>
    %c6 = arith.constant 6 : index
    %c0_47 = arith.constant 0 : index
    %c0_48 = arith.constant 0 : index
    %75 = vector.load %arg2[%c6, %c0_47, %c0_48] : memref<9x64x1xf32, #tpu.memory_space<vmem>>, vector<1x64x1xf32>
    %76 = vector.shape_cast %75 : vector<1x64x1xf32> to vector<64x1xf32>
    %77 = vector.broadcast %76 : vector<64x1xf32> to vector<64x16xf32>
    %78 = arith.mulf %74, %77 : vector<64x16xf32>
    %79 = arith.truncf %78 : vector<64x16xf32> to vector<64x16xbf16>
    %c6_49 = arith.constant 6 : index
    %c0_50 = arith.constant 0 : index
    %c0_51 = arith.constant 0 : index
    %80 = vector.load %arg3[%c6_49, %c0_50, %c0_51] : memref<9x16x128xbf16, #tpu.memory_space<vmem>>, vector<1x16x128xbf16>
    %81 = vector.shape_cast %80 : vector<1x16x128xbf16> to vector<16x128xbf16>
    %cst_52 = arith.constant dense<0.000000e+00> : vector<64x128xf32>
    %82 = tpu.matmul %79, %81, %cst_52 {dimension_numbers = #tpu.dot_dimension_numbers<[1], [0], [0], [1], [0, 0, 1, 1], [], []>} : vector<64x16xbf16>, vector<16x128xbf16>, vector<64x128xf32> -> vector<64x128xf32>
    %83 = arith.addf %73, %82 : vector<64x128xf32>
    %c56_i32 = arith.constant 56 : i32
    %84 = tpu.dynamic_rotate %15 by %c56_i32 dim 0 : vector<64x16xf32>, i32 -> vector<64x16xf32>
    %c7 = arith.constant 7 : index
    %c0_53 = arith.constant 0 : index
    %c0_54 = arith.constant 0 : index
    %85 = vector.load %arg2[%c7, %c0_53, %c0_54] : memref<9x64x1xf32, #tpu.memory_space<vmem>>, vector<1x64x1xf32>
    %86 = vector.shape_cast %85 : vector<1x64x1xf32> to vector<64x1xf32>
    %87 = vector.broadcast %86 : vector<64x1xf32> to vector<64x16xf32>
    %88 = arith.mulf %84, %87 : vector<64x16xf32>
    %89 = arith.truncf %88 : vector<64x16xf32> to vector<64x16xbf16>
    %c7_55 = arith.constant 7 : index
    %c0_56 = arith.constant 0 : index
    %c0_57 = arith.constant 0 : index
    %90 = vector.load %arg3[%c7_55, %c0_56, %c0_57] : memref<9x16x128xbf16, #tpu.memory_space<vmem>>, vector<1x16x128xbf16>
    %91 = vector.shape_cast %90 : vector<1x16x128xbf16> to vector<16x128xbf16>
    %cst_58 = arith.constant dense<0.000000e+00> : vector<64x128xf32>
    %92 = tpu.matmul %89, %91, %cst_58 {dimension_numbers = #tpu.dot_dimension_numbers<[1], [0], [0], [1], [0, 0, 1, 1], [], []>} : vector<64x16xbf16>, vector<16x128xbf16>, vector<64x128xf32> -> vector<64x128xf32>
    %93 = arith.addf %83, %92 : vector<64x128xf32>
    %c55_i32 = arith.constant 55 : i32
    %94 = tpu.dynamic_rotate %15 by %c55_i32 dim 0 : vector<64x16xf32>, i32 -> vector<64x16xf32>
    %c8 = arith.constant 8 : index
    %c0_59 = arith.constant 0 : index
    %c0_60 = arith.constant 0 : index
    %95 = vector.load %arg2[%c8, %c0_59, %c0_60] : memref<9x64x1xf32, #tpu.memory_space<vmem>>, vector<1x64x1xf32>
    %96 = vector.shape_cast %95 : vector<1x64x1xf32> to vector<64x1xf32>
    %97 = vector.broadcast %96 : vector<64x1xf32> to vector<64x16xf32>
    %98 = arith.mulf %94, %97 : vector<64x16xf32>
    %99 = arith.truncf %98 : vector<64x16xf32> to vector<64x16xbf16>
    %c8_61 = arith.constant 8 : index
    %c0_62 = arith.constant 0 : index
    %c0_63 = arith.constant 0 : index
    %100 = vector.load %arg3[%c8_61, %c0_62, %c0_63] : memref<9x16x128xbf16, #tpu.memory_space<vmem>>, vector<1x16x128xbf16>
    %101 = vector.shape_cast %100 : vector<1x16x128xbf16> to vector<16x128xbf16>
    %cst_64 = arith.constant dense<0.000000e+00> : vector<64x128xf32>
    %102 = tpu.matmul %99, %101, %cst_64 {dimension_numbers = #tpu.dot_dimension_numbers<[1], [0], [0], [1], [0, 0, 1, 1], [], []>} : vector<64x16xbf16>, vector<16x128xbf16>, vector<64x128xf32> -> vector<64x128xf32>
    %103 = arith.addf %93, %102 : vector<64x128xf32>
    %c0_65 = arith.constant 0 : index
    %c0_66 = arith.constant 0 : index
    %104 = vector.load %arg10[%c0_65, %c0_66] : memref<3x128xf32, #tpu.memory_space<vmem>>, vector<1x128xf32>
    %c0_67 = arith.constant 0 : index
    %c0_68 = arith.constant 0 : index
    %105 = vector.load %arg11[%c0_67, %c0_68] : memref<3x128xf32, #tpu.memory_space<vmem>>, vector<1x128xf32>
    %106 = vector.broadcast %104 : vector<1x128xf32> to vector<64x128xf32>
    %107 = arith.mulf %103, %106 : vector<64x128xf32>
    %108 = vector.broadcast %105 : vector<1x128xf32> to vector<64x128xf32>
    %109 = arith.addf %107, %108 : vector<64x128xf32>
    %cst_69 = arith.constant 0.000000e+00 : f32
    %110 = vector.broadcast %cst_69 : f32 to vector<64x128xf32>
    %111 = arith.maximumf %109, %110 : vector<64x128xf32>
    %112 = arith.truncf %111 : vector<64x128xf32> to vector<64x128xbf16>
    %c0_70 = arith.constant 0 : index
    %c0_71 = arith.constant 0 : index
    %113 = vector.load %arg4[%c0_70, %c0_71] : memref<128x128xbf16, #tpu.memory_space<vmem>>, vector<128x128xbf16>
    %cst_72 = arith.constant dense<0.000000e+00> : vector<64x128xf32>
    %114 = tpu.matmul %112, %113, %cst_72 {dimension_numbers = #tpu.dot_dimension_numbers<[1], [0], [0], [1], [0, 0, 1, 1], [], []>} : vector<64x128xbf16>, vector<128x128xbf16>, vector<64x128xf32> -> vector<64x128xf32>
    %c1_73 = arith.constant 1 : index
    %c0_74 = arith.constant 0 : index
    %115 = vector.load %arg8[%c1_73, %c0_74] : memref<5x128xf32, #tpu.memory_space<vmem>>, vector<1x128xf32>
    %116 = vector.broadcast %115 : vector<1x128xf32> to vector<64x128xf32>
    %117 = arith.addf %114, %116 : vector<64x128xf32>
    %118 = arith.addf %117, %7 : vector<64x128xf32>
    %c1_75 = arith.constant 1 : index
    %c0_76 = arith.constant 0 : index
    %119 = vector.load %arg10[%c1_75, %c0_76] : memref<3x128xf32, #tpu.memory_space<vmem>>, vector<1x128xf32>
    %c1_77 = arith.constant 1 : index
    %c0_78 = arith.constant 0 : index
    %120 = vector.load %arg11[%c1_77, %c0_78] : memref<3x128xf32, #tpu.memory_space<vmem>>, vector<1x128xf32>
    %121 = vector.broadcast %119 : vector<1x128xf32> to vector<64x128xf32>
    %122 = arith.mulf %118, %121 : vector<64x128xf32>
    %123 = vector.broadcast %120 : vector<1x128xf32> to vector<64x128xf32>
    %124 = arith.addf %122, %123 : vector<64x128xf32>
    %cst_79 = arith.constant 0.000000e+00 : f32
    %125 = vector.broadcast %cst_79 : f32 to vector<64x128xf32>
    %126 = arith.maximumf %124, %125 : vector<64x128xf32>
    %c3_80 = arith.constant 3 : index
    %c0_81 = arith.constant 0 : index
    %127 = vector.load %arg8[%c3_80, %c0_81] : memref<5x128xf32, #tpu.memory_space<vmem>>, vector<1x128xf32>
    %c9_i32_82 = arith.constant 9 : i32
    %128 = tpu.dynamic_rotate %126 by %c9_i32_82 dim 0 : vector<64x128xf32>, i32 -> vector<64x128xf32>
    %c0_83 = arith.constant 0 : index
    %c0_84 = arith.constant 0 : index
    %c0_85 = arith.constant 0 : index
    %129 = vector.load %arg2[%c0_83, %c0_84, %c0_85] : memref<9x64x1xf32, #tpu.memory_space<vmem>>, vector<1x64x1xf32>
    %130 = vector.shape_cast %129 : vector<1x64x1xf32> to vector<64x1xf32>
    %131 = vector.broadcast %130 : vector<64x1xf32> to vector<64x128xf32>
    %132 = arith.mulf %128, %131 : vector<64x128xf32>
    %133 = arith.truncf %132 : vector<64x128xf32> to vector<64x128xbf16>
    %c0_86 = arith.constant 0 : index
    %c0_87 = arith.constant 0 : index
    %134 = vector.load %arg13[%c0_86, %c0_87] : memref<64x1152xbf16, #tpu.memory_space<vmem>>, vector<64x128xbf16>
    tpu.vector_store %arg13[%c0_86, %c0_87], %133 {strides = array<i32>} : memref<64x1152xbf16, #tpu.memory_space<vmem>>, vector<64x128xbf16>,
    %c8_i32_88 = arith.constant 8 : i32
    %135 = tpu.dynamic_rotate %126 by %c8_i32_88 dim 0 : vector<64x128xf32>, i32 -> vector<64x128xf32>
    %c1_89 = arith.constant 1 : index
    %c0_90 = arith.constant 0 : index
    %c0_91 = arith.constant 0 : index
    %136 = vector.load %arg2[%c1_89, %c0_90, %c0_91] : memref<9x64x1xf32, #tpu.memory_space<vmem>>, vector<1x64x1xf32>
    %137 = vector.shape_cast %136 : vector<1x64x1xf32> to vector<64x1xf32>
    %138 = vector.broadcast %137 : vector<64x1xf32> to vector<64x128xf32>
    %139 = arith.mulf %135, %138 : vector<64x128xf32>
    %140 = arith.truncf %139 : vector<64x128xf32> to vector<64x128xbf16>
    %c0_92 = arith.constant 0 : index
    %c128 = arith.constant 128 : index
    %141 = vector.load %arg13[%c0_92, %c128] : memref<64x1152xbf16, #tpu.memory_space<vmem>>, vector<64x128xbf16>
    tpu.vector_store %arg13[%c0_92, %c128], %140 {strides = array<i32>} : memref<64x1152xbf16, #tpu.memory_space<vmem>>, vector<64x128xbf16>,
    %c7_i32_93 = arith.constant 7 : i32
    %142 = tpu.dynamic_rotate %126 by %c7_i32_93 dim 0 : vector<64x128xf32>, i32 -> vector<64x128xf32>
    %c2_94 = arith.constant 2 : index
    %c0_95 = arith.constant 0 : index
    %c0_96 = arith.constant 0 : index
    %143 = vector.load %arg2[%c2_94, %c0_95, %c0_96] : memref<9x64x1xf32, #tpu.memory_space<vmem>>, vector<1x64x1xf32>
    %144 = vector.shape_cast %143 : vector<1x64x1xf32> to vector<64x1xf32>
    %145 = vector.broadcast %144 : vector<64x1xf32> to vector<64x128xf32>
    %146 = arith.mulf %142, %145 : vector<64x128xf32>
    %147 = arith.truncf %146 : vector<64x128xf32> to vector<64x128xbf16>
    %c0_97 = arith.constant 0 : index
    %c256 = arith.constant 256 : index
    %148 = vector.load %arg13[%c0_97, %c256] : memref<64x1152xbf16, #tpu.memory_space<vmem>>, vector<64x128xbf16>
    tpu.vector_store %arg13[%c0_97, %c256], %147 {strides = array<i32>} : memref<64x1152xbf16, #tpu.memory_space<vmem>>, vector<64x128xbf16>,
    %c1_i32_98 = arith.constant 1 : i32
    %149 = tpu.dynamic_rotate %126 by %c1_i32_98 dim 0 : vector<64x128xf32>, i32 -> vector<64x128xf32>
    %c3_99 = arith.constant 3 : index
    %c0_100 = arith.constant 0 : index
    %c0_101 = arith.constant 0 : index
    %150 = vector.load %arg2[%c3_99, %c0_100, %c0_101] : memref<9x64x1xf32, #tpu.memory_space<vmem>>, vector<1x64x1xf32>
    %151 = vector.shape_cast %150 : vector<1x64x1xf32> to vector<64x1xf32>
    %152 = vector.broadcast %151 : vector<64x1xf32> to vector<64x128xf32>
    %153 = arith.mulf %149, %152 : vector<64x128xf32>
    %154 = arith.truncf %153 : vector<64x128xf32> to vector<64x128xbf16>
    %c0_102 = arith.constant 0 : index
    %c384 = arith.constant 384 : index
    %155 = vector.load %arg13[%c0_102, %c384] : memref<64x1152xbf16, #tpu.memory_space<vmem>>, vector<64x128xbf16>
    tpu.vector_store %arg13[%c0_102, %c384], %154 {strides = array<i32>} : memref<64x1152xbf16, #tpu.memory_space<vmem>>, vector<64x128xbf16>,
    %156 = arith.truncf %126 : vector<64x128xf32> to vector<64x128xbf16>
    %c0_103 = arith.constant 0 : index
    %c512 = arith.constant 512 : index
    %157 = vector.load %arg13[%c0_103, %c512] : memref<64x1152xbf16, #tpu.memory_space<vmem>>, vector<64x128xbf16>
    tpu.vector_store %arg13[%c0_103, %c512], %156 {strides = array<i32>} : memref<64x1152xbf16, #tpu.memory_space<vmem>>, vector<64x128xbf16>,
    %c63_i32_104 = arith.constant 63 : i32
    %158 = tpu.dynamic_rotate %126 by %c63_i32_104 dim 0 : vector<64x128xf32>, i32 -> vector<64x128xf32>
    %c5_105 = arith.constant 5 : index
    %c0_106 = arith.constant 0 : index
    %c0_107 = arith.constant 0 : index
    %159 = vector.load %arg2[%c5_105, %c0_106, %c0_107] : memref<9x64x1xf32, #tpu.memory_space<vmem>>, vector<1x64x1xf32>
    %160 = vector.shape_cast %159 : vector<1x64x1xf32> to vector<64x1xf32>
    %161 = vector.broadcast %160 : vector<64x1xf32> to vector<64x128xf32>
    %162 = arith.mulf %158, %161 : vector<64x128xf32>
    %163 = arith.truncf %162 : vector<64x128xf32> to vector<64x128xbf16>
    %c0_108 = arith.constant 0 : index
    %c640 = arith.constant 640 : index
    %164 = vector.load %arg13[%c0_108, %c640] : memref<64x1152xbf16, #tpu.memory_space<vmem>>, vector<64x128xbf16>
    tpu.vector_store %arg13[%c0_108, %c640], %163 {strides = array<i32>} : memref<64x1152xbf16, #tpu.memory_space<vmem>>, vector<64x128xbf16>,
    %c57_i32_109 = arith.constant 57 : i32
    %165 = tpu.dynamic_rotate %126 by %c57_i32_109 dim 0 : vector<64x128xf32>, i32 -> vector<64x128xf32>
    %c6_110 = arith.constant 6 : index
    %c0_111 = arith.constant 0 : index
    %c0_112 = arith.constant 0 : index
    %166 = vector.load %arg2[%c6_110, %c0_111, %c0_112] : memref<9x64x1xf32, #tpu.memory_space<vmem>>, vector<1x64x1xf32>
    %167 = vector.shape_cast %166 : vector<1x64x1xf32> to vector<64x1xf32>
    %168 = vector.broadcast %167 : vector<64x1xf32> to vector<64x128xf32>
    %169 = arith.mulf %165, %168 : vector<64x128xf32>
    %170 = arith.truncf %169 : vector<64x128xf32> to vector<64x128xbf16>
    %c0_113 = arith.constant 0 : index
    %c768 = arith.constant 768 : index
    %171 = vector.load %arg13[%c0_113, %c768] : memref<64x1152xbf16, #tpu.memory_space<vmem>>, vector<64x128xbf16>
    tpu.vector_store %arg13[%c0_113, %c768], %170 {strides = array<i32>} : memref<64x1152xbf16, #tpu.memory_space<vmem>>, vector<64x128xbf16>,
    %c56_i32_114 = arith.constant 56 : i32
    %172 = tpu.dynamic_rotate %126 by %c56_i32_114 dim 0 : vector<64x128xf32>, i32 -> vector<64x128xf32>
    %c7_115 = arith.constant 7 : index
    %c0_116 = arith.constant 0 : index
    %c0_117 = arith.constant 0 : index
    %173 = vector.load %arg2[%c7_115, %c0_116, %c0_117] : memref<9x64x1xf32, #tpu.memory_space<vmem>>, vector<1x64x1xf32>
    %174 = vector.shape_cast %173 : vector<1x64x1xf32> to vector<64x1xf32>
    %175 = vector.broadcast %174 : vector<64x1xf32> to vector<64x128xf32>
    %176 = arith.mulf %172, %175 : vector<64x128xf32>
    %177 = arith.truncf %176 : vector<64x128xf32> to vector<64x128xbf16>
    %c0_118 = arith.constant 0 : index
    %c896 = arith.constant 896 : index
    %178 = vector.load %arg13[%c0_118, %c896] : memref<64x1152xbf16, #tpu.memory_space<vmem>>, vector<64x128xbf16>
    tpu.vector_store %arg13[%c0_118, %c896], %177 {strides = array<i32>} : memref<64x1152xbf16, #tpu.memory_space<vmem>>, vector<64x128xbf16>,
    %c55_i32_119 = arith.constant 55 : i32
    %179 = tpu.dynamic_rotate %126 by %c55_i32_119 dim 0 : vector<64x128xf32>, i32 -> vector<64x128xf32>
    %c8_120 = arith.constant 8 : index
    %c0_121 = arith.constant 0 : index
    %c0_122 = arith.constant 0 : index
    %180 = vector.load %arg2[%c8_120, %c0_121, %c0_122] : memref<9x64x1xf32, #tpu.memory_space<vmem>>, vector<1x64x1xf32>
    %181 = vector.shape_cast %180 : vector<1x64x1xf32> to vector<64x1xf32>
    %182 = vector.broadcast %181 : vector<64x1xf32> to vector<64x128xf32>
    %183 = arith.mulf %179, %182 : vector<64x128xf32>
    %184 = arith.truncf %183 : vector<64x128xf32> to vector<64x128xbf16>
    %c0_123 = arith.constant 0 : index
    %c1024 = arith.constant 1024 : index
    %185 = vector.load %arg13[%c0_123, %c1024] : memref<64x1152xbf16, #tpu.memory_space<vmem>>, vector<64x128xbf16>
    tpu.vector_store %arg13[%c0_123, %c1024], %184 {strides = array<i32>} : memref<64x1152xbf16, #tpu.memory_space<vmem>>, vector<64x128xbf16>,
    %c0_124 = arith.constant 0 : index
    %c0_125 = arith.constant 0 : index
    %186 = vector.load %arg13[%c0_124, %c0_125] : memref<64x1152xbf16, #tpu.memory_space<vmem>>, vector<64x1152xbf16>
    %c0_126 = arith.constant 0 : index
    %c0_127 = arith.constant 0 : index
    %187 = vector.load %arg6[%c0_126, %c0_127] : memref<1152x128xbf16, #tpu.memory_space<vmem>>, vector<1152x128xbf16>
    %cst_128 = arith.constant dense<0.000000e+00> : vector<64x128xf32>
    %188 = tpu.matmul %186, %187, %cst_128 {dimension_numbers = #tpu.dot_dimension_numbers<[1], [0], [0], [1], [0, 0, 1, 1], [], []>} : vector<64x1152xbf16>, vector<1152x128xbf16>, vector<64x128xf32> -> vector<64x128xf32>
    %189 = vector.broadcast %127 : vector<1x128xf32> to vector<64x128xf32>
    %190 = arith.addf %188, %189 : vector<64x128xf32>
    %c2_129 = arith.constant 2 : index
    %c0_130 = arith.constant 0 : index
    %191 = vector.load %arg10[%c2_129, %c0_130] : memref<3x128xf32, #tpu.memory_space<vmem>>, vector<1x128xf32>
    %c2_131 = arith.constant 2 : index
    %c0_132 = arith.constant 0 : index
    %192 = vector.load %arg11[%c2_131, %c0_132] : memref<3x128xf32, #tpu.memory_space<vmem>>, vector<1x128xf32>
    %193 = vector.broadcast %191 : vector<1x128xf32> to vector<64x128xf32>
    %194 = arith.mulf %190, %193 : vector<64x128xf32>
    %195 = vector.broadcast %192 : vector<1x128xf32> to vector<64x128xf32>
    %196 = arith.addf %194, %195 : vector<64x128xf32>
    %cst_133 = arith.constant 0.000000e+00 : f32
    %197 = vector.broadcast %cst_133 : f32 to vector<64x128xf32>
    %198 = arith.maximumf %196, %197 : vector<64x128xf32>
    %c4_134 = arith.constant 4 : index
    %c0_135 = arith.constant 0 : index
    %199 = vector.load %arg8[%c4_134, %c0_135] : memref<5x128xf32, #tpu.memory_space<vmem>>, vector<1x128xf32>
    %c9_i32_136 = arith.constant 9 : i32
    %200 = tpu.dynamic_rotate %198 by %c9_i32_136 dim 0 : vector<64x128xf32>, i32 -> vector<64x128xf32>
    %c0_137 = arith.constant 0 : index
    %c0_138 = arith.constant 0 : index
    %c0_139 = arith.constant 0 : index
    %201 = vector.load %arg2[%c0_137, %c0_138, %c0_139] : memref<9x64x1xf32, #tpu.memory_space<vmem>>, vector<1x64x1xf32>
    %202 = vector.shape_cast %201 : vector<1x64x1xf32> to vector<64x1xf32>
    %203 = vector.broadcast %202 : vector<64x1xf32> to vector<64x128xf32>
    %204 = arith.mulf %200, %203 : vector<64x128xf32>
    %205 = arith.truncf %204 : vector<64x128xf32> to vector<64x128xbf16>
    %c0_140 = arith.constant 0 : index
    %c0_141 = arith.constant 0 : index
    %206 = vector.load %arg13[%c0_140, %c0_141] : memref<64x1152xbf16, #tpu.memory_space<vmem>>, vector<64x128xbf16>
    tpu.vector_store %arg13[%c0_140, %c0_141], %205 {strides = array<i32>} : memref<64x1152xbf16, #tpu.memory_space<vmem>>, vector<64x128xbf16>,
    %c8_i32_142 = arith.constant 8 : i32
    %207 = tpu.dynamic_rotate %198 by %c8_i32_142 dim 0 : vector<64x128xf32>, i32 -> vector<64x128xf32>
    %c1_143 = arith.constant 1 : index
    %c0_144 = arith.constant 0 : index
    %c0_145 = arith.constant 0 : index
    %208 = vector.load %arg2[%c1_143, %c0_144, %c0_145] : memref<9x64x1xf32, #tpu.memory_space<vmem>>, vector<1x64x1xf32>
    %209 = vector.shape_cast %208 : vector<1x64x1xf32> to vector<64x1xf32>
    %210 = vector.broadcast %209 : vector<64x1xf32> to vector<64x128xf32>
    %211 = arith.mulf %207, %210 : vector<64x128xf32>
    %212 = arith.truncf %211 : vector<64x128xf32> to vector<64x128xbf16>
    %c0_146 = arith.constant 0 : index
    %c128_147 = arith.constant 128 : index
    %213 = vector.load %arg13[%c0_146, %c128_147] : memref<64x1152xbf16, #tpu.memory_space<vmem>>, vector<64x128xbf16>
    tpu.vector_store %arg13[%c0_146, %c128_147], %212 {strides = array<i32>} : memref<64x1152xbf16, #tpu.memory_space<vmem>>, vector<64x128xbf16>,
    %c7_i32_148 = arith.constant 7 : i32
    %214 = tpu.dynamic_rotate %198 by %c7_i32_148 dim 0 : vector<64x128xf32>, i32 -> vector<64x128xf32>
    %c2_149 = arith.constant 2 : index
    %c0_150 = arith.constant 0 : index
    %c0_151 = arith.constant 0 : index
    %215 = vector.load %arg2[%c2_149, %c0_150, %c0_151] : memref<9x64x1xf32, #tpu.memory_space<vmem>>, vector<1x64x1xf32>
    %216 = vector.shape_cast %215 : vector<1x64x1xf32> to vector<64x1xf32>
    %217 = vector.broadcast %216 : vector<64x1xf32> to vector<64x128xf32>
    %218 = arith.mulf %214, %217 : vector<64x128xf32>
    %219 = arith.truncf %218 : vector<64x128xf32> to vector<64x128xbf16>
    %c0_152 = arith.constant 0 : index
    %c256_153 = arith.constant 256 : index
    %220 = vector.load %arg13[%c0_152, %c256_153] : memref<64x1152xbf16, #tpu.memory_space<vmem>>, vector<64x128xbf16>
    tpu.vector_store %arg13[%c0_152, %c256_153], %219 {strides = array<i32>} : memref<64x1152xbf16, #tpu.memory_space<vmem>>, vector<64x128xbf16>,
    %c1_i32_154 = arith.constant 1 : i32
    %221 = tpu.dynamic_rotate %198 by %c1_i32_154 dim 0 : vector<64x128xf32>, i32 -> vector<64x128xf32>
    %c3_155 = arith.constant 3 : index
    %c0_156 = arith.constant 0 : index
    %c0_157 = arith.constant 0 : index
    %222 = vector.load %arg2[%c3_155, %c0_156, %c0_157] : memref<9x64x1xf32, #tpu.memory_space<vmem>>, vector<1x64x1xf32>
    %223 = vector.shape_cast %222 : vector<1x64x1xf32> to vector<64x1xf32>
    %224 = vector.broadcast %223 : vector<64x1xf32> to vector<64x128xf32>
    %225 = arith.mulf %221, %224 : vector<64x128xf32>
    %226 = arith.truncf %225 : vector<64x128xf32> to vector<64x128xbf16>
    %c0_158 = arith.constant 0 : index
    %c384_159 = arith.constant 384 : index
    %227 = vector.load %arg13[%c0_158, %c384_159] : memref<64x1152xbf16, #tpu.memory_space<vmem>>, vector<64x128xbf16>
    tpu.vector_store %arg13[%c0_158, %c384_159], %226 {strides = array<i32>} : memref<64x1152xbf16, #tpu.memory_space<vmem>>, vector<64x128xbf16>,
    %228 = arith.truncf %198 : vector<64x128xf32> to vector<64x128xbf16>
    %c0_160 = arith.constant 0 : index
    %c512_161 = arith.constant 512 : index
    %229 = vector.load %arg13[%c0_160, %c512_161] : memref<64x1152xbf16, #tpu.memory_space<vmem>>, vector<64x128xbf16>
    tpu.vector_store %arg13[%c0_160, %c512_161], %228 {strides = array<i32>} : memref<64x1152xbf16, #tpu.memory_space<vmem>>, vector<64x128xbf16>,
    %c63_i32_162 = arith.constant 63 : i32
    %230 = tpu.dynamic_rotate %198 by %c63_i32_162 dim 0 : vector<64x128xf32>, i32 -> vector<64x128xf32>
    %c5_163 = arith.constant 5 : index
    %c0_164 = arith.constant 0 : index
    %c0_165 = arith.constant 0 : index
    %231 = vector.load %arg2[%c5_163, %c0_164, %c0_165] : memref<9x64x1xf32, #tpu.memory_space<vmem>>, vector<1x64x1xf32>
    %232 = vector.shape_cast %231 : vector<1x64x1xf32> to vector<64x1xf32>
    %233 = vector.broadcast %232 : vector<64x1xf32> to vector<64x128xf32>
    %234 = arith.mulf %230, %233 : vector<64x128xf32>
    %235 = arith.truncf %234 : vector<64x128xf32> to vector<64x128xbf16>
    %c0_166 = arith.constant 0 : index
    %c640_167 = arith.constant 640 : index
    %236 = vector.load %arg13[%c0_166, %c640_167] : memref<64x1152xbf16, #tpu.memory_space<vmem>>, vector<64x128xbf16>
    tpu.vector_store %arg13[%c0_166, %c640_167], %235 {strides = array<i32>} : memref<64x1152xbf16, #tpu.memory_space<vmem>>, vector<64x128xbf16>,
    %c57_i32_168 = arith.constant 57 : i32
    %237 = tpu.dynamic_rotate %198 by %c57_i32_168 dim 0 : vector<64x128xf32>, i32 -> vector<64x128xf32>
    %c6_169 = arith.constant 6 : index
    %c0_170 = arith.constant 0 : index
    %c0_171 = arith.constant 0 : index
    %238 = vector.load %arg2[%c6_169, %c0_170, %c0_171] : memref<9x64x1xf32, #tpu.memory_space<vmem>>, vector<1x64x1xf32>
    %239 = vector.shape_cast %238 : vector<1x64x1xf32> to vector<64x1xf32>
    %240 = vector.broadcast %239 : vector<64x1xf32> to vector<64x128xf32>
    %241 = arith.mulf %237, %240 : vector<64x128xf32>
    %242 = arith.truncf %241 : vector<64x128xf32> to vector<64x128xbf16>
    %c0_172 = arith.constant 0 : index
    %c768_173 = arith.constant 768 : index
    %243 = vector.load %arg13[%c0_172, %c768_173] : memref<64x1152xbf16, #tpu.memory_space<vmem>>, vector<64x128xbf16>
    tpu.vector_store %arg13[%c0_172, %c768_173], %242 {strides = array<i32>} : memref<64x1152xbf16, #tpu.memory_space<vmem>>, vector<64x128xbf16>,
    %c56_i32_174 = arith.constant 56 : i32
    %244 = tpu.dynamic_rotate %198 by %c56_i32_174 dim 0 : vector<64x128xf32>, i32 -> vector<64x128xf32>
    %c7_175 = arith.constant 7 : index
    %c0_176 = arith.constant 0 : index
    %c0_177 = arith.constant 0 : index
    %245 = vector.load %arg2[%c7_175, %c0_176, %c0_177] : memref<9x64x1xf32, #tpu.memory_space<vmem>>, vector<1x64x1xf32>
    %246 = vector.shape_cast %245 : vector<1x64x1xf32> to vector<64x1xf32>
    %247 = vector.broadcast %246 : vector<64x1xf32> to vector<64x128xf32>
    %248 = arith.mulf %244, %247 : vector<64x128xf32>
    %249 = arith.truncf %248 : vector<64x128xf32> to vector<64x128xbf16>
    %c0_178 = arith.constant 0 : index
    %c896_179 = arith.constant 896 : index
    %250 = vector.load %arg13[%c0_178, %c896_179] : memref<64x1152xbf16, #tpu.memory_space<vmem>>, vector<64x128xbf16>
    tpu.vector_store %arg13[%c0_178, %c896_179], %249 {strides = array<i32>} : memref<64x1152xbf16, #tpu.memory_space<vmem>>, vector<64x128xbf16>,
    %c55_i32_180 = arith.constant 55 : i32
    %251 = tpu.dynamic_rotate %198 by %c55_i32_180 dim 0 : vector<64x128xf32>, i32 -> vector<64x128xf32>
    %c8_181 = arith.constant 8 : index
    %c0_182 = arith.constant 0 : index
    %c0_183 = arith.constant 0 : index
    %252 = vector.load %arg2[%c8_181, %c0_182, %c0_183] : memref<9x64x1xf32, #tpu.memory_space<vmem>>, vector<1x64x1xf32>
    %253 = vector.shape_cast %252 : vector<1x64x1xf32> to vector<64x1xf32>
    %254 = vector.broadcast %253 : vector<64x1xf32> to vector<64x128xf32>
    %255 = arith.mulf %251, %254 : vector<64x128xf32>
    %256 = arith.truncf %255 : vector<64x128xf32> to vector<64x128xbf16>
    %c0_184 = arith.constant 0 : index
    %c1024_185 = arith.constant 1024 : index
    %257 = vector.load %arg13[%c0_184, %c1024_185] : memref<64x1152xbf16, #tpu.memory_space<vmem>>, vector<64x128xbf16>
    tpu.vector_store %arg13[%c0_184, %c1024_185], %256 {strides = array<i32>} : memref<64x1152xbf16, #tpu.memory_space<vmem>>, vector<64x128xbf16>,
    %c0_186 = arith.constant 0 : index
    %c0_187 = arith.constant 0 : index
    %258 = vector.load %arg13[%c0_186, %c0_187] : memref<64x1152xbf16, #tpu.memory_space<vmem>>, vector<64x1152xbf16>
    %c0_188 = arith.constant 0 : index
    %c0_189 = arith.constant 0 : index
    %259 = vector.load %arg7[%c0_188, %c0_189] : memref<1152x128xbf16, #tpu.memory_space<vmem>>, vector<1152x128xbf16>
    %cst_190 = arith.constant dense<0.000000e+00> : vector<64x128xf32>
    %260 = tpu.matmul %258, %259, %cst_190 {dimension_numbers = #tpu.dot_dimension_numbers<[1], [0], [0], [1], [0, 0, 1, 1], [], []>} : vector<64x1152xbf16>, vector<1152x128xbf16>, vector<64x128xf32> -> vector<64x128xf32>
    %261 = vector.broadcast %199 : vector<1x128xf32> to vector<64x128xf32>
    %262 = arith.addf %260, %261 : vector<64x128xf32>
    %263 = arith.addf %118, %262 : vector<64x128xf32>
    %c0_191 = arith.constant 0 : index
    %c0_192 = arith.constant 0 : index
    %c0_193 = arith.constant 0 : index
    %264 = vector.load %arg12[%c0_191, %c0_192, %c0_193] : memref<1x64x128xf32, #tpu.memory_space<vmem>>, vector<1x64x128xf32>
    %265 = vector.shape_cast %264 : vector<1x64x128xf32> to vector<64x128xf32>
    %266 = vector.shape_cast %263 : vector<64x128xf32> to vector<1x64x128xf32>
    tpu.vector_store %arg12[%c0_191, %c0_192, %c0_193], %266 {strides = array<i32>} : memref<1x64x128xf32, #tpu.memory_space<vmem>>, vector<1x64x128xf32>,
    return
  }
  func.func @transform_0(%arg0: i32) -> (i32, i32, i32) {
    %c0_i32 = arith.constant 0 : i32
    %c0_i32_0 = arith.constant 0 : i32
    %c0_i32_1 = arith.constant 0 : i32
    return %arg0, %c0_i32, %c0_i32_0 : i32, i32, i32
  }
  func.func @transform_1(%arg0: i32) -> (i32, i32, i32) {
    %c0_i32 = arith.constant 0 : i32
    %c0_i32_0 = arith.constant 0 : i32
    %c0_i32_1 = arith.constant 0 : i32
    %c0_i32_2 = arith.constant 0 : i32
    return %c0_i32, %c0_i32_0, %c0_i32_1 : i32, i32, i32
  }
  func.func @transform_2(%arg0: i32) -> (i32, i32, i32) {
    %c0_i32 = arith.constant 0 : i32
    %c0_i32_0 = arith.constant 0 : i32
    %c0_i32_1 = arith.constant 0 : i32
    %c0_i32_2 = arith.constant 0 : i32
    return %c0_i32, %c0_i32_0, %c0_i32_1 : i32, i32, i32
  }
  func.func @transform_3(%arg0: i32) -> (i32, i32) {
    %c0_i32 = arith.constant 0 : i32
    %c0_i32_0 = arith.constant 0 : i32
    %c0_i32_1 = arith.constant 0 : i32
    return %c0_i32, %c0_i32_0 : i32, i32
  }
  func.func @transform_4(%arg0: i32) -> (i32, i32) {
    %c0_i32 = arith.constant 0 : i32
    %c0_i32_0 = arith.constant 0 : i32
    %c0_i32_1 = arith.constant 0 : i32
    return %c0_i32, %c0_i32_0 : i32, i32
  }
  func.func @transform_5(%arg0: i32) -> (i32, i32) {
    %c0_i32 = arith.constant 0 : i32
    %c0_i32_0 = arith.constant 0 : i32
    %c0_i32_1 = arith.constant 0 : i32
    return %c0_i32, %c0_i32_0 : i32, i32
  }
  func.func @transform_6(%arg0: i32) -> (i32, i32) {
    %c0_i32 = arith.constant 0 : i32
    %c0_i32_0 = arith.constant 0 : i32
    %c0_i32_1 = arith.constant 0 : i32
    return %c0_i32, %c0_i32_0 : i32, i32
  }
  func.func @transform_7(%arg0: i32) -> (i32, i32) {
    %c0_i32 = arith.constant 0 : i32
    %c0_i32_0 = arith.constant 0 : i32
    %c0_i32_1 = arith.constant 0 : i32
    return %c0_i32, %c0_i32_0 : i32, i32
  }
  func.func @transform_8(%arg0: i32) -> (i32, i32) {
    %c0_i32 = arith.constant 0 : i32
    %c0_i32_0 = arith.constant 0 : i32
    %c0_i32_1 = arith.constant 0 : i32
    return %c0_i32, %c0_i32_0 : i32, i32
  }
  func.func @transform_9(%arg0: i32) -> (i32, i32) {
    %c0_i32 = arith.constant 0 : i32
    %c0_i32_0 = arith.constant 0 : i32
    %c0_i32_1 = arith.constant 0 : i32
    return %c0_i32, %c0_i32_0 : i32, i32
  }
  func.func @transform_10(%arg0: i32) -> (i32, i32) {
    %c0_i32 = arith.constant 0 : i32
    %c0_i32_0 = arith.constant 0 : i32
    %c0_i32_1 = arith.constant 0 : i32
    return %c0_i32, %c0_i32_0 : i32, i32
  }
  func.func @transform_11(%arg0: i32) -> (i32, i32, i32) {
    %c0_i32 = arith.constant 0 : i32
    %c0_i32_0 = arith.constant 0 : i32
    %c0_i32_1 = arith.constant 0 : i32
    return %arg0, %c0_i32, %c0_i32_0 : i32, i32, i32
  }
}

</mosaic_0001>

<llo_original>
// kernel: resdown_forward.1
$region0: #{resdown_forward.1}
  #allocation0 [shape = 'u32[]', space=smem, size = 0x4, offset = 0x4, fixed_abs, tag = 'smem constant byte address 0x4 - core index']
  #allocation1 [shape = 'u32[144,128]{1,0:T(1,128)}', space=vmem, size = 0x12000, scoped, tag = 'internal scratch']
  #allocation2 [shape = 'bf16[64,1152]{1,0:T(16,128)(2,1)}', space=vmem, size = 0x24000, scoped, tag = 'scratch operand']
  %s0 = inlined_call_operand.vmem [shape: f32[2,64,16], index: 0, kind: input, shape index: {}]
  %s1 = inlined_call_operand.vmem [shape: f32[9,64,1], index: 1, kind: input, shape index: {}]
  %s2 = inlined_call_operand.vmem [shape: bf16[9,16,128], index: 2, kind: input, shape index: {}]
  %s3 = inlined_call_operand.vmem [shape: bf16[128,128], index: 3, kind: input, shape index: {}]
  %s4 = inlined_call_operand.vmem [shape: bf16[16,128], index: 4, kind: input, shape index: {}]
  %s5 = inlined_call_operand.vmem [shape: bf16[1152,128], index: 5, kind: input, shape index: {}]
  %s6 = inlined_call_operand.vmem [shape: bf16[1152,128], index: 6, kind: input, shape index: {}]
  %s7 = inlined_call_operand.vmem [shape: f32[5,128], index: 7, kind: input, shape index: {}]
  %s8 = inlined_call_operand.vmem [shape: f32[2,16], index: 8, kind: input, shape index: {}]
  %s9 = inlined_call_operand.vmem [shape: f32[3,128], index: 9, kind: input, shape index: {}]
  %s10 = inlined_call_operand.vmem [shape: f32[3,128], index: 10, kind: input, shape index: {}]
  %s11 = inlined_call_operand.vmem [shape: f32[2,64,128], index: 11, kind: output, shape index: {}]
  %s12 = sld [smem:[#allocation0]]
  $region77: #{resdown_forward.1} parent=0
    _
  %s14 = ssub.s32 1, %s12
  %s15 = scalar_select 0, %s14, %s12
  loop: start=0, step=1, limit=4
  $region2: #{resdown_forward.1} parent=0 // loop_pre_header
    _
  $region3: #{resdown_forward.1} parent=0 // loop_header
    %s17 = sphi 0, %s21
    %p18 = scmp.ge.s32.totalorder %s17, 4
    %s27 = sphi 0, %s29
    %s30 = sphi 0, %s27
    %s31 = sphi 0, %s30
    %s47 = sphi 0, %s31
    %s51 = sphi 0, %s51
    %s53 = sphi 0, %s51
    %s54 = sphi 0, %s53
    %s68 = sphi 0, %s54
    %s72 = sphi 0, %s72
    %s74 = sphi 0, %s72
    %s75 = sphi 0, %s74
    %s89 = sphi 0, %s75
    %s93 = sphi 0, %s93
    %s95 = sphi 0, %s93
    %s96 = sphi 0, %s95
    %s110 = sphi 0, %s96
    %s114 = sphi 0, %s114
    %s116 = sphi 0, %s114
    %s117 = sphi 0, %s116
    %s131 = sphi 0, %s117
    %s135 = sphi 0, %s135
    %s137 = sphi 0, %s135
    %s138 = sphi 0, %s137
    %s152 = sphi 0, %s138
    %s156 = sphi 0, %s156
    %s158 = sphi 0, %s156
    %s159 = sphi 0, %s158
    %s173 = sphi 0, %s159
    %s177 = sphi 0, %s177
    %s179 = sphi 0, %s177
    %s180 = sphi 0, %s179
    %s194 = sphi 0, %s180
    %s198 = sphi 0, %s198
    %s200 = sphi 0, %s198
    %s201 = sphi 0, %s200
    %s215 = sphi 0, %s201
    %s219 = sphi 0, %s219
    %s221 = sphi 0, %s219
    %s222 = sphi 0, %s221
    %s236 = sphi 0, %s222
    %s240 = sphi 0, %s240
    %s242 = sphi 0, %s240
    %s243 = sphi 0, %s242
    %s257 = sphi 0, %s243
    %s263 = sphi 0, %s265
    %s266 = sphi 0, %s263
    %s267 = sphi 0, %s266
    %s283 = sphi 0, %s267
  $region4: #{resdown_forward.1} parent=0 // loop_header_branch
    %20 = sbr.rel (%p18) target = $region8
  $region5: #{resdown_forward.1} parent=0 // loop_body
    %s22 = ssub.s32 %s17, 1
    %s23 = ssub.s32 %s17, 2
    %s24 = sadd.s32 %s17, 1
    %s25 = ssub.s32 %s17, %s24
    %p26 = scmp.eq.s32.totalorder %s25, 0
    %s28 = sadd.s32 %s27, 1
    %s29 = scalar_select %p26, %s27, %s28
    %p32 = pneg %p26
    %p33 = scmp.eq.s32.totalorder %s17, 1
    %p34 = por %p32, %p33
    %p35 = scmp.ne.s32.totalorder %s27, %s30
    %p36 = scmp.eq.s32.totalorder %s17, 0
    %p37 = por %p35, %p36
    %p38 = scmp.ne.s32.totalorder %s27, %s30
    %p39 = scmp.eq.s32.totalorder %s22, 1
    %p40 = por %p38, %p39
    %p41 = scmp.ne.s32.totalorder %s30, %s31
    %p42 = scmp.eq.s32.totalorder %s22, 0
    %p43 = por %p41, %p42
    %p44 = scmp.ne.s32.totalorder %s30, %s31
    %p45 = scmp.eq.s32.totalorder %s23, 1
    %p46 = por %p44, %p45
    %p48 = scmp.ne.s32.totalorder %s31, %s47
    %p49 = scmp.eq.s32.totalorder %s23, 0
    %p50 = por %p48, %p49
    %s52 = sadd.s32 %s51, 1
    %p55 = scmp.eq.s32.totalorder %s17, 1
    %p56 = scmp.ne.s32.totalorder %s51, %s53
    %p57 = scmp.eq.s32.totalorder %s17, 0
    %p58 = por %p56, %p57
    %p59 = scmp.ne.s32.totalorder %s51, %s53
    %p60 = scmp.eq.s32.totalorder %s22, 1
    %p61 = por %p59, %p60
    %p62 = scmp.ne.s32.totalorder %s53, %s54
    %p63 = scmp.eq.s32.totalorder %s22, 0
    %p64 = por %p62, %p63
    %p65 = scmp.ne.s32.totalorder %s53, %s54
    %p66 = scmp.eq.s32.totalorder %s23, 1
    %p67 = por %p65, %p66
    %p69 = scmp.ne.s32.totalorder %s54, %s68
    %p70 = scmp.eq.s32.totalorder %s23, 0
    %p71 = por %p69, %p70
    %s73 = sadd.s32 %s72, 1
    %p76 = scmp.eq.s32.totalorder %s17, 1
    %p77 = scmp.ne.s32.totalorder %s72, %s74
    %p78 = scmp.eq.s32.totalorder %s17, 0
    %p79 = por %p77, %p78
    %p80 = scmp.ne.s32.totalorder %s72, %s74
    %p81 = scmp.eq.s32.totalorder %s22, 1
    %p82 = por %p80, %p81
    %p83 = scmp.ne.s32.totalorder %s74, %s75
    %p84 = scmp.eq.s32.totalorder %s22, 0
    %p85 = por %p83, %p84
    %p86 = scmp.ne.s32.totalorder %s74, %s75
    %p87 = scmp.eq.s32.totalorder %s23, 1
    %p88 = por %p86, %p87
    %p90 = scmp.ne.s32.totalorder %s75, %s89
    %p91 = scmp.eq.s32.totalorder %s23, 0
    %p92 = por %p90, %p91
    %s94 = sadd.s32 %s93, 1
    %p97 = scmp.eq.s32.totalorder %s17, 1
    %p98 = scmp.ne.s32.totalorder %s93, %s95
    %p99 = scmp.eq.s32.totalorder %s17, 0
    %p100 = por %p98, %p99
    %p101 = scmp.ne.s32.totalorder %s93, %s95
    %p102 = scmp.eq.s32.totalorder %s22, 1
    %p103 = por %p101, %p102
    %p104 = scmp.ne.s32.totalorder %s95, %s96
    %p105 = scmp.eq.s32.totalorder %s22, 0
    %p106 = por %p104, %p105
    %p107 = scmp.ne.s32.totalorder %s95, %s96
    %p108 = scmp.eq.s32.totalorder %s23, 1
    %p109 = por %p107, %p108
    %p111 = scmp.ne.s32.totalorder %s96, %s110
    %p112 = scmp.eq.s32.totalorder %s23, 0
    %p113 = por %p111, %p112
    %s115 = sadd.s32 %s114, 1
    %p118 = scmp.eq.s32.totalorder %s17, 1
    %p119 = scmp.ne.s32.totalorder %s114, %s116
    %p120 = scmp.eq.s32.totalorder %s17, 0
    %p121 = por %p119, %p120
    %p122 = scmp.ne.s32.totalorder %s114, %s116
    %p123 = scmp.eq.s32.totalorder %s22, 1
    %p124 = por %p122, %p123
    %p125 = scmp.ne.s32.totalorder %s116, %s117
    %p126 = scmp.eq.s32.totalorder %s22, 0
    %p127 = por %p125, %p126
    %p128 = scmp.ne.s32.totalorder %s116, %s117
    %p129 = scmp.eq.s32.totalorder %s23, 1
    %p130 = por %p128, %p129
    %p132 = scmp.ne.s32.totalorder %s117, %s131
    %p133 = scmp.eq.s32.totalorder %s23, 0
    %p134 = por %p132, %p133
    %s136 = sadd.s32 %s135, 1
    %p139 = scmp.eq.s32.totalorder %s17, 1
    %p140 = scmp.ne.s32.totalorder %s135, %s137
    %p141 = scmp.eq.s32.totalorder %s17, 0
    %p142 = por %p140, %p141
    %p143 = scmp.ne.s32.totalorder %s135, %s137
    %p144 = scmp.eq.s32.totalorder %s22, 1
    %p145 = por %p143, %p144
    %p146 = scmp.ne.s32.totalorder %s137, %s138
    %p147 = scmp.eq.s32.totalorder %s22, 0
    %p148 = por %p146, %p147
    %p149 = scmp.ne.s32.totalorder %s137, %s138
    %p150 = scmp.eq.s32.totalorder %s23, 1
    %p151 = por %p149, %p150
    %p153 = scmp.ne.s32.totalorder %s138, %s152
    %p154 = scmp.eq.s32.totalorder %s23, 0
    %p155 = por %p153, %p154
    %s157 = sadd.s32 %s156, 1
    %p160 = scmp.eq.s32.totalorder %s17, 1
    %p161 = scmp.ne.s32.totalorder %s156, %s158
    %p162 = scmp.eq.s32.totalorder %s17, 0
    %p163 = por %p161, %p162
    %p164 = scmp.ne.s32.totalorder %s156, %s158
    %p165 = scmp.eq.s32.totalorder %s22, 1
    %p166 = por %p164, %p165
    %p167 = scmp.ne.s32.totalorder %s158, %s159
    %p168 = scmp.eq.s32.totalorder %s22, 0
    %p169 = por %p167, %p168
    %p170 = scmp.ne.s32.totalorder %s158, %s159
    %p171 = scmp.eq.s32.totalorder %s23, 1
    %p172 = por %p170, %p171
    %p174 = scmp.ne.s32.totalorder %s159, %s173
    %p175 = scmp.eq.s32.totalorder %s23, 0
    %p176 = por %p174, %p175
    %s178 = sadd.s32 %s177, 1
    %p181 = scmp.eq.s32.totalorder %s17, 1
    %p182 = scmp.ne.s32.totalorder %s177, %s179
    %p183 = scmp.eq.s32.totalorder %s17, 0
    %p184 = por %p182, %p183
    %p185 = scmp.ne.s32.totalorder %s177, %s179
    %p186 = scmp.eq.s32.totalorder %s22, 1
    %p187 = por %p185, %p186
    %p188 = scmp.ne.s32.totalorder %s179, %s180
    %p189 = scmp.eq.s32.totalorder %s22, 0
    %p190 = por %p188, %p189
    %p191 = scmp.ne.s32.totalorder %s179, %s180
    %p192 = scmp.eq.s32.totalorder %s23, 1
    %p193 = por %p191, %p192
    %p195 = scmp.ne.s32.totalorder %s180, %s194
    %p196 = scmp.eq.s32.totalorder %s23, 0
    %p197 = por %p195, %p196
    %s199 = sadd.s32 %s198, 1
    %p202 = scmp.eq.s32.totalorder %s17, 1
    %p203 = scmp.ne.s32.totalorder %s198, %s200
    %p204 = scmp.eq.s32.totalorder %s17, 0
    %p205 = por %p203, %p204
    %p206 = scmp.ne.s32.totalorder %s198, %s200
    %p207 = scmp.eq.s32.totalorder %s22, 1
    %p208 = por %p206, %p207
    %p209 = scmp.ne.s32.totalorder %s200, %s201
    %p210 = scmp.eq.s32.totalorder %s22, 0
    %p211 = por %p209, %p210
    %p212 = scmp.ne.s32.totalorder %s200, %s201
    %p213 = scmp.eq.s32.totalorder %s23, 1
    %p214 = por %p212, %p213
    %p216 = scmp.ne.s32.totalorder %s201, %s215
    %p217 = scmp.eq.s32.totalorder %s23, 0
    %p218 = por %p216, %p217
    %s220 = sadd.s32 %s219, 1
    %p223 = scmp.eq.s32.totalorder %s17, 1
    %p224 = scmp.ne.s32.totalorder %s219, %s221
    %p225 = scmp.eq.s32.totalorder %s17, 0
    %p226 = por %p224, %p225
    %p227 = scmp.ne.s32.totalorder %s219, %s221
    %p228 = scmp.eq.s32.totalorder %s22, 1
    %p229 = por %p227, %p228
    %p230 = scmp.ne.s32.totalorder %s221, %s222
    %p231 = scmp.eq.s32.totalorder %s22, 0
    %p232 = por %p230, %p231
    %p233 = scmp.ne.s32.totalorder %s221, %s222
    %p234 = scmp.eq.s32.totalorder %s23, 1
    %p235 = por %p233, %p234
    %p237 = scmp.ne.s32.totalorder %s222, %s236
    %p238 = scmp.eq.s32.totalorder %s23, 0
    %p239 = por %p237, %p238
    %s241 = sadd.s32 %s240, 1
    %p244 = scmp.eq.s32.totalorder %s17, 1
    %p245 = scmp.ne.s32.totalorder %s240, %s242
    %p246 = scmp.eq.s32.totalorder %s17, 0
    %p247 = por %p245, %p246
    %p248 = scmp.ne.s32.totalorder %s240, %s242
    %p249 = scmp.eq.s32.totalorder %s22, 1
    %p250 = por %p248, %p249
    %p251 = scmp.ne.s32.totalorder %s242, %s243
    %p252 = scmp.eq.s32.totalorder %s22, 0
    %p253 = por %p251, %p252
    %p254 = scmp.ne.s32.totalorder %s242, %s243
    %p255 = scmp.eq.s32.totalorder %s23, 1
    %p256 = por %p254, %p255
    %p258 = scmp.ne.s32.totalorder %s243, %s257
    %p259 = scmp.eq.s32.totalorder %s23, 0
    %p260 = por %p258, %p259
    %s261 = ssub.s32 %s17, %s24
    %p262 = scmp.eq.s32.totalorder %s261, 0
    %s264 = sadd.s32 %s263, 1
    %s265 = scalar_select %p262, %s263, %s264
    %p268 = pneg %p262
    %p269 = scmp.eq.s32.totalorder %s17, 1
    %p270 = por %p268, %p269
    %p271 = scmp.ne.s32.totalorder %s263, %s266
    %p272 = scmp.eq.s32.totalorder %s17, 0
    %p273 = por %p271, %p272
    %p274 = scmp.ne.s32.totalorder %s263, %s266
    %p275 = scmp.eq.s32.totalorder %s22, 1
    %p276 = por %p274, %p275
    %p277 = scmp.ne.s32.totalorder %s266, %s267
    %p278 = scmp.eq.s32.totalorder %s22, 0
    %p279 = por %p277, %p278
    %p280 = scmp.ne.s32.totalorder %s266, %s267
    %p281 = scmp.eq.s32.totalorder %s23, 1
    %p282 = por %p280, %p281
    %p284 = scmp.ne.s32.totalorder %s267, %s283
    %p285 = scmp.eq.s32.totalorder %s23, 0
    %p286 = por %p284, %p285
    %p287 = scmp.le.s32.totalorder 1, %s17
    %p288 = scmp.lt.s32.totalorder %s17, 3
    %p289 = pnand %p287, %p288
    %p290 = pneg %p289
    // Predicated region
    $region9: #{resdown_forward.1} parent=5 // pred_check
      _
    $region10: #{resdown_forward.1} parent=5 // pred_check_branch
      %292 = sbr.rel (%p289) target = $region12
    $region11: #{resdown_forward.1} parent=5 // pred_region
      %s293 = ssub.s32 %s17, 1
      // Predicated region
      $region13: #{resdown_forward.1} parent=11 // pred_check
        %p294 = pneg %p64
      $region14: #{resdown_forward.1} parent=11 // pred_check_branch
        %296 = sbr.rel (%p294) target = $region16
      $region15: #{resdown_forward.1} parent=11 // pred_region
        _
      $region16: #{resdown_forward.1} parent=11 // pred_fallthru
        _
      // Predicated region
      $region17: #{resdown_forward.1} parent=11 // pred_check
        %p297 = pneg %p85
      $region18: #{resdown_forward.1} parent=11 // pred_check_branch
        %299 = sbr.rel (%p297) target = $region20
      $region19: #{resdown_forward.1} parent=11 // pred_region
        _
      $region20: #{resdown_forward.1} parent=11 // pred_fallthru
        _
      // Predicated region
      $region21: #{resdown_forward.1} parent=11 // pred_check
        %p300 = pneg %p106
      $region22: #{resdown_forward.1} parent=11 // pred_check_branch
        %302 = sbr.rel (%p300) target = $region24
      $region23: #{resdown_forward.1} parent=11 // pred_region
        _
      $region24: #{resdown_forward.1} parent=11 // pred_fallthru
        _
      // Predicated region
      $region25: #{resdown_forward.1} parent=11 // pred_check
        %p303 = pneg %p127
      $region26: #{resdown_forward.1} parent=11 // pred_check_branch
        %305 = sbr.rel (%p303) target = $region28
      $region27: #{resdown_forward.1} parent=11 // pred_region
        _
      $region28: #{resdown_forward.1} parent=11 // pred_fallthru
        _
      // Predicated region
      $region29: #{resdown_forward.1} parent=11 // pred_check
        %p306 = pneg %p148
      $region30: #{resdown_forward.1} parent=11 // pred_check_branch
        %308 = sbr.rel (%p306) target = $region32
      $region31: #{resdown_forward.1} parent=11 // pred_region
        _
      $region32: #{resdown_forward.1} parent=11 // pred_fallthru
        _
      // Predicated region
      $region33: #{resdown_forward.1} parent=11 // pred_check
        %p309 = pneg %p169
      $region34: #{resdown_forward.1} parent=11 // pred_check_branch
        %311 = sbr.rel (%p309) target = $region36
      $region35: #{resdown_forward.1} parent=11 // pred_region
        _
      $region36: #{resdown_forward.1} parent=11 // pred_fallthru
        _
      // Predicated region
      $region37: #{resdown_forward.1} parent=11 // pred_check
        %p312 = pneg %p190
      $region38: #{resdown_forward.1} parent=11 // pred_check_branch
        %314 = sbr.rel (%p312) target = $region40
      $region39: #{resdown_forward.1} parent=11 // pred_region
        _
      $region40: #{resdown_forward.1} parent=11 // pred_fallthru
        _
      // Predicated region
      $region41: #{resdown_forward.1} parent=11 // pred_check
        %p315 = pneg %p211
      $region42: #{resdown_forward.1} parent=11 // pred_check_branch
        %317 = sbr.rel (%p315) target = $region44
      $region43: #{resdown_forward.1} parent=11 // pred_region
        _
      $region44: #{resdown_forward.1} parent=11 // pred_fallthru
        _
      // Predicated region
      $region45: #{resdown_forward.1} parent=11 // pred_check
        %p318 = pneg %p232
      $region46: #{resdown_forward.1} parent=11 // pred_check_branch
        %320 = sbr.rel (%p318) target = $region48
      $region47: #{resdown_forward.1} parent=11 // pred_region
        _
      $region48: #{resdown_forward.1} parent=11 // pred_fallthru
        _
      // Predicated region
      $region49: #{resdown_forward.1} parent=11 // pred_check
        %p321 = pneg %p253
      $region50: #{resdown_forward.1} parent=11 // pred_check_branch
        %323 = sbr.rel (%p321) target = $region52
      $region51: #{resdown_forward.1} parent=11 // pred_region
        _
      $region52: #{resdown_forward.1} parent=11 // pred_fallthru
        _
    $region12: #{resdown_forward.1} parent=5 // pred_fallthru
      _
    %p324 = scmp.lt.s32.totalorder %s17, 2
    // Predicated region
    $region53: #{resdown_forward.1} parent=5 // pred_check
      %p325 = pneg %p324
    $region54: #{resdown_forward.1} parent=5 // pred_check_branch
      %327 = sbr.rel (%p325) target = $region56
    $region55: #{resdown_forward.1} parent=5 // pred_region
      // Predicated region
      $region57: #{resdown_forward.1} parent=55 // pred_check
        %p328 = pneg %p37
      $region58: #{resdown_forward.1} parent=55 // pred_check_branch
        %330 = sbr.rel (%p328) target = $region60
      $region59: #{resdown_forward.1} parent=55 // pred_region
        %p331 = scmp.lt.s32.totalorder %s17, 1
        %s332 = scalar_select %p331, %s17, 1
        %s333 = smul.addr %s332, 8
        %s334 = smul.addr %s333, 8
        %s335 = scalar_lea.vmem %s0, %s334
      $region60: #{resdown_forward.1} parent=55 // pred_fallthru
        _
    $region56: #{resdown_forward.1} parent=5 // pred_fallthru
      _
    %p336 = scmp.le.s32.totalorder 1, %s17
    %p337 = scmp.lt.s32.totalorder %s17, 3
    %p338 = pnand %p336, %p337
    %p339 = pneg %p338
    // Predicated region
    $region61: #{resdown_forward.1} parent=5 // pred_check
      _
    $region62: #{resdown_forward.1} parent=5 // pred_check_branch
      %341 = sbr.rel (%p338) target = $region64
    $region63: #{resdown_forward.1} parent=5 // pred_region
      %s342 = ssub.s32 %s17, 1
      %p343 = scmp.lt.s32.totalorder %s22, 1
      %s344 = scalar_select %p343, %s22, 1
      %s345 = smul.addr %s344, 8
      %s346 = smul.addr %s345, 8
      %s347 = scalar_lea.vmem %s0, %s346
      %p348 = pneg %p43
      %p349 = pneg %p40
      %p350 = pneg %p64
      %p351 = pneg %p61
      %p352 = pneg %p85
      %p353 = pneg %p82
      %p354 = pneg %p106
      %p355 = pneg %p103
      %p356 = pneg %p127
      %p357 = pneg %p124
      %p358 = pneg %p148
      %p359 = pneg %p145
      %p360 = pneg %p169
      %p361 = pneg %p166
      %p362 = pneg %p190
      %p363 = pneg %p187
      %p364 = pneg %p211
      %p365 = pneg %p208
      %p366 = pneg %p232
      %p367 = pneg %p229
      %p368 = pneg %p253
      %p369 = pneg %p250
      %p370 = pneg %p279
      %p371 = pneg %p276
      %p372 = scmp.lt.s32.totalorder %s22, 1
      %s373 = scalar_select %p372, %s22, 1
      %s374 = smul.addr %s373, 8
      %s375 = smul.addr %s374, 8
      %s376 = scalar_lea.vmem %s11, %s375
      %p377 = scmp.lt.s32.totalorder %s22, 1
      %s378 = scalar_select %p377, %s22, 1
      %s379 = smul.addr %s378, 8
      %s380 = smul.addr %s379, 8
      %s381 = scalar_lea.vmem %s0, %s380
      %p382 = scmp.lt.s32.totalorder %s22, 1
      %s383 = scalar_select %p382, %s22, 1
      %s384 = smul.addr %s383, 8
      %s385 = smul.addr %s384, 8
      %s386 = scalar_lea.vmem %s11, %s385
      %v388 = vld [vmem:[%s381] sm:$0xff]
      %v389 = vld [vmem:[%s381 + $0x8] sm:$0xff]
      %v390 = vld [vmem:[%s381 + $0x10] sm:$0xff]
      %v391 = vld [vmem:[%s381 + $0x18] sm:$0xff]
      %v392 = vld [vmem:[%s381 + $0x20] sm:$0xff]
      %v393 = vld [vmem:[%s381 + $0x28] sm:$0xff]
      %v394 = vld [vmem:[%s381 + $0x30] sm:$0xff]
      %v395 = vld [vmem:[%s381 + $0x38] sm:$0xff]
      %v396 = vpack.c.bf16 %v389, %v388
      %v397 = vpack.c.bf16 %v391, %v390
      %v398 = vpack.c.bf16 %v393, %v392
      %v399 = vpack.c.bf16 %v395, %v394
      %v400 = vld [vmem:[%s4] sm:$0xf]
      %v401 = vld [vmem:[%s4 + $0x4] sm:$0xf]
      %v402 = vld [vmem:[%s7 + $0x2] sm:$0x1]
      %v403 = vlaneseq
      %v404 = vshrl.u32 %v403, 7
      %v405 = vsub.s32 0, %v404
      %v406 = vrot.slane %v402, %v405
      %v409 = vunpack.c.l.b16 %v400
      %v410 = vunpack.c.l.b16 %v401
      %v411 = vpack.c.b16 %v410, %v409
      %vm413 = vcmask 130048
      %v415 = vsel %vm413, %v396, 0
      %v418 = vsel %vm413, %v397, 0
      %v421 = vsel %vm413, %v398, 0
      %v424 = vsel %vm413, %v399, 0
      %426 = vmatprep.subr.bf16.mxu0 0
      %427 = vmatpush1.bf16.msra.mxu0 %v411
      %428 = vmatprep.subr.bf16.mxu0 0
      %429 = vmatpush1.bf16.msra.mxu0 0
      %430 = vmatprep.subr.bf16.mxu0 0
      %431 = vmatpush1.bf16.msra.mxu0 0
      %432 = vmatprep.subr.bf16.mxu0 0
      %433 = vmatpush1.bf16.msra.mxu0 0
      %434 = vmatprep.subr.bf16.mxu0 0
      %435 = vmatpush1.bf16.msra.mxu0 0
      %436 = vmatprep.subr.bf16.mxu0 0
      %437 = vmatpush1.bf16.msra.mxu0 0
      %438 = vmatprep.subr.bf16.mxu0 0
      %439 = vmatpush1.bf16.msra.mxu0 0
      %440 = vmatprep.subr.bf16.mxu0 0
      %441 = vmatpush1.bf16.msra.mxu0 0
      %442 = vmatprep.subr.bf16.mxu0 0
      %443 = vmatpush1.bf16.msra.mxu0 0
      %444 = vmatprep.subr.bf16.mxu0 0
      %445 = vmatpush1.bf16.msra.mxu0 0
      %446 = vmatprep.subr.bf16.mxu0 0
      %447 = vmatpush1.bf16.msra.mxu0 0
      %448 = vmatprep.subr.bf16.mxu0 0
      %449 = vmatpush1.bf16.msra.mxu0 0
      %450 = vmatprep.subr.bf16.mxu0 0
      %451 = vmatpush1.bf16.msra.mxu0 0
      %452 = vmatprep.subr.bf16.mxu0 0
      %453 = vmatpush1.bf16.msra.mxu0 0
      %454 = vmatprep.subr.bf16.mxu0 0
      %455 = vmatpush1.bf16.msra.mxu0 0
      %456 = vmatprep.subr.bf16.mxu0 0
      %457 = vmatpush1.bf16.msra.mxu0 0
      %458 = vmatprep.mubr.bf16.mxu0 0
      %459 = vmatmul.mubr.bf16.gmra.mrb[0].mxu0 %v415
      %v460 = vpop.f32.mrb[0].mxu0
      %v461 = vadd.f32 %v406, %v460
      %v462 = vpop.f32.mrb[0].mxu0
      %v463 = vpop.f32.mrb[0].mxu0
      %v464 = vadd.f32 %v406, %v463
      %v465 = vpop.f32.mrb[0].mxu0
      %466 = vmatprep.mubr.bf16.mxu0 0
      %467 = vmatmul.mubr.bf16.gmra.mrb[0].mxu0 %v418
      %v468 = vpop.f32.mrb[0].mxu0
      %v469 = vadd.f32 %v406, %v468
      %v470 = vpop.f32.mrb[0].mxu0
      %v471 = vpop.f32.mrb[0].mxu0
      %v472 = vadd.f32 %v406, %v471
      %v473 = vpop.f32.mrb[0].mxu0
      %474 = vmatprep.mubr.bf16.mxu0 0
      %475 = vmatmul.mubr.bf16.gmra.mrb[0].mxu0 %v421
      %v476 = vpop.f32.mrb[0].mxu0
      %v477 = vadd.f32 %v406, %v476
      %v478 = vpop.f32.mrb[0].mxu0
      %v479 = vpop.f32.mrb[0].mxu0
      %v480 = vadd.f32 %v406, %v479
      %v481 = vpop.f32.mrb[0].mxu0
      %482 = vmatprep.mubr.bf16.mxu0 0
      %483 = vmatmul.mubr.bf16.gmra.mrb[0].mxu0 %v424
      %v484 = vpop.f32.mrb[0].mxu0
      %v485 = vadd.f32 %v406, %v484
      %v486 = vpop.f32.mrb[0].mxu0
      %v487 = vpop.f32.mrb[0].mxu0
      %v488 = vadd.f32 %v406, %v487
      %v489 = vpop.f32.mrb[0].mxu0
      %490 = vdwg.mxu0
      %v491 = vld [vmem:[%s8] sm:$0x1]
      %v492 = vld [vmem:[%s8 + $0x1] sm:$0x1]
      %v493 = vlaneseq
      %v494 = vshrl.u32 %v493, 7
      %v495 = vsub.s32 0, %v494
      %v496 = vrot.slane %v491, %v495
      %v497 = vmul.f32 %v388, %v496
      %v498 = vmul.f32 %v389, %v496
      %v499 = vmul.f32 %v390, %v496
      %v500 = vmul.f32 %v391, %v496
      %v501 = vmul.f32 %v392, %v496
      %v502 = vmul.f32 %v393, %v496
      %v503 = vmul.f32 %v394, %v496
      %v504 = vmul.f32 %v395, %v496
      %v505 = vlaneseq
      %v506 = vshrl.u32 %v505, 7
      %v507 = vsub.s32 0, %v506
      %v508 = vrot.slane %v492, %v507
      %v509 = vadd.f32 %v497, %v508
      %v510 = vadd.f32 %v498, %v508
      %v511 = vadd.f32 %v499, %v508
      %v512 = vadd.f32 %v500, %v508
      %v513 = vadd.f32 %v501, %v508
      %v514 = vadd.f32 %v502, %v508
      %v515 = vadd.f32 %v503, %v508
      %v516 = vadd.f32 %v504, %v508
      %v517 = vmax.f32 %v509, 0.0
      %v518 = vmax.f32 %v510, 0.0
      %v519 = vmax.f32 %v511, 0.0
      %v520 = vmax.f32 %v512, 0.0
      %v521 = vmax.f32 %v513, 0.0
      %v522 = vmax.f32 %v514, 0.0
      %v523 = vmax.f32 %v515, 0.0
      %v524 = vmax.f32 %v516, 0.0
      %v525 = vld [vmem:[%s7] sm:$0x1]
      %v526 = vlaneseq
      %v527 = vshrl.u32 %v526, 7
      %v528 = vsub.s32 0, %v527
      %v529 = vrot.slane %v525, %v528
      %v530 = vrot.slane %v517, 7
      %v531 = vrot.slane %v518, 7
      %v532 = vrot.slane %v519, 7
      %v533 = vrot.slane %v520, 7
      %v534 = vrot.slane %v521, 7
      %v535 = vrot.slane %v522, 7
      %v536 = vrot.slane %v523, 7
      %v537 = vrot.slane %v524, 7
      %v538 = vlaneseq
      %v539 = vshrl.u32 %v538, 7
      %vm540 = vcmp.lt.s32.totalorder %v539, 1
      %v541 = vsel %vm540, %v536, %v537
      %v542 = vsel %vm540, %v535, %v536
      %v543 = vsel %vm540, %v534, %v535
      %v544 = vsel %vm540, %v533, %v534
      %v545 = vsel %vm540, %v532, %v533
      %v546 = vsel %vm540, %v531, %v532
      %v547 = vsel %vm540, %v530, %v531
      %v548 = vsel %vm540, %v537, %v530
      %v549 = vld [vmem:[%s1] sm:$0xff]
      %v550 = vld [vmem:[%s1 + $0x8] sm:$0xff]
      %v551 = vld [vmem:[%s1 + $0x10] sm:$0xff]
      %v552 = vld [vmem:[%s1 + $0x18] sm:$0xff]
      %v553 = vld [vmem:[%s1 + $0x20] sm:$0xff]
      %v554 = vld [vmem:[%s1 + $0x28] sm:$0xff]
      %v555 = vld [vmem:[%s1 + $0x30] sm:$0xff]
      %v556 = vld [vmem:[%s1 + $0x38] sm:$0xff]
      %558 = vset.pattern.permute.xlu0 0
      %559 = vperm.xlu0 %558, %v549
      %v560 = vpop.permute.xlu0 %559
      %563 = vset.pattern.permute.xlu0 0
      %564 = vperm.xlu0 %563, %v550
      %v565 = vpop.permute.xlu0 %564
      %568 = vset.pattern.permute.xlu0 0
      %569 = vperm.xlu0 %568, %v551
      %v570 = vpop.permute.xlu0 %569
      %573 = vset.pattern.permute.xlu0 0
      %574 = vperm.xlu0 %573, %v552
      %v575 = vpop.permute.xlu0 %574
      %578 = vset.pattern.permute.xlu0 0
      %579 = vperm.xlu0 %578, %v553
      %v580 = vpop.permute.xlu0 %579
      %583 = vset.pattern.permute.xlu0 0
      %584 = vperm.xlu0 %583, %v554
      %v585 = vpop.permute.xlu0 %584
      %588 = vset.pattern.permute.xlu0 0
      %589 = vperm.xlu0 %588, %v555
      %v590 = vpop.permute.xlu0 %589
      %593 = vset.pattern.permute.xlu0 0
      %594 = vperm.xlu0 %593, %v556
      %v595 = vpop.permute.xlu0 %594
      %v597 = vmul.f32 %v541, %v560
      %v598 = vmul.f32 %v548, %v565
      %v599 = vmul.f32 %v547, %v570
      %v600 = vmul.f32 %v546, %v575
      %v601 = vmul.f32 %v545, %v580
      %v602 = vmul.f32 %v544, %v585
      %v603 = vmul.f32 %v543, %v590
      %v604 = vmul.f32 %v542, %v595
      %v605 = vpack.c.bf16 %v598, %v597
      %v606 = vpack.c.bf16 %v600, %v599
      %v607 = vpack.c.bf16 %v602, %v601
      %v608 = vpack.c.bf16 %v604, %v603
      %v609 = vld [vmem:[%s2] sm:$0xf]
      %v610 = vld [vmem:[%s2 + $0x4] sm:$0xf]
      %v613 = vunpack.c.l.b16 %v609
      %v614 = vunpack.c.l.b16 %v610
      %v615 = vpack.c.b16 %v614, %v613
      %v618 = vsel %vm413, %v605, 0
      %v621 = vsel %vm413, %v606, 0
      %v624 = vsel %vm413, %v607, 0
      %v627 = vsel %vm413, %v608, 0
      %629 = vmatprep.subr.bf16.mxu0 0
      %630 = vmatpush1.bf16.msra.mxu0 %v615
      %631 = vmatprep.subr.bf16.mxu0 0
      %632 = vmatpush1.bf16.msra.mxu0 0
      %633 = vmatprep.subr.bf16.mxu0 0
      %634 = vmatpush1.bf16.msra.mxu0 0
      %635 = vmatprep.subr.bf16.mxu0 0
      %636 = vmatpush1.bf16.msra.mxu0 0
      %637 = vmatprep.subr.bf16.mxu0 0
      %638 = vmatpush1.bf16.msra.mxu0 0
      %639 = vmatprep.subr.bf16.mxu0 0
      %640 = vmatpush1.bf16.msra.mxu0 0
      %641 = vmatprep.subr.bf16.mxu0 0
      %642 = vmatpush1.bf16.msra.mxu0 0
      %643 = vmatprep.subr.bf16.mxu0 0
      %644 = vmatpush1.bf16.msra.mxu0 0
      %645 = vmatprep.subr.bf16.mxu0 0
      %646 = vmatpush1.bf16.msra.mxu0 0
      %647 = vmatprep.subr.bf16.mxu0 0
      %648 = vmatpush1.bf16.msra.mxu0 0
      %649 = vmatprep.subr.bf16.mxu0 0
      %650 = vmatpush1.bf16.msra.mxu0 0
      %651 = vmatprep.subr.bf16.mxu0 0
      %652 = vmatpush1.bf16.msra.mxu0 0
      %653 = vmatprep.subr.bf16.mxu0 0
      %654 = vmatpush1.bf16.msra.mxu0 0
      %655 = vmatprep.subr.bf16.mxu0 0
      %656 = vmatpush1.bf16.msra.mxu0 0
      %657 = vmatprep.subr.bf16.mxu0 0
      %658 = vmatpush1.bf16.msra.mxu0 0
      %659 = vmatprep.subr.bf16.mxu0 0
      %660 = vmatpush1.bf16.msra.mxu0 0
      %661 = vmatprep.mubr.bf16.mxu0 0
      %662 = vmatmul.mubr.bf16.gmra.mrb[0].mxu0 %v618
      %v663 = vpop.f32.mrb[0].mxu0
      %v664 = vadd.f32 0.0, %v663
      %v665 = vpop.f32.mrb[0].mxu0
      %v666 = vpop.f32.mrb[0].mxu0
      %v667 = vadd.f32 0.0, %v666
      %v668 = vpop.f32.mrb[0].mxu0
      %669 = vmatprep.mubr.bf16.mxu0 0
      %670 = vmatmul.mubr.bf16.gmra.mrb[0].mxu0 %v621
      %v671 = vpop.f32.mrb[0].mxu0
      %v672 = vadd.f32 0.0, %v671
      %v673 = vpop.f32.mrb[0].mxu0
      %v674 = vpop.f32.mrb[0].mxu0
      %v675 = vadd.f32 0.0, %v674
      %v676 = vpop.f32.mrb[0].mxu0
      %677 = vmatprep.mubr.bf16.mxu0 0
      %678 = vmatmul.mubr.bf16.gmra.mrb[0].mxu0 %v624
      %v679 = vpop.f32.mrb[0].mxu0
      %v680 = vadd.f32 0.0, %v679
      %v681 = vpop.f32.mrb[0].mxu0
      %v682 = vpop.f32.mrb[0].mxu0
      %v683 = vadd.f32 0.0, %v682
      %v684 = vpop.f32.mrb[0].mxu0
      %685 = vmatprep.mubr.bf16.mxu0 0
      %686 = vmatmul.mubr.bf16.gmra.mrb[0].mxu0 %v627
      %v687 = vpop.f32.mrb[0].mxu0
      %v688 = vadd.f32 0.0, %v687
      %v689 = vpop.f32.mrb[0].mxu0
      %v690 = vpop.f32.mrb[0].mxu0
      %v691 = vadd.f32 0.0, %v690
      %v692 = vpop.f32.mrb[0].mxu0
      %693 = vdwg.mxu0
      %v694 = vadd.f32 %v529, %v664
      %v695 = vadd.f32 %v529, %v667
      %v696 = vadd.f32 %v529, %v672
      %v697 = vadd.f32 %v529, %v675
      %v698 = vadd.f32 %v529, %v680
      %v699 = vadd.f32 %v529, %v683
      %v700 = vadd.f32 %v529, %v688
      %v701 = vadd.f32 %v529, %v691
      %s702 = scalar_lea.vmem %s1, 64
      %v703 = vld [vmem:[%s702] sm:$0xff]
      %v704 = vld [vmem:[%s702 + $0x8] sm:$0xff]
      %v705 = vld [vmem:[%s702 + $0x10] sm:$0xff]
      %v706 = vld [vmem:[%s702 + $0x18] sm:$0xff]
      %v707 = vld [vmem:[%s702 + $0x20] sm:$0xff]
      %v708 = vld [vmem:[%s702 + $0x28] sm:$0xff]
      %v709 = vld [vmem:[%s702 + $0x30] sm:$0xff]
      %v710 = vld [vmem:[%s702 + $0x38] sm:$0xff]
      %712 = vset.pattern.permute.xlu0 0
      %713 = vperm.xlu0 %712, %v703
      %v714 = vpop.permute.xlu0 %713
      %717 = vset.pattern.permute.xlu0 0
      %718 = vperm.xlu0 %717, %v704
      %v719 = vpop.permute.xlu0 %718
      %722 = vset.pattern.permute.xlu0 0
      %723 = vperm.xlu0 %722, %v705
      %v724 = vpop.permute.xlu0 %723
      %727 = vset.pattern.permute.xlu0 0
      %728 = vperm.xlu0 %727, %v706
      %v729 = vpop.permute.xlu0 %728
      %732 = vset.pattern.permute.xlu0 0
      %733 = vperm.xlu0 %732, %v707
      %v734 = vpop.permute.xlu0 %733
      %737 = vset.pattern.permute.xlu0 0
      %738 = vperm.xlu0 %737, %v708
      %v739 = vpop.permute.xlu0 %738
      %742 = vset.pattern.permute.xlu0 0
      %743 = vperm.xlu0 %742, %v709
      %v744 = vpop.permute.xlu0 %743
      %747 = vset.pattern.permute.xlu0 0
      %748 = vperm.xlu0 %747, %v710
      %v749 = vpop.permute.xlu0 %748
      %v751 = vmul.f32 %v524, %v714
      %v752 = vmul.f32 %v517, %v719
      %v753 = vmul.f32 %v518, %v724
      %v754 = vmul.f32 %v519, %v729
      %v755 = vmul.f32 %v520, %v734
      %v756 = vmul.f32 %v521, %v739
      %v757 = vmul.f32 %v522, %v744
      %v758 = vmul.f32 %v523, %v749
      %v759 = vpack.c.bf16 %v752, %v751
      %v760 = vpack.c.bf16 %v754, %v753
      %v761 = vpack.c.bf16 %v756, %v755
      %v762 = vpack.c.bf16 %v758, %v757
      %s763 = scalar_lea.vmem %s2, 8
      %v764 = vld [vmem:[%s763] sm:$0xf]
      %v765 = vld [vmem:[%s763 + $0x4] sm:$0xf]
      %v768 = vunpack.c.l.b16 %v764
      %v769 = vunpack.c.l.b16 %v765
      %v770 = vpack.c.b16 %v769, %v768
      %v773 = vsel %vm413, %v759, 0
      %v776 = vsel %vm413, %v760, 0
      %v779 = vsel %vm413, %v761, 0
      %v782 = vsel %vm413, %v762, 0
      %784 = vmatprep.subr.bf16.mxu0 0
      %785 = vmatpush1.bf16.msra.mxu0 %v770
      %786 = vmatprep.subr.bf16.mxu0 0
      %787 = vmatpush1.bf16.msra.mxu0 0
      %788 = vmatprep.subr.bf16.mxu0 0
      %789 = vmatpush1.bf16.msra.mxu0 0
      %790 = vmatprep.subr.bf16.mxu0 0
      %791 = vmatpush1.bf16.msra.mxu0 0
      %792 = vmatprep.subr.bf16.mxu0 0
      %793 = vmatpush1.bf16.msra.mxu0 0
      %794 = vmatprep.subr.bf16.mxu0 0
      %795 = vmatpush1.bf16.msra.mxu0 0
      %796 = vmatprep.subr.bf16.mxu0 0
      %797 = vmatpush1.bf16.msra.mxu0 0
      %798 = vmatprep.subr.bf16.mxu0 0
      %799 = vmatpush1.bf16.msra.mxu0 0
      %800 = vmatprep.subr.bf16.mxu0 0
      %801 = vmatpush1.bf16.msra.mxu0 0
      %802 = vmatprep.subr.bf16.mxu0 0
      %803 = vmatpush1.bf16.msra.mxu0 0
      %804 = vmatprep.subr.bf16.mxu0 0
      %805 = vmatpush1.bf16.msra.mxu0 0
      %806 = vmatprep.subr.bf16.mxu0 0
      %807 = vmatpush1.bf16.msra.mxu0 0
      %808 = vmatprep.subr.bf16.mxu0 0
      %809 = vmatpush1.bf16.msra.mxu0 0
      %810 = vmatprep.subr.bf16.mxu0 0
      %811 = vmatpush1.bf16.msra.mxu0 0
      %812 = vmatprep.subr.bf16.mxu0 0
      %813 = vmatpush1.bf16.msra.mxu0 0
      %814 = vmatprep.subr.bf16.mxu0 0
      %815 = vmatpush1.bf16.msra.mxu0 0
      %816 = vmatprep.mubr.bf16.mxu0 0
      %817 = vmatmul.mubr.bf16.gmra.mrb[0].mxu0 %v773
      %v818 = vpop.f32.mrb[0].mxu0
      %v819 = vadd.f32 0.0, %v818
      %v820 = vpop.f32.mrb[0].mxu0
      %v821 = vpop.f32.mrb[0].mxu0
      %v822 = vadd.f32 0.0, %v821
      %v823 = vpop.f32.mrb[0].mxu0
      %824 = vmatprep.mubr.bf16.mxu0 0
      %825 = vmatmul.mubr.bf16.gmra.mrb[0].mxu0 %v776
      %v826 = vpop.f32.mrb[0].mxu0
      %v827 = vadd.f32 0.0, %v826
      %v828 = vpop.f32.mrb[0].mxu0
      %v829 = vpop.f32.mrb[0].mxu0
      %v830 = vadd.f32 0.0, %v829
      %v831 = vpop.f32.mrb[0].mxu0
      %832 = vmatprep.mubr.bf16.mxu0 0
      %833 = vmatmul.mubr.bf16.gmra.mrb[0].mxu0 %v779
      %v834 = vpop.f32.mrb[0].mxu0
      %v835 = vadd.f32 0.0, %v834
      %v836 = vpop.f32.mrb[0].mxu0
      %v837 = vpop.f32.mrb[0].mxu0
      %v838 = vadd.f32 0.0, %v837
      %v839 = vpop.f32.mrb[0].mxu0
      %840 = vmatprep.mubr.bf16.mxu0 0
      %841 = vmatmul.mubr.bf16.gmra.mrb[0].mxu0 %v782
      %v842 = vpop.f32.mrb[0].mxu0
      %v843 = vadd.f32 0.0, %v842
      %v844 = vpop.f32.mrb[0].mxu0
      %v845 = vpop.f32.mrb[0].mxu0
      %v846 = vadd.f32 0.0, %v845
      %v847 = vpop.f32.mrb[0].mxu0
      %848 = vdwg.mxu0
      %v849 = vadd.f32 %v694, %v819
      %v850 = vadd.f32 %v695, %v822
      %v851 = vadd.f32 %v696, %v827
      %v852 = vadd.f32 %v697, %v830
      %v853 = vadd.f32 %v698, %v835
      %v854 = vadd.f32 %v699, %v838
      %v855 = vadd.f32 %v700, %v843
      %v856 = vadd.f32 %v701, %v846
      %v857 = vrot.slane %v517, 1
      %v858 = vrot.slane %v518, 1
      %v859 = vrot.slane %v519, 1
      %v860 = vrot.slane %v520, 1
      %v861 = vrot.slane %v521, 1
      %v862 = vrot.slane %v522, 1
      %v863 = vrot.slane %v523, 1
      %v864 = vrot.slane %v524, 1
      %vm865 = vcmp.lt.s32.totalorder %v539, 7
      %v866 = vsel %vm865, %v863, %v864
      %v867 = vsel %vm865, %v862, %v863
      %v868 = vsel %vm865, %v861, %v862
      %v869 = vsel %vm865, %v860, %v861
      %v870 = vsel %vm865, %v859, %v860
      %v871 = vsel %vm865, %v858, %v859
      %v872 = vsel %vm865, %v857, %v858
      %v873 = vsel %vm865, %v864, %v857
      %s874 = scalar_lea.vmem %s1, 128
      %v875 = vld [vmem:[%s874] sm:$0xff]
      %v876 = vld [vmem:[%s874 + $0x8] sm:$0xff]
      %v877 = vld [vmem:[%s874 + $0x10] sm:$0xff]
      %v878 = vld [vmem:[%s874 + $0x18] sm:$0xff]
      %v879 = vld [vmem:[%s874 + $0x20] sm:$0xff]
      %v880 = vld [vmem:[%s874 + $0x28] sm:$0xff]
      %v881 = vld [vmem:[%s874 + $0x30] sm:$0xff]
      %v882 = vld [vmem:[%s874 + $0x38] sm:$0xff]
      %884 = vset.pattern.permute.xlu0 0
      %885 = vperm.xlu0 %884, %v875
      %v886 = vpop.permute.xlu0 %885
      %889 = vset.pattern.permute.xlu0 0
      %890 = vperm.xlu0 %889, %v876
      %v891 = vpop.permute.xlu0 %890
      %894 = vset.pattern.permute.xlu0 0
      %895 = vperm.xlu0 %894, %v877
      %v896 = vpop.permute.xlu0 %895
      %899 = vset.pattern.permute.xlu0 0
      %900 = vperm.xlu0 %899, %v878
      %v901 = vpop.permute.xlu0 %900
      %904 = vset.pattern.permute.xlu0 0
      %905 = vperm.xlu0 %904, %v879
      %v906 = vpop.permute.xlu0 %905
      %909 = vset.pattern.permute.xlu0 0
      %910 = vperm.xlu0 %909, %v880
      %v911 = vpop.permute.xlu0 %910
      %914 = vset.pattern.permute.xlu0 0
      %915 = vperm.xlu0 %914, %v881
      %v916 = vpop.permute.xlu0 %915
      %919 = vset.pattern.permute.xlu0 0
      %920 = vperm.xlu0 %919, %v882
      %v921 = vpop.permute.xlu0 %920
      %v923 = vmul.f32 %v873, %v886
      %v924 = vmul.f32 %v872, %v891
      %v925 = vmul.f32 %v871, %v896
      %v926 = vmul.f32 %v870, %v901
      %v927 = vmul.f32 %v869, %v906
      %v928 = vmul.f32 %v868, %v911
      %v929 = vmul.f32 %v867, %v916
      %v930 = vmul.f32 %v866, %v921
      %v931 = vpack.c.bf16 %v924, %v923
      %v932 = vpack.c.bf16 %v926, %v925
      %v933 = vpack.c.bf16 %v928, %v927
      %v934 = vpack.c.bf16 %v930, %v929
      %s935 = scalar_lea.vmem %s2, 16
      %v936 = vld [vmem:[%s935] sm:$0xf]
      %v937 = vld [vmem:[%s935 + $0x4] sm:$0xf]
      %v940 = vunpack.c.l.b16 %v936
      %v941 = vunpack.c.l.b16 %v937
      %v942 = vpack.c.b16 %v941, %v940
      %v945 = vsel %vm413, %v931, 0
      %v948 = vsel %vm413, %v932, 0
      %v951 = vsel %vm413, %v933, 0
      %v954 = vsel %vm413, %v934, 0
      %956 = vmatprep.subr.bf16.mxu0 0
      %957 = vmatpush1.bf16.msra.mxu0 %v942
      %958 = vmatprep.subr.bf16.mxu0 0
      %959 = vmatpush1.bf16.msra.mxu0 0
      %960 = vmatprep.subr.bf16.mxu0 0
      %961 = vmatpush1.bf16.msra.mxu0 0
      %962 = vmatprep.subr.bf16.mxu0 0
      %963 = vmatpush1.bf16.msra.mxu0 0
      %964 = vmatprep.subr.bf16.mxu0 0
      %965 = vmatpush1.bf16.msra.mxu0 0
      %966 = vmatprep.subr.bf16.mxu0 0
      %967 = vmatpush1.bf16.msra.mxu0 0
      %968 = vmatprep.subr.bf16.mxu0 0
      %969 = vmatpush1.bf16.msra.mxu0 0
      %970 = vmatprep.subr.bf16.mxu0 0
      %971 = vmatpush1.bf16.msra.mxu0 0
      %972 = vmatprep.subr.bf16.mxu0 0
      %973 = vmatpush1.bf16.msra.mxu0 0
      %974 = vmatprep.subr.bf16.mxu0 0
      %975 = vmatpush1.bf16.msra.mxu0 0
      %976 = vmatprep.subr.bf16.mxu0 0
      %977 = vmatpush1.bf16.msra.mxu0 0
      %978 = vmatprep.subr.bf16.mxu0 0
      %979 = vmatpush1.bf16.msra.mxu0 0
      %980 = vmatprep.subr.bf16.mxu0 0
      %981 = vmatpush1.bf16.msra.mxu0 0
      %982 = vmatprep.subr.bf16.mxu0 0
      %983 = vmatpush1.bf16.msra.mxu0 0
      %984 = vmatprep.subr.bf16.mxu0 0
      %985 = vmatpush1.bf16.msra.mxu0 0
      %986 = vmatprep.subr.bf16.mxu0 0
      %987 = vmatpush1.bf16.msra.mxu0 0
      %988 = vmatprep.mubr.bf16.mxu0 0
      %989 = vmatmul.mubr.bf16.gmra.mrb[0].mxu0 %v945
      %v990 = vpop.f32.mrb[0].mxu0
      %v991 = vadd.f32 0.0, %v990
      %v992 = vpop.f32.mrb[0].mxu0
      %v993 = vpop.f32.mrb[0].mxu0
      %v994 = vadd.f32 0.0, %v993
      %v995 = vpop.f32.mrb[0].mxu0
      %996 = vmatprep.mubr.bf16.mxu0 0
      %997 = vmatmul.mubr.bf16.gmra.mrb[0].mxu0 %v948
      %v998 = vpop.f32.mrb[0].mxu0
      %v999 = vadd.f32 0.0, %v998
      %v1000 = vpop.f32.mrb[0].mxu0
      %v1001 = vpop.f32.mrb[0].mxu0
      %v1002 = vadd.f32 0.0, %v1001
      %v1003 = vpop.f32.mrb[0].mxu0
      %1004 = vmatprep.mubr.bf16.mxu0 0
      %1005 = vmatmul.mubr.bf16.gmra.mrb[0].mxu0 %v951
      %v1006 = vpop.f32.mrb[0].mxu0
      %v1007 = vadd.f32 0.0, %v1006
      %v1008 = vpop.f32.mrb[0].mxu0
      %v1009 = vpop.f32.mrb[0].mxu0
      %v1010 = vadd.f32 0.0, %v1009
      %v1011 = vpop.f32.mrb[0].mxu0
      %1012 = vmatprep.mubr.bf16.mxu0 0
      %1013 = vmatmul.mubr.bf16.gmra.mrb[0].mxu0 %v954
      %v1014 = vpop.f32.mrb[0].mxu0
      %v1015 = vadd.f32 0.0, %v1014
      %v1016 = vpop.f32.mrb[0].mxu0
      %v1017 = vpop.f32.mrb[0].mxu0
      %v1018 = vadd.f32 0.0, %v1017
      %v1019 = vpop.f32.mrb[0].mxu0
      %1020 = vdwg.mxu0
      %v1021 = vadd.f32 %v849, %v991
      %v1022 = vadd.f32 %v850, %v994
      %v1023 = vadd.f32 %v851, %v999
      %v1024 = vadd.f32 %v852, %v1002
      %v1025 = vadd.f32 %v853, %v1007
      %v1026 = vadd.f32 %v854, %v1010
      %v1027 = vadd.f32 %v855, %v1015
      %v1028 = vadd.f32 %v856, %v1018
      %s1029 = scalar_lea.vmem %s1, 192
      %v1030 = vld [vmem:[%s1029] sm:$0xff]
      %v1031 = vld [vmem:[%s1029 + $0x8] sm:$0xff]
      %v1032 = vld [vmem:[%s1029 + $0x10] sm:$0xff]
      %v1033 = vld [vmem:[%s1029 + $0x18] sm:$0xff]
      %v1034 = vld [vmem:[%s1029 + $0x20] sm:$0xff]
      %v1035 = vld [vmem:[%s1029 + $0x28] sm:$0xff]
      %v1036 = vld [vmem:[%s1029 + $0x30] sm:$0xff]
      %v1037 = vld [vmem:[%s1029 + $0x38] sm:$0xff]
      %1039 = vset.pattern.permute.xlu0 0
      %1040 = vperm.xlu0 %1039, %v1030
      %v1041 = vpop.permute.xlu0 %1040
      %1044 = vset.pattern.permute.xlu0 0
      %1045 = vperm.xlu0 %1044, %v1031
      %v1046 = vpop.permute.xlu0 %1045
      %1049 = vset.pattern.permute.xlu0 0
      %1050 = vperm.xlu0 %1049, %v1032
      %v1051 = vpop.permute.xlu0 %1050
      %1054 = vset.pattern.permute.xlu0 0
      %1055 = vperm.xlu0 %1054, %v1033
      %v1056 = vpop.permute.xlu0 %1055
      %1059 = vset.pattern.permute.xlu0 0
      %1060 = vperm.xlu0 %1059, %v1034
      %v1061 = vpop.permute.xlu0 %1060
      %1064 = vset.pattern.permute.xlu0 0
      %1065 = vperm.xlu0 %1064, %v1035
      %v1066 = vpop.permute.xlu0 %1065
      %1069 = vset.pattern.permute.xlu0 0
      %1070 = vperm.xlu0 %1069, %v1036
      %v1071 = vpop.permute.xlu0 %1070
      %1074 = vset.pattern.permute.xlu0 0
      %1075 = vperm.xlu0 %1074, %v1037
      %v1076 = vpop.permute.xlu0 %1075
      %v1078 = vmul.f32 %v548, %v1041
      %v1079 = vmul.f32 %v547, %v1046
      %v1080 = vmul.f32 %v546, %v1051
      %v1081 = vmul.f32 %v545, %v1056
      %v1082 = vmul.f32 %v544, %v1061
      %v1083 = vmul.f32 %v543, %v1066
      %v1084 = vmul.f32 %v542, %v1071
      %v1085 = vmul.f32 %v541, %v1076
      %v1086 = vpack.c.bf16 %v1079, %v1078
      %v1087 = vpack.c.bf16 %v1081, %v1080
      %v1088 = vpack.c.bf16 %v1083, %v1082
      %v1089 = vpack.c.bf16 %v1085, %v1084
      %s1090 = scalar_lea.vmem %s2, 24
      %v1091 = vld [vmem:[%s1090] sm:$0xf]
      %v1092 = vld [vmem:[%s1090 + $0x4] sm:$0xf]
      %v1095 = vunpack.c.l.b16 %v1091
      %v1096 = vunpack.c.l.b16 %v1092
      %v1097 = vpack.c.b16 %v1096, %v1095
      %v1100 = vsel %vm413, %v1086, 0
      %v1103 = vsel %vm413, %v1087, 0
      %v1106 = vsel %vm413, %v1088, 0
      %v1109 = vsel %vm413, %v1089, 0
      %1111 = vmatprep.subr.bf16.mxu0 0
      %1112 = vmatpush1.bf16.msra.mxu0 %v1097
      %1113 = vmatprep.subr.bf16.mxu0 0
      %1114 = vmatpush1.bf16.msra.mxu0 0
      %1115 = vmatprep.subr.bf16.mxu0 0
      %1116 = vmatpush1.bf16.msra.mxu0 0
      %1117 = vmatprep.subr.bf16.mxu0 0
      %1118 = vmatpush1.bf16.msra.mxu0 0
      %1119 = vmatprep.subr.bf16.mxu0 0
      %1120 = vmatpush1.bf16.msra.mxu0 0
      %1121 = vmatprep.subr.bf16.mxu0 0
      %1122 = vmatpush1.bf16.msra.mxu0 0
      %1123 = vmatprep.subr.bf16.mxu0 0
      %1124 = vmatpush1.bf16.msra.mxu0 0
      %1125 = vmatprep.subr.bf16.mxu0 0
      %1126 = vmatpush1.bf16.msra.mxu0 0
      %1127 = vmatprep.subr.bf16.mxu0 0
      %1128 = vmatpush1.bf16.msra.mxu0 0
      %1129 = vmatprep.subr.bf16.mxu0 0
      %1130 = vmatpush1.bf16.msra.mxu0 0
      %1131 = vmatprep.subr.bf16.mxu0 0
      %1132 = vmatpush1.bf16.msra.mxu0 0
      %1133 = vmatprep.subr.bf16.mxu0 0
      %1134 = vmatpush1.bf16.msra.mxu0 0
      %1135 = vmatprep.subr.bf16.mxu0 0
      %1136 = vmatpush1.bf16.msra.mxu0 0
      %1137 = vmatprep.subr.bf16.mxu0 0
      %1138 = vmatpush1.bf16.msra.mxu0 0
      %1139 = vmatprep.subr.bf16.mxu0 0
      %1140 = vmatpush1.bf16.msra.mxu0 0
      %1141 = vmatprep.subr.bf16.mxu0 0
      %1142 = vmatpush1.bf16.msra.mxu0 0
      %1143 = vmatprep.mubr.bf16.mxu0 0
      %1144 = vmatmul.mubr.bf16.gmra.mrb[0].mxu0 %v1100
      %v1145 = vpop.f32.mrb[0].mxu0
      %v1146 = vadd.f32 0.0, %v1145
      %v1147 = vpop.f32.mrb[0].mxu0
      %v1148 = vpop.f32.mrb[0].mxu0
      %v1149 = vadd.f32 0.0, %v1148
      %v1150 = vpop.f32.mrb[0].mxu0
      %1151 = vmatprep.mubr.bf16.mxu0 0
      %1152 = vmatmul.mubr.bf16.gmra.mrb[0].mxu0 %v1103
      %v1153 = vpop.f32.mrb[0].mxu0
      %v1154 = vadd.f32 0.0, %v1153
      %v1155 = vpop.f32.mrb[0].mxu0
      %v1156 = vpop.f32.mrb[0].mxu0
      %v1157 = vadd.f32 0.0, %v1156
      %v1158 = vpop.f32.mrb[0].mxu0
      %1159 = vmatprep.mubr.bf16.mxu0 0
      %1160 = vmatmul.mubr.bf16.gmra.mrb[0].mxu0 %v1106
      %v1161 = vpop.f32.mrb[0].mxu0
      %v1162 = vadd.f32 0.0, %v1161
      %v1163 = vpop.f32.mrb[0].mxu0
      %v1164 = vpop.f32.mrb[0].mxu0
      %v1165 = vadd.f32 0.0, %v1164
      %v1166 = vpop.f32.mrb[0].mxu0
      %1167 = vmatprep.mubr.bf16.mxu0 0
      %1168 = vmatmul.mubr.bf16.gmra.mrb[0].mxu0 %v1109
      %v1169 = vpop.f32.mrb[0].mxu0
      %v1170 = vadd.f32 0.0, %v1169
      %v1171 = vpop.f32.mrb[0].mxu0
      %v1172 = vpop.f32.mrb[0].mxu0
      %v1173 = vadd.f32 0.0, %v1172
      %v1174 = vpop.f32.mrb[0].mxu0
      %1175 = vdwg.mxu0
      %v1176 = vadd.f32 %v1021, %v1146
      %v1177 = vadd.f32 %v1022, %v1149
      %v1178 = vadd.f32 %v1023, %v1154
      %v1179 = vadd.f32 %v1024, %v1157
      %v1180 = vadd.f32 %v1025, %v1162
      %v1181 = vadd.f32 %v1026, %v1165
      %v1182 = vadd.f32 %v1027, %v1170
      %v1183 = vadd.f32 %v1028, %v1173
      %v1184 = vpack.c.bf16 %v518, %v517
      %v1185 = vpack.c.bf16 %v520, %v519
      %v1186 = vpack.c.bf16 %v522, %v521
      %v1187 = vpack.c.bf16 %v524, %v523
      %s1188 = scalar_lea.vmem %s2, 32
      %v1189 = vld [vmem:[%s1188] sm:$0xf]
      %v1190 = vld [vmem:[%s1188 + $0x4] sm:$0xf]
      %v1193 = vunpack.c.l.b16 %v1189
      %v1194 = vunpack.c.l.b16 %v1190
      %v1195 = vpack.c.b16 %v1194, %v1193
      %v1198 = vsel %vm413, %v1184, 0
      %v1201 = vsel %vm413, %v1185, 0
      %v1204 = vsel %vm413, %v1186, 0
      %v1207 = vsel %vm413, %v1187, 0
      %1209 = vmatprep.subr.bf16.mxu0 0
      %1210 = vmatpush1.bf16.msra.mxu0 %v1195
      %1211 = vmatprep.subr.bf16.mxu0 0
      %1212 = vmatpush1.bf16.msra.mxu0 0
      %1213 = vmatprep.subr.bf16.mxu0 0
      %1214 = vmatpush1.bf16.msra.mxu0 0
      %1215 = vmatprep.subr.bf16.mxu0 0
      %1216 = vmatpush1.bf16.msra.mxu0 0
      %1217 = vmatprep.subr.bf16.mxu0 0
      %1218 = vmatpush1.bf16.msra.mxu0 0
      %1219 = vmatprep.subr.bf16.mxu0 0
      %1220 = vmatpush1.bf16.msra.mxu0 0
      %1221 = vmatprep.subr.bf16.mxu0 0
      %1222 = vmatpush1.bf16.msra.mxu0 0
      %1223 = vmatprep.subr.bf16.mxu0 0
      %1224 = vmatpush1.bf16.msra.mxu0 0
      %1225 = vmatprep.subr.bf16.mxu0 0
      %1226 = vmatpush1.bf16.msra.mxu0 0
      %1227 = vmatprep.subr.bf16.mxu0 0
      %1228 = vmatpush1.bf16.msra.mxu0 0
      %1229 = vmatprep.subr.bf16.mxu0 0
      %1230 = vmatpush1.bf16.msra.mxu0 0
      %1231 = vmatprep.subr.bf16.mxu0 0
      %1232 = vmatpush1.bf16.msra.mxu0 0
      %1233 = vmatprep.subr.bf16.mxu0 0
      %1234 = vmatpush1.bf16.msra.mxu0 0
      %1235 = vmatprep.subr.bf16.mxu0 0
      %1236 = vmatpush1.bf16.msra.mxu0 0
      %1237 = vmatprep.subr.bf16.mxu0 0
      %1238 = vmatpush1.bf16.msra.mxu0 0
      %1239 = vmatprep.subr.bf16.mxu0 0
      %1240 = vmatpush1.bf16.msra.mxu0 0
      %1241 = vmatprep.mubr.bf16.mxu0 0
      %1242 = vmatmul.mubr.bf16.gmra.mrb[0].mxu0 %v1198
      %v1243 = vpop.f32.mrb[0].mxu0
      %v1244 = vadd.f32 0.0, %v1243
      %v1245 = vpop.f32.mrb[0].mxu0
      %v1246 = vpop.f32.mrb[0].mxu0
      %v1247 = vadd.f32 0.0, %v1246
      %v1248 = vpop.f32.mrb[0].mxu0
      %1249 = vmatprep.mubr.bf16.mxu0 0
      %1250 = vmatmul.mubr.bf16.gmra.mrb[0].mxu0 %v1201
      %v1251 = vpop.f32.mrb[0].mxu0
      %v1252 = vadd.f32 0.0, %v1251
      %v1253 = vpop.f32.mrb[0].mxu0
      %v1254 = vpop.f32.mrb[0].mxu0
      %v1255 = vadd.f32 0.0, %v1254
      %v1256 = vpop.f32.mrb[0].mxu0
      %1257 = vmatprep.mubr.bf16.mxu0 0
      %1258 = vmatmul.mubr.bf16.gmra.mrb[0].mxu0 %v1204
      %v1259 = vpop.f32.mrb[0].mxu0
      %v1260 = vadd.f32 0.0, %v1259
      %v1261 = vpop.f32.mrb[0].mxu0
      %v1262 = vpop.f32.mrb[0].mxu0
      %v1263 = vadd.f32 0.0, %v1262
      %v1264 = vpop.f32.mrb[0].mxu0
      %1265 = vmatprep.mubr.bf16.mxu0 0
      %1266 = vmatmul.mubr.bf16.gmra.mrb[0].mxu0 %v1207
      %v1267 = vpop.f32.mrb[0].mxu0
      %v1268 = vadd.f32 0.0, %v1267
      %v1269 = vpop.f32.mrb[0].mxu0
      %v1270 = vpop.f32.mrb[0].mxu0
      %v1271 = vadd.f32 0.0, %v1270
      %v1272 = vpop.f32.mrb[0].mxu0
      %1273 = vdwg.mxu0
      %v1274 = vadd.f32 %v1176, %v1244
      %v1275 = vadd.f32 %v1177, %v1247
      %v1276 = vadd.f32 %v1178, %v1252
      %v1277 = vadd.f32 %v1179, %v1255
      %v1278 = vadd.f32 %v1180, %v1260
      %v1279 = vadd.f32 %v1181, %v1263
      %v1280 = vadd.f32 %v1182, %v1268
      %v1281 = vadd.f32 %v1183, %v1271
      %s1282 = scalar_lea.vmem %s1, 320
      %v1283 = vld [vmem:[%s1282] sm:$0xff]
      %v1284 = vld [vmem:[%s1282 + $0x8] sm:$0xff]
      %v1285 = vld [vmem:[%s1282 + $0x10] sm:$0xff]
      %v1286 = vld [vmem:[%s1282 + $0x18] sm:$0xff]
      %v1287 = vld [vmem:[%s1282 + $0x20] sm:$0xff]
      %v1288 = vld [vmem:[%s1282 + $0x28] sm:$0xff]
      %v1289 = vld [vmem:[%s1282 + $0x30] sm:$0xff]
      %v1290 = vld [vmem:[%s1282 + $0x38] sm:$0xff]
      %1292 = vset.pattern.permute.xlu0 0
      %1293 = vperm.xlu0 %1292, %v1283
      %v1294 = vpop.permute.xlu0 %1293
      %1297 = vset.pattern.permute.xlu0 0
      %1298 = vperm.xlu0 %1297, %v1284
      %v1299 = vpop.permute.xlu0 %1298
      %1302 = vset.pattern.permute.xlu0 0
      %1303 = vperm.xlu0 %1302, %v1285
      %v1304 = vpop.permute.xlu0 %1303
      %1307 = vset.pattern.permute.xlu0 0
      %1308 = vperm.xlu0 %1307, %v1286
      %v1309 = vpop.permute.xlu0 %1308
      %1312 = vset.pattern.permute.xlu0 0
      %1313 = vperm.xlu0 %1312, %v1287
      %v1314 = vpop.permute.xlu0 %1313
      %1317 = vset.pattern.permute.xlu0 0
      %1318 = vperm.xlu0 %1317, %v1288
      %v1319 = vpop.permute.xlu0 %1318
      %1322 = vset.pattern.permute.xlu0 0
      %1323 = vperm.xlu0 %1322, %v1289
      %v1324 = vpop.permute.xlu0 %1323
      %1327 = vset.pattern.permute.xlu0 0
      %1328 = vperm.xlu0 %1327, %v1290
      %v1329 = vpop.permute.xlu0 %1328
      %v1331 = vmul.f32 %v872, %v1294
      %v1332 = vmul.f32 %v871, %v1299
      %v1333 = vmul.f32 %v870, %v1304
      %v1334 = vmul.f32 %v869, %v1309
      %v1335 = vmul.f32 %v868, %v1314
      %v1336 = vmul.f32 %v867, %v1319
      %v1337 = vmul.f32 %v866, %v1324
      %v1338 = vmul.f32 %v873, %v1329
      %v1339 = vpack.c.bf16 %v1332, %v1331
      %v1340 = vpack.c.bf16 %v1334, %v1333
      %v1341 = vpack.c.bf16 %v1336, %v1335
      %v1342 = vpack.c.bf16 %v1338, %v1337
      %s1343 = scalar_lea.vmem %s2, 40
      %v1344 = vld [vmem:[%s1343] sm:$0xf]
      %v1345 = vld [vmem:[%s1343 + $0x4] sm:$0xf]
      %v1348 = vunpack.c.l.b16 %v1344
      %v1349 = vunpack.c.l.b16 %v1345
      %v1350 = vpack.c.b16 %v1349, %v1348
      %v1353 = vsel %vm413, %v1339, 0
      %v1356 = vsel %vm413, %v1340, 0
      %v1359 = vsel %vm413, %v1341, 0
      %v1362 = vsel %vm413, %v1342, 0
      %1364 = vmatprep.subr.bf16.mxu0 0
      %1365 = vmatpush1.bf16.msra.mxu0 %v1350
      %1366 = vmatprep.subr.bf16.mxu0 0
      %1367 = vmatpush1.bf16.msra.mxu0 0
      %1368 = vmatprep.subr.bf16.mxu0 0
      %1369 = vmatpush1.bf16.msra.mxu0 0
      %1370 = vmatprep.subr.bf16.mxu0 0
      %1371 = vmatpush1.bf16.msra.mxu0 0
      %1372 = vmatprep.subr.bf16.mxu0 0
      %1373 = vmatpush1.bf16.msra.mxu0 0
      %1374 = vmatprep.subr.bf16.mxu0 0
      %1375 = vmatpush1.bf16.msra.mxu0 0
      %1376 = vmatprep.subr.bf16.mxu0 0
      %1377 = vmatpush1.bf16.msra.mxu0 0
      %1378 = vmatprep.subr.bf16.mxu0 0
      %1379 = vmatpush1.bf16.msra.mxu0 0
      %1380 = vmatprep.subr.bf16.mxu0 0
      %1381 = vmatpush1.bf16.msra.mxu0 0
      %1382 = vmatprep.subr.bf16.mxu0 0
      %1383 = vmatpush1.bf16.msra.mxu0 0
      %1384 = vmatprep.subr.bf16.mxu0 0
      %1385 = vmatpush1.bf16.msra.mxu0 0
      %1386 = vmatprep.subr.bf16.mxu0 0
      %1387 = vmatpush1.bf16.msra.mxu0 0
      %1388 = vmatprep.subr.bf16.mxu0 0
      %1389 = vmatpush1.bf16.msra.mxu0 0
      %1390 = vmatprep.subr.bf16.mxu0 0
      %1391 = vmatpush1.bf16.msra.mxu0 0
      %1392 = vmatprep.subr.bf16.mxu0 0
      %1393 = vmatpush1.bf16.msra.mxu0 0
      %1394 = vmatprep.subr.bf16.mxu0 0
      %1395 = vmatpush1.bf16.msra.mxu0 0
      %1396 = vmatprep.mubr.bf16.mxu0 0
      %1397 = vmatmul.mubr.bf16.gmra.mrb[0].mxu0 %v1353
      %v1398 = vpop.f32.mrb[0].mxu0
      %v1399 = vadd.f32 0.0, %v1398
      %v1400 = vpop.f32.mrb[0].mxu0
      %v1401 = vpop.f32.mrb[0].mxu0
      %v1402 = vadd.f32 0.0, %v1401
      %v1403 = vpop.f32.mrb[0].mxu0
      %1404 = vmatprep.mubr.bf16.mxu0 0
      %1405 = vmatmul.mubr.bf16.gmra.mrb[0].mxu0 %v1356
      %v1406 = vpop.f32.mrb[0].mxu0
      %v1407 = vadd.f32 0.0, %v1406
      %v1408 = vpop.f32.mrb[0].mxu0
      %v1409 = vpop.f32.mrb[0].mxu0
      %v1410 = vadd.f32 0.0, %v1409
      %v1411 = vpop.f32.mrb[0].mxu0
      %1412 = vmatprep.mubr.bf16.mxu0 0
      %1413 = vmatmul.mubr.bf16.gmra.mrb[0].mxu0 %v1359
      %v1414 = vpop.f32.mrb[0].mxu0
      %v1415 = vadd.f32 0.0, %v1414
      %v1416 = vpop.f32.mrb[0].mxu0
      %v1417 = vpop.f32.mrb[0].mxu0
      %v1418 = vadd.f32 0.0, %v1417
      %v1419 = vpop.f32.mrb[0].mxu0
      %1420 = vmatprep.mubr.bf16.mxu0 0
      %1421 = vmatmul.mubr.bf16.gmra.mrb[0].mxu0 %v1362
      %v1422 = vpop.f32.mrb[0].mxu0
      %v1423 = vadd.f32 0.0, %v1422
      %v1424 = vpop.f32.mrb[0].mxu0
      %v1425 = vpop.f32.mrb[0].mxu0
      %v1426 = vadd.f32 0.0, %v1425
      %v1427 = vpop.f32.mrb[0].mxu0
      %1428 = vdwg.mxu0
      %v1429 = vadd.f32 %v1274, %v1399
      %v1430 = vadd.f32 %v1275, %v1402
      %v1431 = vadd.f32 %v1276, %v1407
      %v1432 = vadd.f32 %v1277, %v1410
      %v1433 = vadd.f32 %v1278, %v1415
      %v1434 = vadd.f32 %v1279, %v1418
      %v1435 = vadd.f32 %v1280, %v1423
      %v1436 = vadd.f32 %v1281, %v1426
      %s1437 = scalar_lea.vmem %s1, 384
      %v1438 = vld [vmem:[%s1437] sm:$0xff]
      %v1439 = vld [vmem:[%s1437 + $0x8] sm:$0xff]
      %v1440 = vld [vmem:[%s1437 + $0x10] sm:$0xff]
      %v1441 = vld [vmem:[%s1437 + $0x18] sm:$0xff]
      %v1442 = vld [vmem:[%s1437 + $0x20] sm:$0xff]
      %v1443 = vld [vmem:[%s1437 + $0x28] sm:$0xff]
      %v1444 = vld [vmem:[%s1437 + $0x30] sm:$0xff]
      %v1445 = vld [vmem:[%s1437 + $0x38] sm:$0xff]
      %1447 = vset.pattern.permute.xlu0 0
      %1448 = vperm.xlu0 %1447, %v1438
      %v1449 = vpop.permute.xlu0 %1448
      %1452 = vset.pattern.permute.xlu0 0
      %1453 = vperm.xlu0 %1452, %v1439
      %v1454 = vpop.permute.xlu0 %1453
      %1457 = vset.pattern.permute.xlu0 0
      %1458 = vperm.xlu0 %1457, %v1440
      %v1459 = vpop.permute.xlu0 %1458
      %1462 = vset.pattern.permute.xlu0 0
      %1463 = vperm.xlu0 %1462, %v1441
      %v1464 = vpop.permute.xlu0 %1463
      %1467 = vset.pattern.permute.xlu0 0
      %1468 = vperm.xlu0 %1467, %v1442
      %v1469 = vpop.permute.xlu0 %1468
      %1472 = vset.pattern.permute.xlu0 0
      %1473 = vperm.xlu0 %1472, %v1443
      %v1474 = vpop.permute.xlu0 %1473
      %1477 = vset.pattern.permute.xlu0 0
      %1478 = vperm.xlu0 %1477, %v1444
      %v1479 = vpop.permute.xlu0 %1478
      %1482 = vset.pattern.permute.xlu0 0
      %1483 = vperm.xlu0 %1482, %v1445
      %v1484 = vpop.permute.xlu0 %1483
      %v1486 = vmul.f32 %v547, %v1449
      %v1487 = vmul.f32 %v546, %v1454
      %v1488 = vmul.f32 %v545, %v1459
      %v1489 = vmul.f32 %v544, %v1464
      %v1490 = vmul.f32 %v543, %v1469
      %v1491 = vmul.f32 %v542, %v1474
      %v1492 = vmul.f32 %v541, %v1479
      %v1493 = vmul.f32 %v548, %v1484
      %v1494 = vpack.c.bf16 %v1487, %v1486
      %v1495 = vpack.c.bf16 %v1489, %v1488
      %v1496 = vpack.c.bf16 %v1491, %v1490
      %v1497 = vpack.c.bf16 %v1493, %v1492
      %s1498 = scalar_lea.vmem %s2, 48
      %v1499 = vld [vmem:[%s1498] sm:$0xf]
      %v1500 = vld [vmem:[%s1498 + $0x4] sm:$0xf]
      %v1503 = vunpack.c.l.b16 %v1499
      %v1504 = vunpack.c.l.b16 %v1500
      %v1505 = vpack.c.b16 %v1504, %v1503
      %v1508 = vsel %vm413, %v1494, 0
      %v1511 = vsel %vm413, %v1495, 0
      %v1514 = vsel %vm413, %v1496, 0
      %v1517 = vsel %vm413, %v1497, 0
      %1519 = vmatprep.subr.bf16.mxu0 0
      %1520 = vmatpush1.bf16.msra.mxu0 %v1505
      %1521 = vmatprep.subr.bf16.mxu0 0
      %1522 = vmatpush1.bf16.msra.mxu0 0
      %1523 = vmatprep.subr.bf16.mxu0 0
      %1524 = vmatpush1.bf16.msra.mxu0 0
      %1525 = vmatprep.subr.bf16.mxu0 0
      %1526 = vmatpush1.bf16.msra.mxu0 0
      %1527 = vmatprep.subr.bf16.mxu0 0
      %1528 = vmatpush1.bf16.msra.mxu0 0
      %1529 = vmatprep.subr.bf16.mxu0 0
      %1530 = vmatpush1.bf16.msra.mxu0 0
      %1531 = vmatprep.subr.bf16.mxu0 0
      %1532 = vmatpush1.bf16.msra.mxu0 0
      %1533 = vmatprep.subr.bf16.mxu0 0
      %1534 = vmatpush1.bf16.msra.mxu0 0
      %1535 = vmatprep.subr.bf16.mxu0 0
      %1536 = vmatpush1.bf16.msra.mxu0 0
      %1537 = vmatprep.subr.bf16.mxu0 0
      %1538 = vmatpush1.bf16.msra.mxu0 0
      %1539 = vmatprep.subr.bf16.mxu0 0
      %1540 = vmatpush1.bf16.msra.mxu0 0
      %1541 = vmatprep.subr.bf16.mxu0 0
      %1542 = vmatpush1.bf16.msra.mxu0 0
      %1543 = vmatprep.subr.bf16.mxu0 0
      %1544 = vmatpush1.bf16.msra.mxu0 0
      %1545 = vmatprep.subr.bf16.mxu0 0
      %1546 = vmatpush1.bf16.msra.mxu0 0
      %1547 = vmatprep.subr.bf16.mxu0 0
      %1548 = vmatpush1.bf16.msra.mxu0 0
      %1549 = vmatprep.subr.bf16.mxu0 0
      %1550 = vmatpush1.bf16.msra.mxu0 0
      %1551 = vmatprep.mubr.bf16.mxu0 0
      %1552 = vmatmul.mubr.bf16.gmra.mrb[0].mxu0 %v1508
      %v1553 = vpop.f32.mrb[0].mxu0
      %v1554 = vadd.f32 0.0, %v1553
      %v1555 = vpop.f32.mrb[0].mxu0
      %v1556 = vpop.f32.mrb[0].mxu0
      %v1557 = vadd.f32 0.0, %v1556
      %v1558 = vpop.f32.mrb[0].mxu0
      %1559 = vmatprep.mubr.bf16.mxu0 0
      %1560 = vmatmul.mubr.bf16.gmra.mrb[0].mxu0 %v1511
      %v1561 = vpop.f32.mrb[0].mxu0
      %v1562 = vadd.f32 0.0, %v1561
      %v1563 = vpop.f32.mrb[0].mxu0
      %v1564 = vpop.f32.mrb[0].mxu0
      %v1565 = vadd.f32 0.0, %v1564
      %v1566 = vpop.f32.mrb[0].mxu0
      %1567 = vmatprep.mubr.bf16.mxu0 0
      %1568 = vmatmul.mubr.bf16.gmra.mrb[0].mxu0 %v1514
      %v1569 = vpop.f32.mrb[0].mxu0
      %v1570 = vadd.f32 0.0, %v1569
      %v1571 = vpop.f32.mrb[0].mxu0
      %v1572 = vpop.f32.mrb[0].mxu0
      %v1573 = vadd.f32 0.0, %v1572
      %v1574 = vpop.f32.mrb[0].mxu0
      %1575 = vmatprep.mubr.bf16.mxu0 0
      %1576 = vmatmul.mubr.bf16.gmra.mrb[0].mxu0 %v1517
      %v1577 = vpop.f32.mrb[0].mxu0
      %v1578 = vadd.f32 0.0, %v1577
      %v1579 = vpop.f32.mrb[0].mxu0
      %v1580 = vpop.f32.mrb[0].mxu0
      %v1581 = vadd.f32 0.0, %v1580
      %v1582 = vpop.f32.mrb[0].mxu0
      %1583 = vdwg.mxu0
      %v1584 = vadd.f32 %v1429, %v1554
      %v1585 = vadd.f32 %v1430, %v1557
      %v1586 = vadd.f32 %v1431, %v1562
      %v1587 = vadd.f32 %v1432, %v1565
      %v1588 = vadd.f32 %v1433, %v1570
      %v1589 = vadd.f32 %v1434, %v1573
      %v1590 = vadd.f32 %v1435, %v1578
      %v1591 = vadd.f32 %v1436, %v1581
      %s1592 = scalar_lea.vmem %s1, 448
      %v1593 = vld [vmem:[%s1592] sm:$0xff]
      %v1594 = vld [vmem:[%s1592 + $0x8] sm:$0xff]
      %v1595 = vld [vmem:[%s1592 + $0x10] sm:$0xff]
      %v1596 = vld [vmem:[%s1592 + $0x18] sm:$0xff]
      %v1597 = vld [vmem:[%s1592 + $0x20] sm:$0xff]
      %v1598 = vld [vmem:[%s1592 + $0x28] sm:$0xff]
      %v1599 = vld [vmem:[%s1592 + $0x30] sm:$0xff]
      %v1600 = vld [vmem:[%s1592 + $0x38] sm:$0xff]
      %1602 = vset.pattern.permute.xlu0 0
      %1603 = vperm.xlu0 %1602, %v1593
      %v1604 = vpop.permute.xlu0 %1603
      %1607 = vset.pattern.permute.xlu0 0
      %1608 = vperm.xlu0 %1607, %v1594
      %v1609 = vpop.permute.xlu0 %1608
      %1612 = vset.pattern.permute.xlu0 0
      %1613 = vperm.xlu0 %1612, %v1595
      %v1614 = vpop.permute.xlu0 %1613
      %1617 = vset.pattern.permute.xlu0 0
      %1618 = vperm.xlu0 %1617, %v1596
      %v1619 = vpop.permute.xlu0 %1618
      %1622 = vset.pattern.permute.xlu0 0
      %1623 = vperm.xlu0 %1622, %v1597
      %v1624 = vpop.permute.xlu0 %1623
      %1627 = vset.pattern.permute.xlu0 0
      %1628 = vperm.xlu0 %1627, %v1598
      %v1629 = vpop.permute.xlu0 %1628
      %1632 = vset.pattern.permute.xlu0 0
      %1633 = vperm.xlu0 %1632, %v1599
      %v1634 = vpop.permute.xlu0 %1633
      %1637 = vset.pattern.permute.xlu0 0
      %1638 = vperm.xlu0 %1637, %v1600
      %v1639 = vpop.permute.xlu0 %1638
      %v1641 = vmul.f32 %v518, %v1604
      %v1642 = vmul.f32 %v519, %v1609
      %v1643 = vmul.f32 %v520, %v1614
      %v1644 = vmul.f32 %v521, %v1619
      %v1645 = vmul.f32 %v522, %v1624
      %v1646 = vmul.f32 %v523, %v1629
      %v1647 = vmul.f32 %v524, %v1634
      %v1648 = vmul.f32 %v517, %v1639
      %v1649 = vpack.c.bf16 %v1642, %v1641
      %v1650 = vpack.c.bf16 %v1644, %v1643
      %v1651 = vpack.c.bf16 %v1646, %v1645
      %v1652 = vpack.c.bf16 %v1648, %v1647
      %s1653 = scalar_lea.vmem %s2, 56
      %v1654 = vld [vmem:[%s1653] sm:$0xf]
      %v1655 = vld [vmem:[%s1653 + $0x4] sm:$0xf]
      %v1658 = vunpack.c.l.b16 %v1654
      %v1659 = vunpack.c.l.b16 %v1655
      %v1660 = vpack.c.b16 %v1659, %v1658
      %v1663 = vsel %vm413, %v1649, 0
      %v1666 = vsel %vm413, %v1650, 0
      %v1669 = vsel %vm413, %v1651, 0
      %v1672 = vsel %vm413, %v1652, 0
      %1674 = vmatprep.subr.bf16.mxu0 0
      %1675 = vmatpush1.bf16.msra.mxu0 %v1660
      %1676 = vmatprep.subr.bf16.mxu0 0
      %1677 = vmatpush1.bf16.msra.mxu0 0
      %1678 = vmatprep.subr.bf16.mxu0 0
      %1679 = vmatpush1.bf16.msra.mxu0 0
      %1680 = vmatprep.subr.bf16.mxu0 0
      %1681 = vmatpush1.bf16.msra.mxu0 0
      %1682 = vmatprep.subr.bf16.mxu0 0
      %1683 = vmatpush1.bf16.msra.mxu0 0
      %1684 = vmatprep.subr.bf16.mxu0 0
      %1685 = vmatpush1.bf16.msra.mxu0 0
      %1686 = vmatprep.subr.bf16.mxu0 0
      %1687 = vmatpush1.bf16.msra.mxu0 0
      %1688 = vmatprep.subr.bf16.mxu0 0
      %1689 = vmatpush1.bf16.msra.mxu0 0
      %1690 = vmatprep.subr.bf16.mxu0 0
      %1691 = vmatpush1.bf16.msra.mxu0 0
      %1692 = vmatprep.subr.bf16.mxu0 0
      %1693 = vmatpush1.bf16.msra.mxu0 0
      %1694 = vmatprep.subr.bf16.mxu0 0
      %1695 = vmatpush1.bf16.msra.mxu0 0
      %1696 = vmatprep.subr.bf16.mxu0 0
      %1697 = vmatpush1.bf16.msra.mxu0 0
      %1698 = vmatprep.subr.bf16.mxu0 0
      %1699 = vmatpush1.bf16.msra.mxu0 0
      %1700 = vmatprep.subr.bf16.mxu0 0
      %1701 = vmatpush1.bf16.msra.mxu0 0
      %1702 = vmatprep.subr.bf16.mxu0 0
      %1703 = vmatpush1.bf16.msra.mxu0 0
      %1704 = vmatprep.subr.bf16.mxu0 0
      %1705 = vmatpush1.bf16.msra.mxu0 0
      %1706 = vmatprep.mubr.bf16.mxu0 0
      %1707 = vmatmul.mubr.bf16.gmra.mrb[0].mxu0 %v1663
      %v1708 = vpop.f32.mrb[0].mxu0
      %v1709 = vadd.f32 0.0, %v1708
      %v1710 = vpop.f32.mrb[0].mxu0
      %v1711 = vpop.f32.mrb[0].mxu0
      %v1712 = vadd.f32 0.0, %v1711
      %v1713 = vpop.f32.mrb[0].mxu0
      %1714 = vmatprep.mubr.bf16.mxu0 0
      %1715 = vmatmul.mubr.bf16.gmra.mrb[0].mxu0 %v1666
      %v1716 = vpop.f32.mrb[0].mxu0
      %v1717 = vadd.f32 0.0, %v1716
      %v1718 = vpop.f32.mrb[0].mxu0
      %v1719 = vpop.f32.mrb[0].mxu0
      %v1720 = vadd.f32 0.0, %v1719
      %v1721 = vpop.f32.mrb[0].mxu0
      %1722 = vmatprep.mubr.bf16.mxu0 0
      %1723 = vmatmul.mubr.bf16.gmra.mrb[0].mxu0 %v1669
      %v1724 = vpop.f32.mrb[0].mxu0
      %v1725 = vadd.f32 0.0, %v1724
      %v1726 = vpop.f32.mrb[0].mxu0
      %v1727 = vpop.f32.mrb[0].mxu0
      %v1728 = vadd.f32 0.0, %v1727
      %v1729 = vpop.f32.mrb[0].mxu0
      %1730 = vmatprep.mubr.bf16.mxu0 0
      %1731 = vmatmul.mubr.bf16.gmra.mrb[0].mxu0 %v1672
      %v1732 = vpop.f32.mrb[0].mxu0
      %v1733 = vadd.f32 0.0, %v1732
      %v1734 = vpop.f32.mrb[0].mxu0
      %v1735 = vpop.f32.mrb[0].mxu0
      %v1736 = vadd.f32 0.0, %v1735
      %v1737 = vpop.f32.mrb[0].mxu0
      %1738 = vdwg.mxu0
      %v1739 = vadd.f32 %v1584, %v1709
      %v1740 = vadd.f32 %v1585, %v1712
      %v1741 = vadd.f32 %v1586, %v1717
      %v1742 = vadd.f32 %v1587, %v1720
      %v1743 = vadd.f32 %v1588, %v1725
      %v1744 = vadd.f32 %v1589, %v1728
      %v1745 = vadd.f32 %v1590, %v1733
      %v1746 = vadd.f32 %v1591, %v1736
      %s1747 = scalar_lea.vmem %s1, 512
      %v1748 = vld [vmem:[%s1747] sm:$0xff]
      %v1749 = vld [vmem:[%s1747 + $0x8] sm:$0xff]
      %v1750 = vld [vmem:[%s1747 + $0x10] sm:$0xff]
      %v1751 = vld [vmem:[%s1747 + $0x18] sm:$0xff]
      %v1752 = vld [vmem:[%s1747 + $0x20] sm:$0xff]
      %v1753 = vld [vmem:[%s1747 + $0x28] sm:$0xff]
      %v1754 = vld [vmem:[%s1747 + $0x30] sm:$0xff]
      %v1755 = vld [vmem:[%s1747 + $0x38] sm:$0xff]
      %1757 = vset.pattern.permute.xlu0 0
      %1758 = vperm.xlu0 %1757, %v1748
      %v1759 = vpop.permute.xlu0 %1758
      %1762 = vset.pattern.permute.xlu0 0
      %1763 = vperm.xlu0 %1762, %v1749
      %v1764 = vpop.permute.xlu0 %1763
      %1767 = vset.pattern.permute.xlu0 0
      %1768 = vperm.xlu0 %1767, %v1750
      %v1769 = vpop.permute.xlu0 %1768
      %1772 = vset.pattern.permute.xlu0 0
      %1773 = vperm.xlu0 %1772, %v1751
      %v1774 = vpop.permute.xlu0 %1773
      %1777 = vset.pattern.permute.xlu0 0
      %1778 = vperm.xlu0 %1777, %v1752
      %v1779 = vpop.permute.xlu0 %1778
      %1782 = vset.pattern.permute.xlu0 0
      %1783 = vperm.xlu0 %1782, %v1753
      %v1784 = vpop.permute.xlu0 %1783
      %1787 = vset.pattern.permute.xlu0 0
      %1788 = vperm.xlu0 %1787, %v1754
      %v1789 = vpop.permute.xlu0 %1788
      %1792 = vset.pattern.permute.xlu0 0
      %1793 = vperm.xlu0 %1792, %v1755
      %v1794 = vpop.permute.xlu0 %1793
      %v1796 = vmul.f32 %v871, %v1759
      %v1797 = vmul.f32 %v870, %v1764
      %v1798 = vmul.f32 %v869, %v1769
      %v1799 = vmul.f32 %v868, %v1774
      %v1800 = vmul.f32 %v867, %v1779
      %v1801 = vmul.f32 %v866, %v1784
      %v1802 = vmul.f32 %v873, %v1789
      %v1803 = vmul.f32 %v872, %v1794
      %v1804 = vpack.c.bf16 %v1797, %v1796
      %v1805 = vpack.c.bf16 %v1799, %v1798
      %v1806 = vpack.c.bf16 %v1801, %v1800
      %v1807 = vpack.c.bf16 %v1803, %v1802
      %s1808 = scalar_lea.vmem %s2, 64
      %v1809 = vld [vmem:[%s1808] sm:$0xf]
      %v1810 = vld [vmem:[%s1808 + $0x4] sm:$0xf]
      %v1813 = vunpack.c.l.b16 %v1809
      %v1814 = vunpack.c.l.b16 %v1810
      %v1815 = vpack.c.b16 %v1814, %v1813
      %v1818 = vsel %vm413, %v1804, 0
      %v1821 = vsel %vm413, %v1805, 0
      %v1824 = vsel %vm413, %v1806, 0
      %v1827 = vsel %vm413, %v1807, 0
      %1829 = vmatprep.subr.bf16.mxu0 0
      %1830 = vmatpush1.bf16.msra.mxu0 %v1815
      %1831 = vmatprep.subr.bf16.mxu0 0
      %1832 = vmatpush1.bf16.msra.mxu0 0
      %1833 = vmatprep.subr.bf16.mxu0 0
      %1834 = vmatpush1.bf16.msra.mxu0 0
      %1835 = vmatprep.subr.bf16.mxu0 0
      %1836 = vmatpush1.bf16.msra.mxu0 0
      %1837 = vmatprep.subr.bf16.mxu0 0
      %1838 = vmatpush1.bf16.msra.mxu0 0
      %1839 = vmatprep.subr.bf16.mxu0 0
      %1840 = vmatpush1.bf16.msra.mxu0 0
      %1841 = vmatprep.subr.bf16.mxu0 0
      %1842 = vmatpush1.bf16.msra.mxu0 0
      %1843 = vmatprep.subr.bf16.mxu0 0
      %1844 = vmatpush1.bf16.msra.mxu0 0
      %1845 = vmatprep.subr.bf16.mxu0 0
      %1846 = vmatpush1.bf16.msra.mxu0 0
      %1847 = vmatprep.subr.bf16.mxu0 0
      %1848 = vmatpush1.bf16.msra.mxu0 0
      %1849 = vmatprep.subr.bf16.mxu0 0
      %1850 = vmatpush1.bf16.msra.mxu0 0
      %1851 = vmatprep.subr.bf16.mxu0 0
      %1852 = vmatpush1.bf16.msra.mxu0 0
      %1853 = vmatprep.subr.bf16.mxu0 0
      %1854 = vmatpush1.bf16.msra.mxu0 0
      %1855 = vmatprep.subr.bf16.mxu0 0
      %1856 = vmatpush1.bf16.msra.mxu0 0
      %1857 = vmatprep.subr.bf16.mxu0 0
      %1858 = vmatpush1.bf16.msra.mxu0 0
      %1859 = vmatprep.subr.bf16.mxu0 0
      %1860 = vmatpush1.bf16.msra.mxu0 0
      %1861 = vmatprep.mubr.bf16.mxu0 0
      %1862 = vmatmul.mubr.bf16.gmra.mrb[0].mxu0 %v1818
      %v1863 = vpop.f32.mrb[0].mxu0
      %v1864 = vadd.f32 0.0, %v1863
      %v1865 = vpop.f32.mrb[0].mxu0
      %v1866 = vpop.f32.mrb[0].mxu0
      %v1867 = vadd.f32 0.0, %v1866
      %v1868 = vpop.f32.mrb[0].mxu0
      %1869 = vmatprep.mubr.bf16.mxu0 0
      %1870 = vmatmul.mubr.bf16.gmra.mrb[0].mxu0 %v1821
      %v1871 = vpop.f32.mrb[0].mxu0
      %v1872 = vadd.f32 0.0, %v1871
      %v1873 = vpop.f32.mrb[0].mxu0
      %v1874 = vpop.f32.mrb[0].mxu0
      %v1875 = vadd.f32 0.0, %v1874
      %v1876 = vpop.f32.mrb[0].mxu0
      %1877 = vmatprep.mubr.bf16.mxu0 0
      %1878 = vmatmul.mubr.bf16.gmra.mrb[0].mxu0 %v1824
      %v1879 = vpop.f32.mrb[0].mxu0
      %v1880 = vadd.f32 0.0, %v1879
      %v1881 = vpop.f32.mrb[0].mxu0
      %v1882 = vpop.f32.mrb[0].mxu0
      %v1883 = vadd.f32 0.0, %v1882
      %v1884 = vpop.f32.mrb[0].mxu0
      %1885 = vmatprep.mubr.bf16.mxu0 0
      %1886 = vmatmul.mubr.bf16.gmra.mrb[0].mxu0 %v1827
      %v1887 = vpop.f32.mrb[0].mxu0
      %v1888 = vadd.f32 0.0, %v1887
      %v1889 = vpop.f32.mrb[0].mxu0
      %v1890 = vpop.f32.mrb[0].mxu0
      %v1891 = vadd.f32 0.0, %v1890
      %v1892 = vpop.f32.mrb[0].mxu0
      %1893 = vdwg.mxu0
      %v1894 = vadd.f32 %v1739, %v1864
      %v1895 = vadd.f32 %v1740, %v1867
      %v1896 = vadd.f32 %v1741, %v1872
      %v1897 = vadd.f32 %v1742, %v1875
      %v1898 = vadd.f32 %v1743, %v1880
      %v1899 = vadd.f32 %v1744, %v1883
      %v1900 = vadd.f32 %v1745, %v1888
      %v1901 = vadd.f32 %v1746, %v1891
      %v1902 = vld [vmem:[%s9] sm:$0x1]
      %v1903 = vld [vmem:[%s10] sm:$0x1]
      %v1904 = vlaneseq
      %v1905 = vshrl.u32 %v1904, 7
      %v1906 = vsub.s32 0, %v1905
      %v1907 = vrot.slane %v1902, %v1906
      %v1908 = vmul.f32 %v1894, %v1907
      %v1909 = vmul.f32 %v1895, %v1907
      %v1910 = vmul.f32 %v1896, %v1907
      %v1911 = vmul.f32 %v1897, %v1907
      %v1912 = vmul.f32 %v1898, %v1907
      %v1913 = vmul.f32 %v1899, %v1907
      %v1914 = vmul.f32 %v1900, %v1907
      %v1915 = vmul.f32 %v1901, %v1907
      %v1916 = vlaneseq
      %v1917 = vshrl.u32 %v1916, 7
      %v1918 = vsub.s32 0, %v1917
      %v1919 = vrot.slane %v1903, %v1918
      %v1920 = vadd.f32 %v1908, %v1919
      %v1921 = vadd.f32 %v1909, %v1919
      %v1922 = vadd.f32 %v1910, %v1919
      %v1923 = vadd.f32 %v1911, %v1919
      %v1924 = vadd.f32 %v1912, %v1919
      %v1925 = vadd.f32 %v1913, %v1919
      %v1926 = vadd.f32 %v1914, %v1919
      %v1927 = vadd.f32 %v1915, %v1919
      %v1928 = vmax.f32 %v1920, 0.0
      %v1929 = vmax.f32 %v1921, 0.0
      %v1930 = vmax.f32 %v1922, 0.0
      %v1931 = vmax.f32 %v1923, 0.0
      %v1932 = vmax.f32 %v1924, 0.0
      %v1933 = vmax.f32 %v1925, 0.0
      %v1934 = vmax.f32 %v1926, 0.0
      %v1935 = vmax.f32 %v1927, 0.0
      %v1936 = vpack.c.bf16 %v1929, %v1928
      %v1937 = vpack.c.bf16 %v1931, %v1930
      %v1938 = vpack.c.bf16 %v1933, %v1932
      %v1939 = vpack.c.bf16 %v1935, %v1934
      %v1940 = vld [vmem:[%s3] sm:$0xf]
      %v1941 = vld [vmem:[%s3 + $0x4] sm:$0xf]
      %v1942 = vld [vmem:[%s3 + $0x8] sm:$0xf]
      %v1943 = vld [vmem:[%s3 + $0xc] sm:$0xf]
      %v1944 = vld [vmem:[%s3 + $0x10] sm:$0xf]
      %v1945 = vld [vmem:[%s3 + $0x14] sm:$0xf]
      %v1946 = vld [vmem:[%s3 + $0x18] sm:$0xf]
      %v1947 = vld [vmem:[%s3 + $0x1c] sm:$0xf]
      %v1948 = vld [vmem:[%s3 + $0x20] sm:$0xf]
      %v1949 = vld [vmem:[%s3 + $0x24] sm:$0xf]
      %v1950 = vld [vmem:[%s3 + $0x28] sm:$0xf]
      %v1951 = vld [vmem:[%s3 + $0x2c] sm:$0xf]
      %v1952 = vld [vmem:[%s3 + $0x30] sm:$0xf]
      %v1953 = vld [vmem:[%s3 + $0x34] sm:$0xf]
      %v1954 = vld [vmem:[%s3 + $0x38] sm:$0xf]
      %v1955 = vld [vmem:[%s3 + $0x3c] sm:$0xf]
      %v1956 = vld [vmem:[%s7 + $0x1] sm:$0x1]
      %v1957 = vlaneseq
      %v1958 = vshrl.u32 %v1957, 7
      %v1959 = vsub.s32 0, %v1958
      %v1960 = vrot.slane %v1956, %v1959
      %v1977 = vunpack.c.l.b16 %v1940
      %v1978 = vunpack.c.l.b16 %v1941
      %v1979 = vunpack.c.l.b16 %v1942
      %v1980 = vunpack.c.l.b16 %v1943
      %v1981 = vunpack.c.l.b16 %v1944
      %v1982 = vunpack.c.l.b16 %v1945
      %v1983 = vunpack.c.l.b16 %v1946
      %v1984 = vunpack.c.l.b16 %v1947
      %v1985 = vunpack.c.l.b16 %v1948
      %v1986 = vunpack.c.l.b16 %v1949
      %v1987 = vunpack.c.l.b16 %v1950
      %v1988 = vunpack.c.l.b16 %v1951
      %v1989 = vunpack.c.l.b16 %v1952
      %v1990 = vunpack.c.l.b16 %v1953
      %v1991 = vunpack.c.l.b16 %v1954
      %v1992 = vunpack.c.l.b16 %v1955
      %v1993 = vpack.c.b16 %v1978, %v1977
      %v1994 = vpack.c.b16 %v1980, %v1979
      %v1995 = vpack.c.b16 %v1982, %v1981
      %v1996 = vpack.c.b16 %v1984, %v1983
      %v1997 = vpack.c.b16 %v1986, %v1985
      %v1998 = vpack.c.b16 %v1988, %v1987
      %v1999 = vpack.c.b16 %v1990, %v1989
      %v2000 = vpack.c.b16 %v1992, %v1991
      %2009 = vmatprep.subr.bf16.mxu0 0
      %2010 = vmatpush1.bf16.msra.mxu0 %v1993
      %2011 = vmatprep.subr.bf16.mxu0 0
      %2012 = vmatpush1.bf16.msra.mxu0 %v1994
      %2013 = vmatprep.subr.bf16.mxu0 0
      %2014 = vmatpush1.bf16.msra.mxu0 %v1995
      %2015 = vmatprep.subr.bf16.mxu0 0
      %2016 = vmatpush1.bf16.msra.mxu0 %v1996
      %2017 = vmatprep.subr.bf16.mxu0 0
      %2018 = vmatpush1.bf16.msra.mxu0 %v1997
      %2019 = vmatprep.subr.bf16.mxu0 0
      %2020 = vmatpush1.bf16.msra.mxu0 %v1998
      %2021 = vmatprep.subr.bf16.mxu0 0
      %2022 = vmatpush1.bf16.msra.mxu0 %v1999
      %2023 = vmatprep.subr.bf16.mxu0 0
      %2024 = vmatpush1.bf16.msra.mxu0 %v2000
      %2025 = vmatprep.subr.bf16.mxu0 0
      %2026 = vmatpush1.bf16.msra.mxu0 0
      %2027 = vmatprep.subr.bf16.mxu0 0
      %2028 = vmatpush1.bf16.msra.mxu0 0
      %2029 = vmatprep.subr.bf16.mxu0 0
      %2030 = vmatpush1.bf16.msra.mxu0 0
      %2031 = vmatprep.subr.bf16.mxu0 0
      %2032 = vmatpush1.bf16.msra.mxu0 0
      %2033 = vmatprep.subr.bf16.mxu0 0
      %2034 = vmatpush1.bf16.msra.mxu0 0
      %2035 = vmatprep.subr.bf16.mxu0 0
      %2036 = vmatpush1.bf16.msra.mxu0 0
      %2037 = vmatprep.subr.bf16.mxu0 0
      %2038 = vmatpush1.bf16.msra.mxu0 0
      %2039 = vmatprep.subr.bf16.mxu0 0
      %2040 = vmatpush1.bf16.msra.mxu0 0
      %2041 = vmatprep.mubr.bf16.mxu0 0
      %2042 = vmatmul.mubr.bf16.gmra.mrb[0].mxu0 %v1936
      %v2043 = vpop.f32.mrb[0].mxu0
      %v2044 = vadd.f32 %v1960, %v2043
      %v2045 = vpop.f32.mrb[0].mxu0
      %v2046 = vpop.f32.mrb[0].mxu0
      %v2047 = vadd.f32 %v1960, %v2046
      %v2048 = vpop.f32.mrb[0].mxu0
      %2049 = vmatprep.mubr.bf16.mxu0 0
      %2050 = vmatmul.mubr.bf16.gmra.mrb[0].mxu0 %v1937
      %v2051 = vpop.f32.mrb[0].mxu0
      %v2052 = vadd.f32 %v1960, %v2051
      %v2053 = vpop.f32.mrb[0].mxu0
      %v2054 = vpop.f32.mrb[0].mxu0
      %v2055 = vadd.f32 %v1960, %v2054
      %v2056 = vpop.f32.mrb[0].mxu0
      %2057 = vmatprep.mubr.bf16.mxu0 0
      %2058 = vmatmul.mubr.bf16.gmra.mrb[0].mxu0 %v1938
      %v2059 = vpop.f32.mrb[0].mxu0
      %v2060 = vadd.f32 %v1960, %v2059
      %v2061 = vpop.f32.mrb[0].mxu0
      %v2062 = vpop.f32.mrb[0].mxu0
      %v2063 = vadd.f32 %v1960, %v2062
      %v2064 = vpop.f32.mrb[0].mxu0
      %2065 = vmatprep.mubr.bf16.mxu0 0
      %2066 = vmatmul.mubr.bf16.gmra.mrb[0].mxu0 %v1939
      %v2067 = vpop.f32.mrb[0].mxu0
      %v2068 = vadd.f32 %v1960, %v2067
      %v2069 = vpop.f32.mrb[0].mxu0
      %v2070 = vpop.f32.mrb[0].mxu0
      %v2071 = vadd.f32 %v1960, %v2070
      %v2072 = vpop.f32.mrb[0].mxu0
      %2073 = vdwg.mxu0
      %v2074 = vadd.f32 %v2044, %v461
      %v2075 = vadd.f32 %v2047, %v464
      %v2076 = vadd.f32 %v2052, %v469
      %v2077 = vadd.f32 %v2055, %v472
      %v2078 = vadd.f32 %v2060, %v477
      %v2079 = vadd.f32 %v2063, %v480
      %v2080 = vadd.f32 %v2068, %v485
      %v2081 = vadd.f32 %v2071, %v488
      %v2082 = vld [vmem:[%s9 + $0x1] sm:$0x1]
      %v2083 = vld [vmem:[%s10 + $0x1] sm:$0x1]
      %v2084 = vlaneseq
      %v2085 = vshrl.u32 %v2084, 7
      %v2086 = vsub.s32 0, %v2085
      %v2087 = vrot.slane %v2082, %v2086
      %v2088 = vmul.f32 %v2074, %v2087
      %v2089 = vmul.f32 %v2075, %v2087
      %v2090 = vmul.f32 %v2076, %v2087
      %v2091 = vmul.f32 %v2077, %v2087
      %v2092 = vmul.f32 %v2078, %v2087
      %v2093 = vmul.f32 %v2079, %v2087
      %v2094 = vmul.f32 %v2080, %v2087
      %v2095 = vmul.f32 %v2081, %v2087
      %v2096 = vlaneseq
      %v2097 = vshrl.u32 %v2096, 7
      %v2098 = vsub.s32 0, %v2097
      %v2099 = vrot.slane %v2083, %v2098
      %v2100 = vadd.f32 %v2088, %v2099
      %v2101 = vadd.f32 %v2089, %v2099
      %v2102 = vadd.f32 %v2090, %v2099
      %v2103 = vadd.f32 %v2091, %v2099
      %v2104 = vadd.f32 %v2092, %v2099
      %v2105 = vadd.f32 %v2093, %v2099
      %v2106 = vadd.f32 %v2094, %v2099
      %v2107 = vadd.f32 %v2095, %v2099
      %v2108 = vmax.f32 %v2100, 0.0
      %v2109 = vmax.f32 %v2101, 0.0
      %v2110 = vmax.f32 %v2102, 0.0
      %v2111 = vmax.f32 %v2103, 0.0
      %v2112 = vmax.f32 %v2104, 0.0
      %v2113 = vmax.f32 %v2105, 0.0
      %v2114 = vmax.f32 %v2106, 0.0
      %v2115 = vmax.f32 %v2107, 0.0
      %v2116 = vld [vmem:[%s7 + $0x3] sm:$0x1]
      %v2117 = vrot.slane %v2108, 7
      %v2118 = vrot.slane %v2109, 7
      %v2119 = vrot.slane %v2110, 7
      %v2120 = vrot.slane %v2111, 7
      %v2121 = vrot.slane %v2112, 7
      %v2122 = vrot.slane %v2113, 7
      %v2123 = vrot.slane %v2114, 7
      %v2124 = vrot.slane %v2115, 7
      %v2125 = vsel %vm540, %v2123, %v2124
      %v2126 = vsel %vm540, %v2122, %v2123
      %v2127 = vsel %vm540, %v2121, %v2122
      %v2128 = vsel %vm540, %v2120, %v2121
      %v2129 = vsel %vm540, %v2119, %v2120
      %v2130 = vsel %vm540, %v2118, %v2119
      %v2131 = vsel %vm540, %v2117, %v2118
      %v2132 = vsel %vm540, %v2124, %v2117
      %v2133 = vmul.f32 %v2125, %v560
      %v2134 = vmul.f32 %v2132, %v565
      %v2135 = vmul.f32 %v2131, %v570
      %v2136 = vmul.f32 %v2130, %v575
      %v2137 = vmul.f32 %v2129, %v580
      %v2138 = vmul.f32 %v2128, %v585
      %v2139 = vmul.f32 %v2127, %v590
      %v2140 = vmul.f32 %v2126, %v595
      %v2141 = vpack.c.bf16 %v2134, %v2133
      %v2142 = vpack.c.bf16 %v2136, %v2135
      %v2143 = vpack.c.bf16 %v2138, %v2137
      %v2144 = vpack.c.bf16 %v2140, %v2139
      %2145 = vst [vmem:[#allocation2] sm:$0xff] %v2141
      %2146 = vst [vmem:[#allocation2 + $0x48] sm:$0xff] %v2142
      %2147 = vst [vmem:[#allocation2 + $0x90] sm:$0xff] %v2143
      %2148 = vst [vmem:[#allocation2 + $0xd8] sm:$0xff] %v2144
      %v2149 = vld [vmem:[%s702] sm:$0xff]
      %v2150 = vld [vmem:[%s702 + $0x8] sm:$0xff]
      %v2151 = vld [vmem:[%s702 + $0x10] sm:$0xff]
      %v2152 = vld [vmem:[%s702 + $0x18] sm:$0xff]
      %v2153 = vld [vmem:[%s702 + $0x20] sm:$0xff]
      %v2154 = vld [vmem:[%s702 + $0x28] sm:$0xff]
      %v2155 = vld [vmem:[%s702 + $0x30] sm:$0xff]
      %v2156 = vld [vmem:[%s702 + $0x38] sm:$0xff]
      %2158 = vset.pattern.permute.xlu0 0
      %2159 = vperm.xlu0 %2158, %v2149
      %v2160 = vpop.permute.xlu0 %2159
      %2163 = vset.pattern.permute.xlu0 0
      %2164 = vperm.xlu0 %2163, %v2150
      %v2165 = vpop.permute.xlu0 %2164
      %2168 = vset.pattern.permute.xlu0 0
      %2169 = vperm.xlu0 %2168, %v2151
      %v2170 = vpop.permute.xlu0 %2169
      %2173 = vset.pattern.permute.xlu0 0
      %2174 = vperm.xlu0 %2173, %v2152
      %v2175 = vpop.permute.xlu0 %2174
      %2178 = vset.pattern.permute.xlu0 0
      %2179 = vperm.xlu0 %2178, %v2153
      %v2180 = vpop.permute.xlu0 %2179
      %2183 = vset.pattern.permute.xlu0 0
      %2184 = vperm.xlu0 %2183, %v2154
      %v2185 = vpop.permute.xlu0 %2184
      %2188 = vset.pattern.permute.xlu0 0
      %2189 = vperm.xlu0 %2188, %v2155
      %v2190 = vpop.permute.xlu0 %2189
      %2193 = vset.pattern.permute.xlu0 0
      %2194 = vperm.xlu0 %2193, %v2156
      %v2195 = vpop.permute.xlu0 %2194
      %v2197 = vmul.f32 %v2115, %v2160
      %v2198 = vmul.f32 %v2108, %v2165
      %v2199 = vmul.f32 %v2109, %v2170
      %v2200 = vmul.f32 %v2110, %v2175
      %v2201 = vmul.f32 %v2111, %v2180
      %v2202 = vmul.f32 %v2112, %v2185
      %v2203 = vmul.f32 %v2113, %v2190
      %v2204 = vmul.f32 %v2114, %v2195
      %v2205 = vpack.c.bf16 %v2198, %v2197
      %v2206 = vpack.c.bf16 %v2200, %v2199
      %v2207 = vpack.c.bf16 %v2202, %v2201
      %v2208 = vpack.c.bf16 %v2204, %v2203
      %2209 = vst [vmem:[#allocation2 + $0x8] sm:$0xff] %v2205
      %2210 = vst [vmem:[#allocation2 + $0x50] sm:$0xff] %v2206
      %2211 = vst [vmem:[#allocation2 + $0x98] sm:$0xff] %v2207
      %2212 = vst [vmem:[#allocation2 + $0xe0] sm:$0xff] %v2208
      %v2213 = vrot.slane %v2108, 1
      %v2214 = vrot.slane %v2109, 1
      %v2215 = vrot.slane %v2110, 1
      %v2216 = vrot.slane %v2111, 1
      %v2217 = vrot.slane %v2112, 1
      %v2218 = vrot.slane %v2113, 1
      %v2219 = vrot.slane %v2114, 1
      %v2220 = vrot.slane %v2115, 1
      %v2221 = vsel %vm865, %v2219, %v2220
      %v2222 = vsel %vm865, %v2218, %v2219
      %v2223 = vsel %vm865, %v2217, %v2218
      %v2224 = vsel %vm865, %v2216, %v2217
      %v2225 = vsel %vm865, %v2215, %v2216
      %v2226 = vsel %vm865, %v2214, %v2215
      %v2227 = vsel %vm865, %v2213, %v2214
      %v2228 = vsel %vm865, %v2220, %v2213
      %v2229 = vld [vmem:[%s874] sm:$0xff]
      %v2230 = vld [vmem:[%s874 + $0x8] sm:$0xff]
      %v2231 = vld [vmem:[%s874 + $0x10] sm:$0xff]
      %v2232 = vld [vmem:[%s874 + $0x18] sm:$0xff]
      %v2233 = vld [vmem:[%s874 + $0x20] sm:$0xff]
      %v2234 = vld [vmem:[%s874 + $0x28] sm:$0xff]
      %v2235 = vld [vmem:[%s874 + $0x30] sm:$0xff]
      %v2236 = vld [vmem:[%s874 + $0x38] sm:$0xff]
      %2238 = vset.pattern.permute.xlu0 0
      %2239 = vperm.xlu0 %2238, %v2229
      %v2240 = vpop.permute.xlu0 %2239
      %2243 = vset.pattern.permute.xlu0 0
      %2244 = vperm.xlu0 %2243, %v2230
      %v2245 = vpop.permute.xlu0 %2244
      %2248 = vset.pattern.permute.xlu0 0
      %2249 = vperm.xlu0 %2248, %v2231
      %v2250 = vpop.permute.xlu0 %2249
      %2253 = vset.pattern.permute.xlu0 0
      %2254 = vperm.xlu0 %2253, %v2232
      %v2255 = vpop.permute.xlu0 %2254
      %2258 = vset.pattern.permute.xlu0 0
      %2259 = vperm.xlu0 %2258, %v2233
      %v2260 = vpop.permute.xlu0 %2259
      %2263 = vset.pattern.permute.xlu0 0
      %2264 = vperm.xlu0 %2263, %v2234
      %v2265 = vpop.permute.xlu0 %2264
      %2268 = vset.pattern.permute.xlu0 0
      %2269 = vperm.xlu0 %2268, %v2235
      %v2270 = vpop.permute.xlu0 %2269
      %2273 = vset.pattern.permute.xlu0 0
      %2274 = vperm.xlu0 %2273, %v2236
      %v2275 = vpop.permute.xlu0 %2274
      %v2277 = vmul.f32 %v2228, %v2240
      %v2278 = vmul.f32 %v2227, %v2245
      %v2279 = vmul.f32 %v2226, %v2250
      %v2280 = vmul.f32 %v2225, %v2255
      %v2281 = vmul.f32 %v2224, %v2260
      %v2282 = vmul.f32 %v2223, %v2265
      %v2283 = vmul.f32 %v2222, %v2270
      %v2284 = vmul.f32 %v2221, %v2275
      %v2285 = vpack.c.bf16 %v2278, %v2277
      %v2286 = vpack.c.bf16 %v2280, %v2279
      %v2287 = vpack.c.bf16 %v2282, %v2281
      %v2288 = vpack.c.bf16 %v2284, %v2283
      %2289 = vst [vmem:[#allocation2 + $0x10] sm:$0xff] %v2285
      %2290 = vst [vmem:[#allocation2 + $0x58] sm:$0xff] %v2286
      %2291 = vst [vmem:[#allocation2 + $0xa0] sm:$0xff] %v2287
      %2292 = vst [vmem:[#allocation2 + $0xe8] sm:$0xff] %v2288
      %v2293 = vld [vmem:[%s1029] sm:$0xff]
      %v2294 = vld [vmem:[%s1029 + $0x8] sm:$0xff]
      %v2295 = vld [vmem:[%s1029 + $0x10] sm:$0xff]
      %v2296 = vld [vmem:[%s1029 + $0x18] sm:$0xff]
      %v2297 = vld [vmem:[%s1029 + $0x20] sm:$0xff]
      %v2298 = vld [vmem:[%s1029 + $0x28] sm:$0xff]
      %v2299 = vld [vmem:[%s1029 + $0x30] sm:$0xff]
      %v2300 = vld [vmem:[%s1029 + $0x38] sm:$0xff]
      %2302 = vset.pattern.permute.xlu0 0
      %2303 = vperm.xlu0 %2302, %v2293
      %v2304 = vpop.permute.xlu0 %2303
      %2307 = vset.pattern.permute.xlu0 0
      %2308 = vperm.xlu0 %2307, %v2294
      %v2309 = vpop.permute.xlu0 %2308
      %2312 = vset.pattern.permute.xlu0 0
      %2313 = vperm.xlu0 %2312, %v2295
      %v2314 = vpop.permute.xlu0 %2313
      %2317 = vset.pattern.permute.xlu0 0
      %2318 = vperm.xlu0 %2317, %v2296
      %v2319 = vpop.permute.xlu0 %2318
      %2322 = vset.pattern.permute.xlu0 0
      %2323 = vperm.xlu0 %2322, %v2297
      %v2324 = vpop.permute.xlu0 %2323
      %2327 = vset.pattern.permute.xlu0 0
      %2328 = vperm.xlu0 %2327, %v2298
      %v2329 = vpop.permute.xlu0 %2328
      %2332 = vset.pattern.permute.xlu0 0
      %2333 = vperm.xlu0 %2332, %v2299
      %v2334 = vpop.permute.xlu0 %2333
      %2337 = vset.pattern.permute.xlu0 0
      %2338 = vperm.xlu0 %2337, %v2300
      %v2339 = vpop.permute.xlu0 %2338
      %v2341 = vmul.f32 %v2132, %v2304
      %v2342 = vmul.f32 %v2131, %v2309
      %v2343 = vmul.f32 %v2130, %v2314
      %v2344 = vmul.f32 %v2129, %v2319
      %v2345 = vmul.f32 %v2128, %v2324
      %v2346 = vmul.f32 %v2127, %v2329
      %v2347 = vmul.f32 %v2126, %v2334
      %v2348 = vmul.f32 %v2125, %v2339
      %v2349 = vpack.c.bf16 %v2342, %v2341
      %v2350 = vpack.c.bf16 %v2344, %v2343
      %v2351 = vpack.c.bf16 %v2346, %v2345
      %v2352 = vpack.c.bf16 %v2348, %v2347
      %2353 = vst [vmem:[#allocation2 + $0x18] sm:$0xff] %v2349
      %2354 = vst [vmem:[#allocation2 + $0x60] sm:$0xff] %v2350
      %2355 = vst [vmem:[#allocation2 + $0xa8] sm:$0xff] %v2351
      %2356 = vst [vmem:[#allocation2 + $0xf0] sm:$0xff] %v2352
      %v2357 = vpack.c.bf16 %v2109, %v2108
      %v2358 = vpack.c.bf16 %v2111, %v2110
      %v2359 = vpack.c.bf16 %v2113, %v2112
      %v2360 = vpack.c.bf16 %v2115, %v2114
      %2361 = vst [vmem:[#allocation2 + $0x20] sm:$0xff] %v2357
      %2362 = vst [vmem:[#allocation2 + $0x68] sm:$0xff] %v2358
      %2363 = vst [vmem:[#allocation2 + $0xb0] sm:$0xff] %v2359
      %2364 = vst [vmem:[#allocation2 + $0xf8] sm:$0xff] %v2360
      %v2365 = vld [vmem:[%s1282] sm:$0xff]
      %v2366 = vld [vmem:[%s1282 + $0x8] sm:$0xff]
      %v2367 = vld [vmem:[%s1282 + $0x10] sm:$0xff]
      %v2368 = vld [vmem:[%s1282 + $0x18] sm:$0xff]
      %v2369 = vld [vmem:[%s1282 + $0x20] sm:$0xff]
      %v2370 = vld [vmem:[%s1282 + $0x28] sm:$0xff]
      %v2371 = vld [vmem:[%s1282 + $0x30] sm:$0xff]
      %v2372 = vld [vmem:[%s1282 + $0x38] sm:$0xff]
      %2374 = vset.pattern.permute.xlu0 0
      %2375 = vperm.xlu0 %2374, %v2365
      %v2376 = vpop.permute.xlu0 %2375
      %2379 = vset.pattern.permute.xlu0 0
      %2380 = vperm.xlu0 %2379, %v2366
      %v2381 = vpop.permute.xlu0 %2380
      %2384 = vset.pattern.permute.xlu0 0
      %2385 = vperm.xlu0 %2384, %v2367
      %v2386 = vpop.permute.xlu0 %2385
      %2389 = vset.pattern.permute.xlu0 0
      %2390 = vperm.xlu0 %2389, %v2368
      %v2391 = vpop.permute.xlu0 %2390
      %2394 = vset.pattern.permute.xlu0 0
      %2395 = vperm.xlu0 %2394, %v2369
      %v2396 = vpop.permute.xlu0 %2395
      %2399 = vset.pattern.permute.xlu0 0
      %2400 = vperm.xlu0 %2399, %v2370
      %v2401 = vpop.permute.xlu0 %2400
      %2404 = vset.pattern.permute.xlu0 0
      %2405 = vperm.xlu0 %2404, %v2371
      %v2406 = vpop.permute.xlu0 %2405
      %2409 = vset.pattern.permute.xlu0 0
      %2410 = vperm.xlu0 %2409, %v2372
      %v2411 = vpop.permute.xlu0 %2410
      %v2413 = vmul.f32 %v2227, %v2376
      %v2414 = vmul.f32 %v2226, %v2381
      %v2415 = vmul.f32 %v2225, %v2386
      %v2416 = vmul.f32 %v2224, %v2391
      %v2417 = vmul.f32 %v2223, %v2396
      %v2418 = vmul.f32 %v2222, %v2401
      %v2419 = vmul.f32 %v2221, %v2406
      %v2420 = vmul.f32 %v2228, %v2411
      %v2421 = vpack.c.bf16 %v2414, %v2413
      %v2422 = vpack.c.bf16 %v2416, %v2415
      %v2423 = vpack.c.bf16 %v2418, %v2417
      %v2424 = vpack.c.bf16 %v2420, %v2419
      %2425 = vst [vmem:[#allocation2 + $0x28] sm:$0xff] %v2421
      %2426 = vst [vmem:[#allocation2 + $0x70] sm:$0xff] %v2422
      %2427 = vst [vmem:[#allocation2 + $0xb8] sm:$0xff] %v2423
      %2428 = vst [vmem:[#allocation2 + $0x100] sm:$0xff] %v2424
      %v2429 = vld [vmem:[%s1437] sm:$0xff]
      %v2430 = vld [vmem:[%s1437 + $0x8] sm:$0xff]
      %v2431 = vld [vmem:[%s1437 + $0x10] sm:$0xff]
      %v2432 = vld [vmem:[%s1437 + $0x18] sm:$0xff]
      %v2433 = vld [vmem:[%s1437 + $0x20] sm:$0xff]
      %v2434 = vld [vmem:[%s1437 + $0x28] sm:$0xff]
      %v2435 = vld [vmem:[%s1437 + $0x30] sm:$0xff]
      %v2436 = vld [vmem:[%s1437 + $0x38] sm:$0xff]
      %2438 = vset.pattern.permute.xlu0 0
      %2439 = vperm.xlu0 %2438, %v2429
      %v2440 = vpop.permute.xlu0 %2439
      %2443 = vset.pattern.permute.xlu0 0
      %2444 = vperm.xlu0 %2443, %v2430
      %v2445 = vpop.permute.xlu0 %2444
      %2448 = vset.pattern.permute.xlu0 0
      %2449 = vperm.xlu0 %2448, %v2431
      %v2450 = vpop.permute.xlu0 %2449
      %2453 = vset.pattern.permute.xlu0 0
      %2454 = vperm.xlu0 %2453, %v2432
      %v2455 = vpop.permute.xlu0 %2454
      %2458 = vset.pattern.permute.xlu0 0
      %2459 = vperm.xlu0 %2458, %v2433
      %v2460 = vpop.permute.xlu0 %2459
      %2463 = vset.pattern.permute.xlu0 0
      %2464 = vperm.xlu0 %2463, %v2434
      %v2465 = vpop.permute.xlu0 %2464
      %2468 = vset.pattern.permute.xlu0 0
      %2469 = vperm.xlu0 %2468, %v2435
      %v2470 = vpop.permute.xlu0 %2469
      %2473 = vset.pattern.permute.xlu0 0
      %2474 = vperm.xlu0 %2473, %v2436
      %v2475 = vpop.permute.xlu0 %2474
      %v2477 = vmul.f32 %v2131, %v2440
      %v2478 = vmul.f32 %v2130, %v2445
      %v2479 = vmul.f32 %v2129, %v2450
      %v2480 = vmul.f32 %v2128, %v2455
      %v2481 = vmul.f32 %v2127, %v2460
      %v2482 = vmul.f32 %v2126, %v2465
      %v2483 = vmul.f32 %v2125, %v2470
      %v2484 = vmul.f32 %v2132, %v2475
      %v2485 = vpack.c.bf16 %v2478, %v2477
      %v2486 = vpack.c.bf16 %v2480, %v2479
      %v2487 = vpack.c.bf16 %v2482, %v2481
      %v2488 = vpack.c.bf16 %v2484, %v2483
      %2489 = vst [vmem:[#allocation2 + $0x30] sm:$0xff] %v2485
      %2490 = vst [vmem:[#allocation2 + $0x78] sm:$0xff] %v2486
      %2491 = vst [vmem:[#allocation2 + $0xc0] sm:$0xff] %v2487
      %2492 = vst [vmem:[#allocation2 + $0x108] sm:$0xff] %v2488
      %v2493 = vld [vmem:[%s1592] sm:$0xff]
      %v2494 = vld [vmem:[%s1592 + $0x8] sm:$0xff]
      %v2495 = vld [vmem:[%s1592 + $0x10] sm:$0xff]
      %v2496 = vld [vmem:[%s1592 + $0x18] sm:$0xff]
      %v2497 = vld [vmem:[%s1592 + $0x20] sm:$0xff]
      %v2498 = vld [vmem:[%s1592 + $0x28] sm:$0xff]
      %v2499 = vld [vmem:[%s1592 + $0x30] sm:$0xff]
      %v2500 = vld [vmem:[%s1592 + $0x38] sm:$0xff]
      %2502 = vset.pattern.permute.xlu0 0
      %2503 = vperm.xlu0 %2502, %v2493
      %v2504 = vpop.permute.xlu0 %2503
      %2507 = vset.pattern.permute.xlu0 0
      %2508 = vperm.xlu0 %2507, %v2494
      %v2509 = vpop.permute.xlu0 %2508
      %2512 = vset.pattern.permute.xlu0 0
      %2513 = vperm.xlu0 %2512, %v2495
      %v2514 = vpop.permute.xlu0 %2513
      %2517 = vset.pattern.permute.xlu0 0
      %2518 = vperm.xlu0 %2517, %v2496
      %v2519 = vpop.permute.xlu0 %2518
      %2522 = vset.pattern.permute.xlu0 0
      %2523 = vperm.xlu0 %2522, %v2497
      %v2524 = vpop.permute.xlu0 %2523
      %2527 = vset.pattern.permute.xlu0 0
      %2528 = vperm.xlu0 %2527, %v2498
      %v2529 = vpop.permute.xlu0 %2528
      %2532 = vset.pattern.permute.xlu0 0
      %2533 = vperm.xlu0 %2532, %v2499
      %v2534 = vpop.permute.xlu0 %2533
      %2537 = vset.pattern.permute.xlu0 0
      %2538 = vperm.xlu0 %2537, %v2500
      %v2539 = vpop.permute.xlu0 %2538
      %v2541 = vmul.f32 %v2109, %v2504
      %v2542 = vmul.f32 %v2110, %v2509
      %v2543 = vmul.f32 %v2111, %v2514
      %v2544 = vmul.f32 %v2112, %v2519
      %v2545 = vmul.f32 %v2113, %v2524
      %v2546 = vmul.f32 %v2114, %v2529
      %v2547 = vmul.f32 %v2115, %v2534
      %v2548 = vmul.f32 %v2108, %v2539
      %v2549 = vpack.c.bf16 %v2542, %v2541
      %v2550 = vpack.c.bf16 %v2544, %v2543
      %v2551 = vpack.c.bf16 %v2546, %v2545
      %v2552 = vpack.c.bf16 %v2548, %v2547
      %2553 = vst [vmem:[#allocation2 + $0x38] sm:$0xff] %v2549
      %2554 = vst [vmem:[#allocation2 + $0x80] sm:$0xff] %v2550
      %2555 = vst [vmem:[#allocation2 + $0xc8] sm:$0xff] %v2551
      %2556 = vst [vmem:[#allocation2 + $0x110] sm:$0xff] %v2552
      %v2557 = vld [vmem:[%s1747] sm:$0xff]
      %v2558 = vld [vmem:[%s1747 + $0x8] sm:$0xff]
      %v2559 = vld [vmem:[%s1747 + $0x10] sm:$0xff]
      %v2560 = vld [vmem:[%s1747 + $0x18] sm:$0xff]
      %v2561 = vld [vmem:[%s1747 + $0x20] sm:$0xff]
      %v2562 = vld [vmem:[%s1747 + $0x28] sm:$0xff]
      %v2563 = vld [vmem:[%s1747 + $0x30] sm:$0xff]
      %v2564 = vld [vmem:[%s1747 + $0x38] sm:$0xff]
      %2566 = vset.pattern.permute.xlu0 0
      %2567 = vperm.xlu0 %2566, %v2557
      %v2568 = vpop.permute.xlu0 %2567
      %2571 = vset.pattern.permute.xlu0 0
      %2572 = vperm.xlu0 %2571, %v2558
      %v2573 = vpop.permute.xlu0 %2572
      %2576 = vset.pattern.permute.xlu0 0
      %2577 = vperm.xlu0 %2576, %v2559
      %v2578 = vpop.permute.xlu0 %2577
      %2581 = vset.pattern.permute.xlu0 0
      %2582 = vperm.xlu0 %2581, %v2560
      %v2583 = vpop.permute.xlu0 %2582
      %2586 = vset.pattern.permute.xlu0 0
      %2587 = vperm.xlu0 %2586, %v2561
      %v2588 = vpop.permute.xlu0 %2587
      %2591 = vset.pattern.permute.xlu0 0
      %2592 = vperm.xlu0 %2591, %v2562
      %v2593 = vpop.permute.xlu0 %2592
      %2596 = vset.pattern.permute.xlu0 0
      %2597 = vperm.xlu0 %2596, %v2563
      %v2598 = vpop.permute.xlu0 %2597
      %2601 = vset.pattern.permute.xlu0 0
      %2602 = vperm.xlu0 %2601, %v2564
      %v2603 = vpop.permute.xlu0 %2602
      %v2605 = vmul.f32 %v2226, %v2568
      %v2606 = vmul.f32 %v2225, %v2573
      %v2607 = vmul.f32 %v2224, %v2578
      %v2608 = vmul.f32 %v2223, %v2583
      %v2609 = vmul.f32 %v2222, %v2588
      %v2610 = vmul.f32 %v2221, %v2593
      %v2611 = vmul.f32 %v2228, %v2598
      %v2612 = vmul.f32 %v2227, %v2603
      %v2613 = vpack.c.bf16 %v2606, %v2605
      %v2614 = vpack.c.bf16 %v2608, %v2607
      %v2615 = vpack.c.bf16 %v2610, %v2609
      %v2616 = vpack.c.bf16 %v2612, %v2611
      %2617 = vst [vmem:[#allocation2 + $0x40] sm:$0xff] %v2613
      %2618 = vst [vmem:[#allocation2 + $0x88] sm:$0xff] %v2614
      %2619 = vst [vmem:[#allocation2 + $0xd0] sm:$0xff] %v2615
      %2620 = vst [vmem:[#allocation2 + $0x118] sm:$0xff] %v2616
      %v2621 = vld [vmem:[#allocation2] sm:$0xff]
      %v2622 = vld [vmem:[#allocation2 + $0x8] sm:$0xff]
      %v2623 = vld [vmem:[#allocation2 + $0x10] sm:$0xff]
      %v2624 = vld [vmem:[#allocation2 + $0x18] sm:$0xff]
      %v2625 = vld [vmem:[#allocation2 + $0x20] sm:$0xff]
      %v2626 = vld [vmem:[#allocation2 + $0x28] sm:$0xff]
      %v2627 = vld [vmem:[#allocation2 + $0x30] sm:$0xff]
      %v2628 = vld [vmem:[#allocation2 + $0x38] sm:$0xff]
      %v2629 = vld [vmem:[#allocation2 + $0x40] sm:$0xff]
      %v2630 = vld [vmem:[#allocation2 + $0x48] sm:$0xff]
      %v2631 = vld [vmem:[#allocation2 + $0x50] sm:$0xff]
      %v2632 = vld [vmem:[#allocation2 + $0x58] sm:$0xff]
      %v2633 = vld [vmem:[#allocation2 + $0x60] sm:$0xff]
      %v2634 = vld [vmem:[#allocation2 + $0x68] sm:$0xff]
      %v2635 = vld [vmem:[#allocation2 + $0x70] sm:$0xff]
      %v2636 = vld [vmem:[#allocation2 + $0x78] sm:$0xff]
      %v2637 = vld [vmem:[#allocation2 + $0x80] sm:$0xff]
      %v2638 = vld [vmem:[#allocation2 + $0x88] sm:$0xff]
      %v2639 = vld [vmem:[#allocation2 + $0x90] sm:$0xff]
      %v2640 = vld [vmem:[#allocation2 + $0x98] sm:$0xff]
      %v2641 = vld [vmem:[#allocation2 + $0xa0] sm:$0xff]
      %v2642 = vld [vmem:[#allocation2 + $0xa8] sm:$0xff]
      %v2643 = vld [vmem:[#allocation2 + $0xb0] sm:$0xff]
      %v2644 = vld [vmem:[#allocation2 + $0xb8] sm:$0xff]
      %v2645 = vld [vmem:[#allocation2 + $0xc0] sm:$0xff]
      %v2646 = vld [vmem:[#allocation2 + $0xc8] sm:$0xff]
      %v2647 = vld [vmem:[#allocation2 + $0xd0] sm:$0xff]
      %v2648 = vld [vmem:[#allocation2 + $0xd8] sm:$0xff]
      %v2649 = vld [vmem:[#allocation2 + $0xe0] sm:$0xff]
      %v2650 = vld [vmem:[#allocation2 + $0xe8] sm:$0xff]
      %v2651 = vld [vmem:[#allocation2 + $0xf0] sm:$0xff]
      %v2652 = vld [vmem:[#allocation2 + $0xf8] sm:$0xff]
      %v2653 = vld [vmem:[#allocation2 + $0x100] sm:$0xff]
      %v2654 = vld [vmem:[#allocation2 + $0x108] sm:$0xff]
      %v2655 = vld [vmem:[#allocation2 + $0x110] sm:$0xff]
      %v2656 = vld [vmem:[#allocation2 + $0x118] sm:$0xff]
      %v2657 = vld [vmem:[%s5] sm:$0xf]
      %v2658 = vld [vmem:[%s5 + $0x4] sm:$0xf]
      %v2659 = vld [vmem:[%s5 + $0x8] sm:$0xf]
      %v2660 = vld [vmem:[%s5 + $0xc] sm:$0xf]
      %v2661 = vld [vmem:[%s5 + $0x10] sm:$0xf]
      %v2662 = vld [vmem:[%s5 + $0x14] sm:$0xf]
      %v2663 = vld [vmem:[%s5 + $0x18] sm:$0xf]
      %v2664 = vld [vmem:[%s5 + $0x1c] sm:$0xf]
      %v2665 = vld [vmem:[%s5 + $0x20] sm:$0xf]
      %v2666 = vld [vmem:[%s5 + $0x24] sm:$0xf]
      %v2667 = vld [vmem:[%s5 + $0x28] sm:$0xf]
      %v2668 = vld [vmem:[%s5 + $0x2c] sm:$0xf]
      %v2669 = vld [vmem:[%s5 + $0x30] sm:$0xf]
      %v2670 = vld [vmem:[%s5 + $0x34] sm:$0xf]
      %v2671 = vld [vmem:[%s5 + $0x38] sm:$0xf]
      %v2672 = vld [vmem:[%s5 + $0x3c] sm:$0xf]
      %v2673 = vld [vmem:[%s5 + $0x40] sm:$0xf]
      %v2674 = vld [vmem:[%s5 + $0x44] sm:$0xf]
      %v2675 = vld [vmem:[%s5 + $0x48] sm:$0xf]
      %v2676 = vld [vmem:[%s5 + $0x4c] sm:$0xf]
      %v2677 = vld [vmem:[%s5 + $0x50] sm:$0xf]
      %v2678 = vld [vmem:[%s5 + $0x54] sm:$0xf]
      %v2679 = vld [vmem:[%s5 + $0x58] sm:$0xf]
      %v2680 = vld [vmem:[%s5 + $0x5c] sm:$0xf]
      %v2681 = vld [vmem:[%s5 + $0x60] sm:$0xf]
      %v2682 = vld [vmem:[%s5 + $0x64] sm:$0xf]
      %v2683 = vld [vmem:[%s5 + $0x68] sm:$0xf]
      %v2684 = vld [vmem:[%s5 + $0x6c] sm:$0xf]
      %v2685 = vld [vmem:[%s5 + $0x70] sm:$0xf]
      %v2686 = vld [vmem:[%s5 + $0x74] sm:$0xf]
      %v2687 = vld [vmem:[%s5 + $0x78] sm:$0xf]
      %v2688 = vld [vmem:[%s5 + $0x7c] sm:$0xf]
      %v2689 = vld [vmem:[%s5 + $0x80] sm:$0xf]
      %v2690 = vld [vmem:[%s5 + $0x84] sm:$0xf]
      %v2691 = vld [vmem:[%s5 + $0x88] sm:$0xf]
      %v2692 = vld [vmem:[%s5 + $0x8c] sm:$0xf]
      %v2693 = vld [vmem:[%s5 + $0x90] sm:$0xf]
      %v2694 = vld [vmem:[%s5 + $0x94] sm:$0xf]
      %v2695 = vld [vmem:[%s5 + $0x98] sm:$0xf]
      %v2696 = vld [vmem:[%s5 + $0x9c] sm:$0xf]
      %v2697 = vld [vmem:[%s5 + $0xa0] sm:$0xf]
      %v2698 = vld [vmem:[%s5 + $0xa4] sm:$0xf]
      %v2699 = vld [vmem:[%s5 + $0xa8] sm:$0xf]
      %v2700 = vld [vmem:[%s5 + $0xac] sm:$0xf]
      %v2701 = vld [vmem:[%s5 + $0xb0] sm:$0xf]
      %v2702 = vld [vmem:[%s5 + $0xb4] sm:$0xf]
      %v2703 = vld [vmem:[%s5 + $0xb8] sm:$0xf]
      %v2704 = vld [vmem:[%s5 + $0xbc] sm:$0xf]
      %v2705 = vld [vmem:[%s5 + $0xc0] sm:$0xf]
      %v2706 = vld [vmem:[%s5 + $0xc4] sm:$0xf]
      %v2707 = vld [vmem:[%s5 + $0xc8] sm:$0xf]
      %v2708 = vld [vmem:[%s5 + $0xcc] sm:$0xf]
      %v2709 = vld [vmem:[%s5 + $0xd0] sm:$0xf]
      %v2710 = vld [vmem:[%s5 + $0xd4] sm:$0xf]
      %v2711 = vld [vmem:[%s5 + $0xd8] sm:$0xf]
      %v2712 = vld [vmem:[%s5 + $0xdc] sm:$0xf]
      %v2713 = vld [vmem:[%s5 + $0xe0] sm:$0xf]
      %v2714 = vld [vmem:[%s5 + $0xe4] sm:$0xf]
      %v2715 = vld [vmem:[%s5 + $0xe8] sm:$0xf]
      %v2716 = vld [vmem:[%s5 + $0xec] sm:$0xf]
      %v2717 = vld [vmem:[%s5 + $0xf0] sm:$0xf]
      %v2718 = vld [vmem:[%s5 + $0xf4] sm:$0xf]
      %v2719 = vld [vmem:[%s5 + $0xf8] sm:$0xf]
      %v2720 = vld [vmem:[%s5 + $0xfc] sm:$0xf]
      %v2721 = vld [vmem:[%s5 + $0x100] sm:$0xf]
      %v2722 = vld [vmem:[%s5 + $0x104] sm:$0xf]
      %v2723 = vld [vmem:[%s5 + $0x108] sm:$0xf]
      %v2724 = vld [vmem:[%s5 + $0x10c] sm:$0xf]
      %v2725 = vld [vmem:[%s5 + $0x110] sm:$0xf]
      %v2726 = vld [vmem:[%s5 + $0x114] sm:$0xf]
      %v2727 = vld [vmem:[%s5 + $0x118] sm:$0xf]
      %v2728 = vld [vmem:[%s5 + $0x11c] sm:$0xf]
      %v2729 = vld [vmem:[%s5 + $0x120] sm:$0xf]
      %v2730 = vld [vmem:[%s5 + $0x124] sm:$0xf]
      %v2731 = vld [vmem:[%s5 + $0x128] sm:$0xf]
      %v2732 = vld [vmem:[%s5 + $0x12c] sm:$0xf]
      %v2733 = vld [vmem:[%s5 + $0x130] sm:$0xf]
      %v2734 = vld [vmem:[%s5 + $0x134] sm:$0xf]
      %v2735 = vld [vmem:[%s5 + $0x138] sm:$0xf]
      %v2736 = vld [vmem:[%s5 + $0x13c] sm:$0xf]
      %v2737 = vld [vmem:[%s5 + $0x140] sm:$0xf]
      %v2738 = vld [vmem:[%s5 + $0x144] sm:$0xf]
      %v2739 = vld [vmem:[%s5 + $0x148] sm:$0xf]
      %v2740 = vld [vmem:[%s5 + $0x14c] sm:$0xf]
      %v2741 = vld [vmem:[%s5 + $0x150] sm:$0xf]
      %v2742 = vld [vmem:[%s5 + $0x154] sm:$0xf]
      %v2743 = vld [vmem:[%s5 + $0x158] sm:$0xf]
      %v2744 = vld [vmem:[%s5 + $0x15c] sm:$0xf]
      %v2745 = vld [vmem:[%s5 + $0x160] sm:$0xf]
      %v2746 = vld [vmem:[%s5 + $0x164] sm:$0xf]
      %v2747 = vld [vmem:[%s5 + $0x168] sm:$0xf]
      %v2748 = vld [vmem:[%s5 + $0x16c] sm:$0xf]
      %v2749 = vld [vmem:[%s5 + $0x170] sm:$0xf]
      %v2750 = vld [vmem:[%s5 + $0x174] sm:$0xf]
      %v2751 = vld [vmem:[%s5 + $0x178] sm:$0xf]
      %v2752 = vld [vmem:[%s5 + $0x17c] sm:$0xf]
      %v2753 = vld [vmem:[%s5 + $0x180] sm:$0xf]
      %v2754 = vld [vmem:[%s5 + $0x184] sm:$0xf]
      %v2755 = vld [vmem:[%s5 + $0x188] sm:$0xf]
      %v2756 = vld [vmem:[%s5 + $0x18c] sm:$0xf]
      %v2757 = vld [vmem:[%s5 + $0x190] sm:$0xf]
      %v2758 = vld [vmem:[%s5 + $0x194] sm:$0xf]
      %v2759 = vld [vmem:[%s5 + $0x198] sm:$0xf]
      %v2760 = vld [vmem:[%s5 + $0x19c] sm:$0xf]
      %v2761 = vld [vmem:[%s5 + $0x1a0] sm:$0xf]
      %v2762 = vld [vmem:[%s5 + $0x1a4] sm:$0xf]
      %v2763 = vld [vmem:[%s5 + $0x1a8] sm:$0xf]
      %v2764 = vld [vmem:[%s5 + $0x1ac] sm:$0xf]
      %v2765 = vld [vmem:[%s5 + $0x1b0] sm:$0xf]
      %v2766 = vld [vmem:[%s5 + $0x1b4] sm:$0xf]
      %v2767 = vld [vmem:[%s5 + $0x1b8] sm:$0xf]
      %v2768 = vld [vmem:[%s5 + $0x1bc] sm:$0xf]
      %v2769 = vld [vmem:[%s5 + $0x1c0] sm:$0xf]
      %v2770 = vld [vmem:[%s5 + $0x1c4] sm:$0xf]
      %v2771 = vld [vmem:[%s5 + $0x1c8] sm:$0xf]
      %v2772 = vld [vmem:[%s5 + $0x1cc] sm:$0xf]
      %v2773 = vld [vmem:[%s5 + $0x1d0] sm:$0xf]
      %v2774 = vld [vmem:[%s5 + $0x1d4] sm:$0xf]
      %v2775 = vld [vmem:[%s5 + $0x1d8] sm:$0xf]
      %v2776 = vld [vmem:[%s5 + $0x1dc] sm:$0xf]
      %v2777 = vld [vmem:[%s5 + $0x1e0] sm:$0xf]
      %v2778 = vld [vmem:[%s5 + $0x1e4] sm:$0xf]
      %v2779 = vld [vmem:[%s5 + $0x1e8] sm:$0xf]
      %v2780 = vld [vmem:[%s5 + $0x1ec] sm:$0xf]
      %v2781 = vld [vmem:[%s5 + $0x1f0] sm:$0xf]
      %v2782 = vld [vmem:[%s5 + $0x1f4] sm:$0xf]
      %v2783 = vld [vmem:[%s5 + $0x1f8] sm:$0xf]
      %v2784 = vld [vmem:[%s5 + $0x1fc] sm:$0xf]
      %v2785 = vld [vmem:[%s5 + $0x200] sm:$0xf]
      %v2786 = vld [vmem:[%s5 + $0x204] sm:$0xf]
      %v2787 = vld [vmem:[%s5 + $0x208] sm:$0xf]
      %v2788 = vld [vmem:[%s5 + $0x20c] sm:$0xf]
      %v2789 = vld [vmem:[%s5 + $0x210] sm:$0xf]
      %v2790 = vld [vmem:[%s5 + $0x214] sm:$0xf]
      %v2791 = vld [vmem:[%s5 + $0x218] sm:$0xf]
      %v2792 = vld [vmem:[%s5 + $0x21c] sm:$0xf]
      %v2793 = vld [vmem:[%s5 + $0x220] sm:$0xf]
      %v2794 = vld [vmem:[%s5 + $0x224] sm:$0xf]
      %v2795 = vld [vmem:[%s5 + $0x228] sm:$0xf]
      %v2796 = vld [vmem:[%s5 + $0x22c] sm:$0xf]
      %v2797 = vld [vmem:[%s5 + $0x230] sm:$0xf]
      %v2798 = vld [vmem:[%s5 + $0x234] sm:$0xf]
      %v2799 = vld [vmem:[%s5 + $0x238] sm:$0xf]
      %v2800 = vld [vmem:[%s5 + $0x23c] sm:$0xf]
      %v2801 = vlaneseq
      %v2802 = vshrl.u32 %v2801, 7
      %v2803 = vsub.s32 0, %v2802
      %v2804 = vrot.slane %v2116, %v2803
      %v2949 = vunpack.c.l.b16 %v2657
      %v2950 = vunpack.c.l.b16 %v2658
      %v2951 = vunpack.c.l.b16 %v2659
      %v2952 = vunpack.c.l.b16 %v2660
      %v2953 = vunpack.c.l.b16 %v2661
      %v2954 = vunpack.c.l.b16 %v2662
      %v2955 = vunpack.c.l.b16 %v2663
      %v2956 = vunpack.c.l.b16 %v2664
      %v2957 = vunpack.c.l.b16 %v2665
      %v2958 = vunpack.c.l.b16 %v2666
      %v2959 = vunpack.c.l.b16 %v2667
      %v2960 = vunpack.c.l.b16 %v2668
      %v2961 = vunpack.c.l.b16 %v2669
      %v2962 = vunpack.c.l.b16 %v2670
      %v2963 = vunpack.c.l.b16 %v2671
      %v2964 = vunpack.c.l.b16 %v2672
      %v2965 = vunpack.c.l.b16 %v2673
      %v2966 = vunpack.c.l.b16 %v2674
      %v2967 = vunpack.c.l.b16 %v2675
      %v2968 = vunpack.c.l.b16 %v2676
      %v2969 = vunpack.c.l.b16 %v2677
      %v2970 = vunpack.c.l.b16 %v2678
      %v2971 = vunpack.c.l.b16 %v2679
      %v2972 = vunpack.c.l.b16 %v2680
      %v2973 = vunpack.c.l.b16 %v2681
      %v2974 = vunpack.c.l.b16 %v2682
      %v2975 = vunpack.c.l.b16 %v2683
      %v2976 = vunpack.c.l.b16 %v2684
      %v2977 = vunpack.c.l.b16 %v2685
      %v2978 = vunpack.c.l.b16 %v2686
      %v2979 = vunpack.c.l.b16 %v2687
      %v2980 = vunpack.c.l.b16 %v2688
      %v2981 = vunpack.c.l.b16 %v2689
      %v2982 = vunpack.c.l.b16 %v2690
      %v2983 = vunpack.c.l.b16 %v2691
      %v2984 = vunpack.c.l.b16 %v2692
      %v2985 = vunpack.c.l.b16 %v2693
      %v2986 = vunpack.c.l.b16 %v2694
      %v2987 = vunpack.c.l.b16 %v2695
      %v2988 = vunpack.c.l.b16 %v2696
      %v2989 = vunpack.c.l.b16 %v2697
      %v2990 = vunpack.c.l.b16 %v2698
      %v2991 = vunpack.c.l.b16 %v2699
      %v2992 = vunpack.c.l.b16 %v2700
      %v2993 = vunpack.c.l.b16 %v2701
      %v2994 = vunpack.c.l.b16 %v2702
      %v2995 = vunpack.c.l.b16 %v2703
      %v2996 = vunpack.c.l.b16 %v2704
      %v2997 = vunpack.c.l.b16 %v2705
      %v2998 = vunpack.c.l.b16 %v2706
      %v2999 = vunpack.c.l.b16 %v2707
      %v3000 = vunpack.c.l.b16 %v2708
      %v3001 = vunpack.c.l.b16 %v2709
      %v3002 = vunpack.c.l.b16 %v2710
      %v3003 = vunpack.c.l.b16 %v2711
      %v3004 = vunpack.c.l.b16 %v2712
      %v3005 = vunpack.c.l.b16 %v2713
      %v3006 = vunpack.c.l.b16 %v2714
      %v3007 = vunpack.c.l.b16 %v2715
      %v3008 = vunpack.c.l.b16 %v2716
      %v3009 = vunpack.c.l.b16 %v2717
      %v3010 = vunpack.c.l.b16 %v2718
      %v3011 = vunpack.c.l.b16 %v2719
      %v3012 = vunpack.c.l.b16 %v2720
      %v3013 = vunpack.c.l.b16 %v2721
      %v3014 = vunpack.c.l.b16 %v2722
      %v3015 = vunpack.c.l.b16 %v2723
      %v3016 = vunpack.c.l.b16 %v2724
      %v3017 = vunpack.c.l.b16 %v2725
      %v3018 = vunpack.c.l.b16 %v2726
      %v3019 = vunpack.c.l.b16 %v2727
      %v3020 = vunpack.c.l.b16 %v2728
      %v3021 = vunpack.c.l.b16 %v2729
      %v3022 = vunpack.c.l.b16 %v2730
      %v3023 = vunpack.c.l.b16 %v2731
      %v3024 = vunpack.c.l.b16 %v2732
      %v3025 = vunpack.c.l.b16 %v2733
      %v3026 = vunpack.c.l.b16 %v2734
      %v3027 = vunpack.c.l.b16 %v2735
      %v3028 = vunpack.c.l.b16 %v2736
      %v3029 = vunpack.c.l.b16 %v2737
      %v3030 = vunpack.c.l.b16 %v2738
      %v3031 = vunpack.c.l.b16 %v2739
      %v3032 = vunpack.c.l.b16 %v2740
      %v3033 = vunpack.c.l.b16 %v2741
      %v3034 = vunpack.c.l.b16 %v2742
      %v3035 = vunpack.c.l.b16 %v2743
      %v3036 = vunpack.c.l.b16 %v2744
      %v3037 = vunpack.c.l.b16 %v2745
      %v3038 = vunpack.c.l.b16 %v2746
      %v3039 = vunpack.c.l.b16 %v2747
      %v3040 = vunpack.c.l.b16 %v2748
      %v3041 = vunpack.c.l.b16 %v2749
      %v3042 = vunpack.c.l.b16 %v2750
      %v3043 = vunpack.c.l.b16 %v2751
      %v3044 = vunpack.c.l.b16 %v2752
      %v3045 = vunpack.c.l.b16 %v2753
      %v3046 = vunpack.c.l.b16 %v2754
      %v3047 = vunpack.c.l.b16 %v2755
      %v3048 = vunpack.c.l.b16 %v2756
      %v3049 = vunpack.c.l.b16 %v2757
      %v3050 = vunpack.c.l.b16 %v2758
      %v3051 = vunpack.c.l.b16 %v2759
      %v3052 = vunpack.c.l.b16 %v2760
      %v3053 = vunpack.c.l.b16 %v2761
      %v3054 = vunpack.c.l.b16 %v2762
      %v3055 = vunpack.c.l.b16 %v2763
      %v3056 = vunpack.c.l.b16 %v2764
      %v3057 = vunpack.c.l.b16 %v2765
      %v3058 = vunpack.c.l.b16 %v2766
      %v3059 = vunpack.c.l.b16 %v2767
      %v3060 = vunpack.c.l.b16 %v2768
      %v3061 = vunpack.c.l.b16 %v2769
      %v3062 = vunpack.c.l.b16 %v2770
      %v3063 = vunpack.c.l.b16 %v2771
      %v3064 = vunpack.c.l.b16 %v2772
      %v3065 = vunpack.c.l.b16 %v2773
      %v3066 = vunpack.c.l.b16 %v2774
      %v3067 = vunpack.c.l.b16 %v2775
      %v3068 = vunpack.c.l.b16 %v2776
      %v3069 = vunpack.c.l.b16 %v2777
      %v3070 = vunpack.c.l.b16 %v2778
      %v3071 = vunpack.c.l.b16 %v2779
      %v3072 = vunpack.c.l.b16 %v2780
      %v3073 = vunpack.c.l.b16 %v2781
      %v3074 = vunpack.c.l.b16 %v2782
      %v3075 = vunpack.c.l.b16 %v2783
      %v3076 = vunpack.c.l.b16 %v2784
      %v3077 = vunpack.c.l.b16 %v2785
      %v3078 = vunpack.c.l.b16 %v2786
      %v3079 = vunpack.c.l.b16 %v2787
      %v3080 = vunpack.c.l.b16 %v2788
      %v3081 = vunpack.c.l.b16 %v2789
      %v3082 = vunpack.c.l.b16 %v2790
      %v3083 = vunpack.c.l.b16 %v2791
      %v3084 = vunpack.c.l.b16 %v2792
      %v3085 = vunpack.c.l.b16 %v2793
      %v3086 = vunpack.c.l.b16 %v2794
      %v3087 = vunpack.c.l.b16 %v2795
      %v3088 = vunpack.c.l.b16 %v2796
      %v3089 = vunpack.c.l.b16 %v2797
      %v3090 = vunpack.c.l.b16 %v2798
      %v3091 = vunpack.c.l.b16 %v2799
      %v3092 = vunpack.c.l.b16 %v2800
      %v3093 = vpack.c.b16 %v2950, %v2949
      %v3094 = vpack.c.b16 %v2952, %v2951
      %v3095 = vpack.c.b16 %v2954, %v2953
      %v3096 = vpack.c.b16 %v2956, %v2955
      %v3097 = vpack.c.b16 %v2958, %v2957
      %v3098 = vpack.c.b16 %v2960, %v2959
      %v3099 = vpack.c.b16 %v2962, %v2961
      %v3100 = vpack.c.b16 %v2964, %v2963
      %v3101 = vpack.c.b16 %v2966, %v2965
      %v3102 = vpack.c.b16 %v2968, %v2967
      %v3103 = vpack.c.b16 %v2970, %v2969
      %v3104 = vpack.c.b16 %v2972, %v2971
      %v3105 = vpack.c.b16 %v2974, %v2973
      %v3106 = vpack.c.b16 %v2976, %v2975
      %v3107 = vpack.c.b16 %v2978, %v2977
      %v3108 = vpack.c.b16 %v2980, %v2979
      %v3109 = vpack.c.b16 %v2982, %v2981
      %v3110 = vpack.c.b16 %v2984, %v2983
      %v3111 = vpack.c.b16 %v2986, %v2985
      %v3112 = vpack.c.b16 %v2988, %v2987
      %v3113 = vpack.c.b16 %v2990, %v2989
      %v3114 = vpack.c.b16 %v2992, %v2991
      %v3115 = vpack.c.b16 %v2994, %v2993
      %v3116 = vpack.c.b16 %v2996, %v2995
      %v3117 = vpack.c.b16 %v2998, %v2997
      %v3118 = vpack.c.b16 %v3000, %v2999
      %v3119 = vpack.c.b16 %v3002, %v3001
      %v3120 = vpack.c.b16 %v3004, %v3003
      %v3121 = vpack.c.b16 %v3006, %v3005
      %v3122 = vpack.c.b16 %v3008, %v3007
      %v3123 = vpack.c.b16 %v3010, %v3009
      %v3124 = vpack.c.b16 %v3012, %v3011
      %v3125 = vpack.c.b16 %v3014, %v3013
      %v3126 = vpack.c.b16 %v3016, %v3015
      %v3127 = vpack.c.b16 %v3018, %v3017
      %v3128 = vpack.c.b16 %v3020, %v3019
      %v3129 = vpack.c.b16 %v3022, %v3021
      %v3130 = vpack.c.b16 %v3024, %v3023
      %v3131 = vpack.c.b16 %v3026, %v3025
      %v3132 = vpack.c.b16 %v3028, %v3027
      %v3133 = vpack.c.b16 %v3030, %v3029
      %v3134 = vpack.c.b16 %v3032, %v3031
      %v3135 = vpack.c.b16 %v3034, %v3033
      %v3136 = vpack.c.b16 %v3036, %v3035
      %v3137 = vpack.c.b16 %v3038, %v3037
      %v3138 = vpack.c.b16 %v3040, %v3039
      %v3139 = vpack.c.b16 %v3042, %v3041
      %v3140 = vpack.c.b16 %v3044, %v3043
      %v3141 = vpack.c.b16 %v3046, %v3045
      %v3142 = vpack.c.b16 %v3048, %v3047
      %v3143 = vpack.c.b16 %v3050, %v3049
      %v3144 = vpack.c.b16 %v3052, %v3051
      %v3145 = vpack.c.b16 %v3054, %v3053
      %v3146 = vpack.c.b16 %v3056, %v3055
      %v3147 = vpack.c.b16 %v3058, %v3057
      %v3148 = vpack.c.b16 %v3060, %v3059
      %v3149 = vpack.c.b16 %v3062, %v3061
      %v3150 = vpack.c.b16 %v3064, %v3063
      %v3151 = vpack.c.b16 %v3066, %v3065
      %v3152 = vpack.c.b16 %v3068, %v3067
      %v3153 = vpack.c.b16 %v3070, %v3069
      %v3154 = vpack.c.b16 %v3072, %v3071
      %v3155 = vpack.c.b16 %v3074, %v3073
      %v3156 = vpack.c.b16 %v3076, %v3075
      %v3157 = vpack.c.b16 %v3078, %v3077
      %v3158 = vpack.c.b16 %v3080, %v3079
      %v3159 = vpack.c.b16 %v3082, %v3081
      %v3160 = vpack.c.b16 %v3084, %v3083
      %v3161 = vpack.c.b16 %v3086, %v3085
      %v3162 = vpack.c.b16 %v3088, %v3087
      %v3163 = vpack.c.b16 %v3090, %v3089
      %v3164 = vpack.c.b16 %v3092, %v3091
      %3237 = vmatprep.subr.bf16.mxu0 0
      %3238 = vmatpush1.bf16.msra.mxu0 %v3093
      %3239 = vmatprep.subr.bf16.mxu0 0
      %3240 = vmatpush1.bf16.msra.mxu0 %v3094
      %3241 = vmatprep.subr.bf16.mxu0 0
      %3242 = vmatpush1.bf16.msra.mxu0 %v3095
      %3243 = vmatprep.subr.bf16.mxu0 0
      %3244 = vmatpush1.bf16.msra.mxu0 %v3096
      %3245 = vmatprep.subr.bf16.mxu0 0
      %3246 = vmatpush1.bf16.msra.mxu0 %v3097
      %3247 = vmatprep.subr.bf16.mxu0 0
      %3248 = vmatpush1.bf16.msra.mxu0 %v3098
      %3249 = vmatprep.subr.bf16.mxu0 0
      %3250 = vmatpush1.bf16.msra.mxu0 %v3099
      %3251 = vmatprep.subr.bf16.mxu0 0
      %3252 = vmatpush1.bf16.msra.mxu0 %v3100
      %3253 = vmatprep.subr.bf16.mxu0 0
      %3254 = vmatpush1.bf16.msra.mxu0 %v3101
      %3255 = vmatprep.subr.bf16.mxu0 0
      %3256 = vmatpush1.bf16.msra.mxu0 %v3102
      %3257 = vmatprep.subr.bf16.mxu0 0
      %3258 = vmatpush1.bf16.msra.mxu0 %v3103
      %3259 = vmatprep.subr.bf16.mxu0 0
      %3260 = vmatpush1.bf16.msra.mxu0 %v3104
      %3261 = vmatprep.subr.bf16.mxu0 0
      %3262 = vmatpush1.bf16.msra.mxu0 %v3105
      %3263 = vmatprep.subr.bf16.mxu0 0
      %3264 = vmatpush1.bf16.msra.mxu0 %v3106
      %3265 = vmatprep.subr.bf16.mxu0 0
      %3266 = vmatpush1.bf16.msra.mxu0 %v3107
      %3267 = vmatprep.subr.bf16.mxu0 0
      %3268 = vmatpush1.bf16.msra.mxu0 %v3108
      %3269 = vmatprep.mubr.bf16.mxu0 %v2622
      %3270 = vmatmul.mubr.bf16.gmra.mrb[0].mxu0 %v2621
      %v3271 = vpop.f32.mrb[0].mxu0
      %v3272 = vadd.f32 %v2804, %v3271
      %v3273 = vpop.f32.mrb[0].mxu0
      %v3274 = vpop.f32.mrb[0].mxu0
      %v3275 = vadd.f32 %v2804, %v3274
      %v3276 = vpop.f32.mrb[0].mxu0
      %3277 = vmatprep.mubr.bf16.mxu0 %v2631
      %3278 = vmatmul.mubr.bf16.gmra.mrb[0].mxu0 %v2630
      %v3279 = vpop.f32.mrb[0].mxu0
      %v3280 = vadd.f32 %v2804, %v3279
      %v3281 = vpop.f32.mrb[0].mxu0
      %v3282 = vpop.f32.mrb[0].mxu0
      %v3283 = vadd.f32 %v2804, %v3282
      %v3284 = vpop.f32.mrb[0].mxu0
      %3285 = vmatprep.mubr.bf16.mxu0 %v2640
      %3286 = vmatmul.mubr.bf16.gmra.mrb[0].mxu0 %v2639
      %v3287 = vpop.f32.mrb[0].mxu0
      %v3288 = vadd.f32 %v2804, %v3287
      %v3289 = vpop.f32.mrb[0].mxu0
      %v3290 = vpop.f32.mrb[0].mxu0
      %v3291 = vadd.f32 %v2804, %v3290
      %v3292 = vpop.f32.mrb[0].mxu0
      %3293 = vmatprep.mubr.bf16.mxu0 %v2649
      %3294 = vmatmul.mubr.bf16.gmra.mrb[0].mxu0 %v2648
      %v3295 = vpop.f32.mrb[0].mxu0
      %v3296 = vadd.f32 %v2804, %v3295
      %v3297 = vpop.f32.mrb[0].mxu0
      %v3298 = vpop.f32.mrb[0].mxu0
      %v3299 = vadd.f32 %v2804, %v3298
      %v3300 = vpop.f32.mrb[0].mxu0
      %3301 = vdwg.mxu0
      %3302 = vmatprep.subr.bf16.mxu0 0
      %3303 = vmatpush1.bf16.msra.mxu0 %v3109
      %3304 = vmatprep.subr.bf16.mxu0 0
      %3305 = vmatpush1.bf16.msra.mxu0 %v3110
      %3306 = vmatprep.subr.bf16.mxu0 0
      %3307 = vmatpush1.bf16.msra.mxu0 %v3111
      %3308 = vmatprep.subr.bf16.mxu0 0
      %3309 = vmatpush1.bf16.msra.mxu0 %v3112
      %3310 = vmatprep.subr.bf16.mxu0 0
      %3311 = vmatpush1.bf16.msra.mxu0 %v3113
      %3312 = vmatprep.subr.bf16.mxu0 0
      %3313 = vmatpush1.bf16.msra.mxu0 %v3114
      %3314 = vmatprep.subr.bf16.mxu0 0
      %3315 = vmatpush1.bf16.msra.mxu0 %v3115
      %3316 = vmatprep.subr.bf16.mxu0 0
      %3317 = vmatpush1.bf16.msra.mxu0 %v3116
      %3318 = vmatprep.subr.bf16.mxu0 0
      %3319 = vmatpush1.bf16.msra.mxu0 %v3117
      %3320 = vmatprep.subr.bf16.mxu0 0
      %3321 = vmatpush1.bf16.msra.mxu0 %v3118
      %3322 = vmatprep.subr.bf16.mxu0 0
      %3323 = vmatpush1.bf16.msra.mxu0 %v3119
      %3324 = vmatprep.subr.bf16.mxu0 0
      %3325 = vmatpush1.bf16.msra.mxu0 %v3120
      %3326 = vmatprep.subr.bf16.mxu0 0
      %3327 = vmatpush1.bf16.msra.mxu0 %v3121
      %3328 = vmatprep.subr.bf16.mxu0 0
      %3329 = vmatpush1.bf16.msra.mxu0 %v3122
      %3330 = vmatprep.subr.bf16.mxu0 0
      %3331 = vmatpush1.bf16.msra.mxu0 %v3123
      %3332 = vmatprep.subr.bf16.mxu0 0
      %3333 = vmatpush1.bf16.msra.mxu0 %v3124
      %3334 = vmatprep.mubr.bf16.mxu0 %v2624
      %3335 = vmatmul.mubr.bf16.gmra.mrb[0].mxu0 %v2623
      %v3336 = vpop.f32.mrb[0].mxu0
      %v3337 = vadd.f32 %v3272, %v3336
      %v3338 = vpop.f32.mrb[0].mxu0
      %v3339 = vpop.f32.mrb[0].mxu0
      %v3340 = vadd.f32 %v3275, %v3339
      %v3341 = vpop.f32.mrb[0].mxu0
      %3342 = vmatprep.mubr.bf16.mxu0 %v2633
      %3343 = vmatmul.mubr.bf16.gmra.mrb[0].mxu0 %v2632
      %v3344 = vpop.f32.mrb[0].mxu0
      %v3345 = vadd.f32 %v3280, %v3344
      %v3346 = vpop.f32.mrb[0].mxu0
      %v3347 = vpop.f32.mrb[0].mxu0
      %v3348 = vadd.f32 %v3283, %v3347
      %v3349 = vpop.f32.mrb[0].mxu0
      %3350 = vmatprep.mubr.bf16.mxu0 %v2642
      %3351 = vmatmul.mubr.bf16.gmra.mrb[0].mxu0 %v2641
      %v3352 = vpop.f32.mrb[0].mxu0
      %v3353 = vadd.f32 %v3288, %v3352
      %v3354 = vpop.f32.mrb[0].mxu0
      %v3355 = vpop.f32.mrb[0].mxu0
      %v3356 = vadd.f32 %v3291, %v3355
      %v3357 = vpop.f32.mrb[0].mxu0
      %3358 = vmatprep.mubr.bf16.mxu0 %v2651
      %3359 = vmatmul.mubr.bf16.gmra.mrb[0].mxu0 %v2650
      %v3360 = vpop.f32.mrb[0].mxu0
      %v3361 = vadd.f32 %v3296, %v3360
      %v3362 = vpop.f32.mrb[0].mxu0
      %v3363 = vpop.f32.mrb[0].mxu0
      %v3364 = vadd.f32 %v3299, %v3363
      %v3365 = vpop.f32.mrb[0].mxu0
      %3366 = vdwg.mxu0
      %3367 = vmatprep.subr.bf16.mxu0 0
      %3368 = vmatpush1.bf16.msra.mxu0 %v3125
      %3369 = vmatprep.subr.bf16.mxu0 0
      %3370 = vmatpush1.bf16.msra.mxu0 %v3126
      %3371 = vmatprep.subr.bf16.mxu0 0
      %3372 = vmatpush1.bf16.msra.mxu0 %v3127
      %3373 = vmatprep.subr.bf16.mxu0 0
      %3374 = vmatpush1.bf16.msra.mxu0 %v3128
      %3375 = vmatprep.subr.bf16.mxu0 0
      %3376 = vmatpush1.bf16.msra.mxu0 %v3129
      %3377 = vmatprep.subr.bf16.mxu0 0
      %3378 = vmatpush1.bf16.msra.mxu0 %v3130
      %3379 = vmatprep.subr.bf16.mxu0 0
      %3380 = vmatpush1.bf16.msra.mxu0 %v3131
      %3381 = vmatprep.subr.bf16.mxu0 0
      %3382 = vmatpush1.bf16.msra.mxu0 %v3132
      %3383 = vmatprep.subr.bf16.mxu0 0
      %3384 = vmatpush1.bf16.msra.mxu0 %v3133
      %3385 = vmatprep.subr.bf16.mxu0 0
      %3386 = vmatpush1.bf16.msra.mxu0 %v3134
      %3387 = vmatprep.subr.bf16.mxu0 0
      %3388 = vmatpush1.bf16.msra.mxu0 %v3135
      %3389 = vmatprep.subr.bf16.mxu0 0
      %3390 = vmatpush1.bf16.msra.mxu0 %v3136
      %3391 = vmatprep.subr.bf16.mxu0 0
      %3392 = vmatpush1.bf16.msra.mxu0 %v3137
      %3393 = vmatprep.subr.bf16.mxu0 0
      %3394 = vmatpush1.bf16.msra.mxu0 %v3138
      %3395 = vmatprep.subr.bf16.mxu0 0
      %3396 = vmatpush1.bf16.msra.mxu0 %v3139
      %3397 = vmatprep.subr.bf16.mxu0 0
      %3398 = vmatpush1.bf16.msra.mxu0 %v3140
      %3399 = vmatprep.mubr.bf16.mxu0 %v2626
      %3400 = vmatmul.mubr.bf16.gmra.mrb[0].mxu0 %v2625
      %v3401 = vpop.f32.mrb[0].mxu0
      %v3402 = vadd.f32 %v3337, %v3401
      %v3403 = vpop.f32.mrb[0].mxu0
      %v3404 = vpop.f32.mrb[0].mxu0
      %v3405 = vadd.f32 %v3340, %v3404
      %v3406 = vpop.f32.mrb[0].mxu0
      %3407 = vmatprep.mubr.bf16.mxu0 %v2635
      %3408 = vmatmul.mubr.bf16.gmra.mrb[0].mxu0 %v2634
      %v3409 = vpop.f32.mrb[0].mxu0
      %v3410 = vadd.f32 %v3345, %v3409
      %v3411 = vpop.f32.mrb[0].mxu0
      %v3412 = vpop.f32.mrb[0].mxu0
      %v3413 = vadd.f32 %v3348, %v3412
      %v3414 = vpop.f32.mrb[0].mxu0
      %3415 = vmatprep.mubr.bf16.mxu0 %v2644
      %3416 = vmatmul.mubr.bf16.gmra.mrb[0].mxu0 %v2643
      %v3417 = vpop.f32.mrb[0].mxu0
      %v3418 = vadd.f32 %v3353, %v3417
      %v3419 = vpop.f32.mrb[0].mxu0
      %v3420 = vpop.f32.mrb[0].mxu0
      %v3421 = vadd.f32 %v3356, %v3420
      %v3422 = vpop.f32.mrb[0].mxu0
      %3423 = vmatprep.mubr.bf16.mxu0 %v2653
      %3424 = vmatmul.mubr.bf16.gmra.mrb[0].mxu0 %v2652
      %v3425 = vpop.f32.mrb[0].mxu0
      %v3426 = vadd.f32 %v3361, %v3425
      %v3427 = vpop.f32.mrb[0].mxu0
      %v3428 = vpop.f32.mrb[0].mxu0
      %v3429 = vadd.f32 %v3364, %v3428
      %v3430 = vpop.f32.mrb[0].mxu0
      %3431 = vdwg.mxu0
      %3432 = vmatprep.subr.bf16.mxu0 0
      %3433 = vmatpush1.bf16.msra.mxu0 %v3141
      %3434 = vmatprep.subr.bf16.mxu0 0
      %3435 = vmatpush1.bf16.msra.mxu0 %v3142
      %3436 = vmatprep.subr.bf16.mxu0 0
      %3437 = vmatpush1.bf16.msra.mxu0 %v3143
      %3438 = vmatprep.subr.bf16.mxu0 0
      %3439 = vmatpush1.bf16.msra.mxu0 %v3144
      %3440 = vmatprep.subr.bf16.mxu0 0
      %3441 = vmatpush1.bf16.msra.mxu0 %v3145
      %3442 = vmatprep.subr.bf16.mxu0 0
      %3443 = vmatpush1.bf16.msra.mxu0 %v3146
      %3444 = vmatprep.subr.bf16.mxu0 0
      %3445 = vmatpush1.bf16.msra.mxu0 %v3147
      %3446 = vmatprep.subr.bf16.mxu0 0
      %3447 = vmatpush1.bf16.msra.mxu0 %v3148
      %3448 = vmatprep.subr.bf16.mxu0 0
      %3449 = vmatpush1.bf16.msra.mxu0 %v3149
      %3450 = vmatprep.subr.bf16.mxu0 0
      %3451 = vmatpush1.bf16.msra.mxu0 %v3150
      %3452 = vmatprep.subr.bf16.mxu0 0
      %3453 = vmatpush1.bf16.msra.mxu0 %v3151
      %3454 = vmatprep.subr.bf16.mxu0 0
      %3455 = vmatpush1.bf16.msra.mxu0 %v3152
      %3456 = vmatprep.subr.bf16.mxu0 0
      %3457 = vmatpush1.bf16.msra.mxu0 %v3153
      %3458 = vmatprep.subr.bf16.mxu0 0
      %3459 = vmatpush1.bf16.msra.mxu0 %v3154
      %3460 = vmatprep.subr.bf16.mxu0 0
      %3461 = vmatpush1.bf16.msra.mxu0 %v3155
      %3462 = vmatprep.subr.bf16.mxu0 0
      %3463 = vmatpush1.bf16.msra.mxu0 %v3156
      %3464 = vmatprep.mubr.bf16.mxu0 %v2628
      %3465 = vmatmul.mubr.bf16.gmra.mrb[0].mxu0 %v2627
      %v3466 = vpop.f32.mrb[0].mxu0
      %v3467 = vadd.f32 %v3402, %v3466
      %v3468 = vpop.f32.mrb[0].mxu0
      %v3469 = vpop.f32.mrb[0].mxu0
      %v3470 = vadd.f32 %v3405, %v3469
      %v3471 = vpop.f32.mrb[0].mxu0
      %3472 = vmatprep.mubr.bf16.mxu0 %v2637
      %3473 = vmatmul.mubr.bf16.gmra.mrb[0].mxu0 %v2636
      %v3474 = vpop.f32.mrb[0].mxu0
      %v3475 = vadd.f32 %v3410, %v3474
      %v3476 = vpop.f32.mrb[0].mxu0
      %v3477 = vpop.f32.mrb[0].mxu0
      %v3478 = vadd.f32 %v3413, %v3477
      %v3479 = vpop.f32.mrb[0].mxu0
      %3480 = vmatprep.mubr.bf16.mxu0 %v2646
      %3481 = vmatmul.mubr.bf16.gmra.mrb[0].mxu0 %v2645
      %v3482 = vpop.f32.mrb[0].mxu0
      %v3483 = vadd.f32 %v3418, %v3482
      %v3484 = vpop.f32.mrb[0].mxu0
      %v3485 = vpop.f32.mrb[0].mxu0
      %v3486 = vadd.f32 %v3421, %v3485
      %v3487 = vpop.f32.mrb[0].mxu0
      %3488 = vmatprep.mubr.bf16.mxu0 %v2655
      %3489 = vmatmul.mubr.bf16.gmra.mrb[0].mxu0 %v2654
      %v3490 = vpop.f32.mrb[0].mxu0
      %v3491 = vadd.f32 %v3426, %v3490
      %v3492 = vpop.f32.mrb[0].mxu0
      %v3493 = vpop.f32.mrb[0].mxu0
      %v3494 = vadd.f32 %v3429, %v3493
      %v3495 = vpop.f32.mrb[0].mxu0
      %3496 = vdwg.mxu0
      %3497 = vmatprep.subr.bf16.mxu0 0
      %3498 = vmatpush1.bf16.msra.mxu0 %v3157
      %3499 = vmatprep.subr.bf16.mxu0 0
      %3500 = vmatpush1.bf16.msra.mxu0 %v3158
      %3501 = vmatprep.subr.bf16.mxu0 0
      %3502 = vmatpush1.bf16.msra.mxu0 %v3159
      %3503 = vmatprep.subr.bf16.mxu0 0
      %3504 = vmatpush1.bf16.msra.mxu0 %v3160
      %3505 = vmatprep.subr.bf16.mxu0 0
      %3506 = vmatpush1.bf16.msra.mxu0 %v3161
      %3507 = vmatprep.subr.bf16.mxu0 0
      %3508 = vmatpush1.bf16.msra.mxu0 %v3162
      %3509 = vmatprep.subr.bf16.mxu0 0
      %3510 = vmatpush1.bf16.msra.mxu0 %v3163
      %3511 = vmatprep.subr.bf16.mxu0 0
      %3512 = vmatpush1.bf16.msra.mxu0 %v3164
      %3513 = vmatprep.subr.bf16.mxu0 0
      %3514 = vmatpush1.bf16.msra.mxu0 0
      %3515 = vmatprep.subr.bf16.mxu0 0
      %3516 = vmatpush1.bf16.msra.mxu0 0
      %3517 = vmatprep.subr.bf16.mxu0 0
      %3518 = vmatpush1.bf16.msra.mxu0 0
      %3519 = vmatprep.subr.bf16.mxu0 0
      %3520 = vmatpush1.bf16.msra.mxu0 0
      %3521 = vmatprep.subr.bf16.mxu0 0
      %3522 = vmatpush1.bf16.msra.mxu0 0
      %3523 = vmatprep.subr.bf16.mxu0 0
      %3524 = vmatpush1.bf16.msra.mxu0 0
      %3525 = vmatprep.subr.bf16.mxu0 0
      %3526 = vmatpush1.bf16.msra.mxu0 0
      %3527 = vmatprep.subr.bf16.mxu0 0
      %3528 = vmatpush1.bf16.msra.mxu0 0
      %3529 = vmatprep.mubr.bf16.mxu0 0
      %3530 = vmatmul.mubr.bf16.gmra.mrb[0].mxu0 %v2629
      %v3531 = vpop.f32.mrb[0].mxu0
      %v3532 = vadd.f32 %v3467, %v3531
      %v3533 = vpop.f32.mrb[0].mxu0
      %v3534 = vpop.f32.mrb[0].mxu0
      %v3535 = vadd.f32 %v3470, %v3534
      %v3536 = vpop.f32.mrb[0].mxu0
      %3537 = vmatprep.mubr.bf16.mxu0 0
      %3538 = vmatmul.mubr.bf16.gmra.mrb[0].mxu0 %v2638
      %v3539 = vpop.f32.mrb[0].mxu0
      %v3540 = vadd.f32 %v3475, %v3539
      %v3541 = vpop.f32.mrb[0].mxu0
      %v3542 = vpop.f32.mrb[0].mxu0
      %v3543 = vadd.f32 %v3478, %v3542
      %v3544 = vpop.f32.mrb[0].mxu0
      %3545 = vmatprep.mubr.bf16.mxu0 0
      %3546 = vmatmul.mubr.bf16.gmra.mrb[0].mxu0 %v2647
      %v3547 = vpop.f32.mrb[0].mxu0
      %v3548 = vadd.f32 %v3483, %v3547
      %v3549 = vpop.f32.mrb[0].mxu0
      %v3550 = vpop.f32.mrb[0].mxu0
      %v3551 = vadd.f32 %v3486, %v3550
      %v3552 = vpop.f32.mrb[0].mxu0
      %3553 = vmatprep.mubr.bf16.mxu0 0
      %3554 = vmatmul.mubr.bf16.gmra.mrb[0].mxu0 %v2656
      %v3555 = vpop.f32.mrb[0].mxu0
      %v3556 = vadd.f32 %v3491, %v3555
      %v3557 = vpop.f32.mrb[0].mxu0
      %v3558 = vpop.f32.mrb[0].mxu0
      %v3559 = vadd.f32 %v3494, %v3558
      %v3560 = vpop.f32.mrb[0].mxu0
      %3561 = vdwg.mxu0
      %v3562 = vld [vmem:[%s9 + $0x2] sm:$0x1]
      %v3563 = vld [vmem:[%s10 + $0x2] sm:$0x1]
      %v3564 = vlaneseq
      %v3565 = vshrl.u32 %v3564, 7
      %v3566 = vsub.s32 0, %v3565
      %v3567 = vrot.slane %v3562, %v3566
      %v3568 = vmul.f32 %v3532, %v3567
      %v3569 = vmul.f32 %v3535, %v3567
      %v3570 = vmul.f32 %v3540, %v3567
      %v3571 = vmul.f32 %v3543, %v3567
      %v3572 = vmul.f32 %v3548, %v3567
      %v3573 = vmul.f32 %v3551, %v3567
      %v3574 = vmul.f32 %v3556, %v3567
      %v3575 = vmul.f32 %v3559, %v3567
      %v3576 = vlaneseq
      %v3577 = vshrl.u32 %v3576, 7
      %v3578 = vsub.s32 0, %v3577
      %v3579 = vrot.slane %v3563, %v3578
      %v3580 = vadd.f32 %v3568, %v3579
      %v3581 = vadd.f32 %v3569, %v3579
      %v3582 = vadd.f32 %v3570, %v3579
      %v3583 = vadd.f32 %v3571, %v3579
      %v3584 = vadd.f32 %v3572, %v3579
      %v3585 = vadd.f32 %v3573, %v3579
      %v3586 = vadd.f32 %v3574, %v3579
      %v3587 = vadd.f32 %v3575, %v3579
      %v3588 = vmax.f32 %v3580, 0.0
      %v3589 = vmax.f32 %v3581, 0.0
      %v3590 = vmax.f32 %v3582, 0.0
      %v3591 = vmax.f32 %v3583, 0.0
      %v3592 = vmax.f32 %v3584, 0.0
      %v3593 = vmax.f32 %v3585, 0.0
      %v3594 = vmax.f32 %v3586, 0.0
      %v3595 = vmax.f32 %v3587, 0.0
      %v3596 = vld [vmem:[%s7 + $0x4] sm:$0x1]
      %v3597 = vrot.slane %v3588, 7
      %v3598 = vrot.slane %v3589, 7
      %v3599 = vrot.slane %v3590, 7
      %v3600 = vrot.slane %v3591, 7
      %v3601 = vrot.slane %v3592, 7
      %v3602 = vrot.slane %v3593, 7
      %v3603 = vrot.slane %v3594, 7
      %v3604 = vrot.slane %v3595, 7
      %v3605 = vsel %vm540, %v3603, %v3604
      %v3606 = vsel %vm540, %v3602, %v3603
      %v3607 = vsel %vm540, %v3601, %v3602
      %v3608 = vsel %vm540, %v3600, %v3601
      %v3609 = vsel %vm540, %v3599, %v3600
      %v3610 = vsel %vm540, %v3598, %v3599
      %v3611 = vsel %vm540, %v3597, %v3598
      %v3612 = vsel %vm540, %v3604, %v3597
      %v3613 = vld [vmem:[%s1] sm:$0xff]
      %v3614 = vld [vmem:[%s1 + $0x8] sm:$0xff]
      %v3615 = vld [vmem:[%s1 + $0x10] sm:$0xff]
      %v3616 = vld [vmem:[%s1 + $0x18] sm:$0xff]
      %v3617 = vld [vmem:[%s1 + $0x20] sm:$0xff]
      %v3618 = vld [vmem:[%s1 + $0x28] sm:$0xff]
      %v3619 = vld [vmem:[%s1 + $0x30] sm:$0xff]
      %v3620 = vld [vmem:[%s1 + $0x38] sm:$0xff]
      %3622 = vset.pattern.permute.xlu0 0
      %3623 = vperm.xlu0 %3622, %v3613
      %v3624 = vpop.permute.xlu0 %3623
      %3627 = vset.pattern.permute.xlu0 0
      %3628 = vperm.xlu0 %3627, %v3614
      %v3629 = vpop.permute.xlu0 %3628
      %3632 = vset.pattern.permute.xlu0 0
      %3633 = vperm.xlu0 %3632, %v3615
      %v3634 = vpop.permute.xlu0 %3633
      %3637 = vset.pattern.permute.xlu0 0
      %3638 = vperm.xlu0 %3637, %v3616
      %v3639 = vpop.permute.xlu0 %3638
      %3642 = vset.pattern.permute.xlu0 0
      %3643 = vperm.xlu0 %3642, %v3617
      %v3644 = vpop.permute.xlu0 %3643
      %3647 = vset.pattern.permute.xlu0 0
      %3648 = vperm.xlu0 %3647, %v3618
      %v3649 = vpop.permute.xlu0 %3648
      %3652 = vset.pattern.permute.xlu0 0
      %3653 = vperm.xlu0 %3652, %v3619
      %v3654 = vpop.permute.xlu0 %3653
      %3657 = vset.pattern.permute.xlu0 0
      %3658 = vperm.xlu0 %3657, %v3620
      %v3659 = vpop.permute.xlu0 %3658
      %v3661 = vmul.f32 %v3605, %v3624
      %v3662 = vmul.f32 %v3612, %v3629
      %v3663 = vmul.f32 %v3611, %v3634
      %v3664 = vmul.f32 %v3610, %v3639
      %v3665 = vmul.f32 %v3609, %v3644
      %v3666 = vmul.f32 %v3608, %v3649
      %v3667 = vmul.f32 %v3607, %v3654
      %v3668 = vmul.f32 %v3606, %v3659
      %v3669 = vpack.c.bf16 %v3662, %v3661
      %v3670 = vpack.c.bf16 %v3664, %v3663
      %v3671 = vpack.c.bf16 %v3666, %v3665
      %v3672 = vpack.c.bf16 %v3668, %v3667
      %3673 = vst [vmem:[#allocation2] sm:$0xff] %v3669
      %3674 = vst [vmem:[#allocation2 + $0x48] sm:$0xff] %v3670
      %3675 = vst [vmem:[#allocation2 + $0x90] sm:$0xff] %v3671
      %3676 = vst [vmem:[#allocation2 + $0xd8] sm:$0xff] %v3672
      %v3677 = vld [vmem:[%s702] sm:$0xff]
      %v3678 = vld [vmem:[%s702 + $0x8] sm:$0xff]
      %v3679 = vld [vmem:[%s702 + $0x10] sm:$0xff]
      %v3680 = vld [vmem:[%s702 + $0x18] sm:$0xff]
      %v3681 = vld [vmem:[%s702 + $0x20] sm:$0xff]
      %v3682 = vld [vmem:[%s702 + $0x28] sm:$0xff]
      %v3683 = vld [vmem:[%s702 + $0x30] sm:$0xff]
      %v3684 = vld [vmem:[%s702 + $0x38] sm:$0xff]
      %3686 = vset.pattern.permute.xlu0 0
      %3687 = vperm.xlu0 %3686, %v3677
      %v3688 = vpop.permute.xlu0 %3687
      %3691 = vset.pattern.permute.xlu0 0
      %3692 = vperm.xlu0 %3691, %v3678
      %v3693 = vpop.permute.xlu0 %3692
      %3696 = vset.pattern.permute.xlu0 0
      %3697 = vperm.xlu0 %3696, %v3679
      %v3698 = vpop.permute.xlu0 %3697
      %3701 = vset.pattern.permute.xlu0 0
      %3702 = vperm.xlu0 %3701, %v3680
      %v3703 = vpop.permute.xlu0 %3702
      %3706 = vset.pattern.permute.xlu0 0
      %3707 = vperm.xlu0 %3706, %v3681
      %v3708 = vpop.permute.xlu0 %3707
      %3711 = vset.pattern.permute.xlu0 0
      %3712 = vperm.xlu0 %3711, %v3682
      %v3713 = vpop.permute.xlu0 %3712
      %3716 = vset.pattern.permute.xlu0 0
      %3717 = vperm.xlu0 %3716, %v3683
      %v3718 = vpop.permute.xlu0 %3717
      %3721 = vset.pattern.permute.xlu0 0
      %3722 = vperm.xlu0 %3721, %v3684
      %v3723 = vpop.permute.xlu0 %3722
      %v3725 = vmul.f32 %v3595, %v3688
      %v3726 = vmul.f32 %v3588, %v3693
      %v3727 = vmul.f32 %v3589, %v3698
      %v3728 = vmul.f32 %v3590, %v3703
      %v3729 = vmul.f32 %v3591, %v3708
      %v3730 = vmul.f32 %v3592, %v3713
      %v3731 = vmul.f32 %v3593, %v3718
      %v3732 = vmul.f32 %v3594, %v3723
      %v3733 = vpack.c.bf16 %v3726, %v3725
      %v3734 = vpack.c.bf16 %v3728, %v3727
      %v3735 = vpack.c.bf16 %v3730, %v3729
      %v3736 = vpack.c.bf16 %v3732, %v3731
      %3737 = vst [vmem:[#allocation2 + $0x8] sm:$0xff] %v3733
      %3738 = vst [vmem:[#allocation2 + $0x50] sm:$0xff] %v3734
      %3739 = vst [vmem:[#allocation2 + $0x98] sm:$0xff] %v3735
      %3740 = vst [vmem:[#allocation2 + $0xe0] sm:$0xff] %v3736
      %v3741 = vrot.slane %v3588, 1
      %v3742 = vrot.slane %v3589, 1
      %v3743 = vrot.slane %v3590, 1
      %v3744 = vrot.slane %v3591, 1
      %v3745 = vrot.slane %v3592, 1
      %v3746 = vrot.slane %v3593, 1
      %v3747 = vrot.slane %v3594, 1
      %v3748 = vrot.slane %v3595, 1
      %v3749 = vsel %vm865, %v3747, %v3748
      %v3750 = vsel %vm865, %v3746, %v3747
      %v3751 = vsel %vm865, %v3745, %v3746
      %v3752 = vsel %vm865, %v3744, %v3745
      %v3753 = vsel %vm865, %v3743, %v3744
      %v3754 = vsel %vm865, %v3742, %v3743
      %v3755 = vsel %vm865, %v3741, %v3742
      %v3756 = vsel %vm865, %v3748, %v3741
      %v3757 = vld [vmem:[%s874] sm:$0xff]
      %v3758 = vld [vmem:[%s874 + $0x8] sm:$0xff]
      %v3759 = vld [vmem:[%s874 + $0x10] sm:$0xff]
      %v3760 = vld [vmem:[%s874 + $0x18] sm:$0xff]
      %v3761 = vld [vmem:[%s874 + $0x20] sm:$0xff]
      %v3762 = vld [vmem:[%s874 + $0x28] sm:$0xff]
      %v3763 = vld [vmem:[%s874 + $0x30] sm:$0xff]
      %v3764 = vld [vmem:[%s874 + $0x38] sm:$0xff]
      %3766 = vset.pattern.permute.xlu0 0
      %3767 = vperm.xlu0 %3766, %v3757
      %v3768 = vpop.permute.xlu0 %3767
      %3771 = vset.pattern.permute.xlu0 0
      %3772 = vperm.xlu0 %3771, %v3758
      %v3773 = vpop.permute.xlu0 %3772
      %3776 = vset.pattern.permute.xlu0 0
      %3777 = vperm.xlu0 %3776, %v3759
      %v3778 = vpop.permute.xlu0 %3777
      %3781 = vset.pattern.permute.xlu0 0
      %3782 = vperm.xlu0 %3781, %v3760
      %v3783 = vpop.permute.xlu0 %3782
      %3786 = vset.pattern.permute.xlu0 0
      %3787 = vperm.xlu0 %3786, %v3761
      %v3788 = vpop.permute.xlu0 %3787
      %3791 = vset.pattern.permute.xlu0 0
      %3792 = vperm.xlu0 %3791, %v3762
      %v3793 = vpop.permute.xlu0 %3792
      %3796 = vset.pattern.permute.xlu0 0
      %3797 = vperm.xlu0 %3796, %v3763
      %v3798 = vpop.permute.xlu0 %3797
      %3801 = vset.pattern.permute.xlu0 0
      %3802 = vperm.xlu0 %3801, %v3764
      %v3803 = vpop.permute.xlu0 %3802
      %v3805 = vmul.f32 %v3756, %v3768
      %v3806 = vmul.f32 %v3755, %v3773
      %v3807 = vmul.f32 %v3754, %v3778
      %v3808 = vmul.f32 %v3753, %v3783
      %v3809 = vmul.f32 %v3752, %v3788
      %v3810 = vmul.f32 %v3751, %v3793
      %v3811 = vmul.f32 %v3750, %v3798
      %v3812 = vmul.f32 %v3749, %v3803
      %v3813 = vpack.c.bf16 %v3806, %v3805
      %v3814 = vpack.c.bf16 %v3808, %v3807
      %v3815 = vpack.c.bf16 %v3810, %v3809
      %v3816 = vpack.c.bf16 %v3812, %v3811
      %3817 = vst [vmem:[#allocation2 + $0x10] sm:$0xff] %v3813
      %3818 = vst [vmem:[#allocation2 + $0x58] sm:$0xff] %v3814
      %3819 = vst [vmem:[#allocation2 + $0xa0] sm:$0xff] %v3815
      %3820 = vst [vmem:[#allocation2 + $0xe8] sm:$0xff] %v3816
      %v3821 = vld [vmem:[%s1029] sm:$0xff]
      %v3822 = vld [vmem:[%s1029 + $0x8] sm:$0xff]
      %v3823 = vld [vmem:[%s1029 + $0x10] sm:$0xff]
      %v3824 = vld [vmem:[%s1029 + $0x18] sm:$0xff]
      %v3825 = vld [vmem:[%s1029 + $0x20] sm:$0xff]
      %v3826 = vld [vmem:[%s1029 + $0x28] sm:$0xff]
      %v3827 = vld [vmem:[%s1029 + $0x30] sm:$0xff]
      %v3828 = vld [vmem:[%s1029 + $0x38] sm:$0xff]
      %3830 = vset.pattern.permute.xlu0 0
      %3831 = vperm.xlu0 %3830, %v3821
      %v3832 = vpop.permute.xlu0 %3831
      %3835 = vset.pattern.permute.xlu0 0
      %3836 = vperm.xlu0 %3835, %v3822
      %v3837 = vpop.permute.xlu0 %3836
      %3840 = vset.pattern.permute.xlu0 0
      %3841 = vperm.xlu0 %3840, %v3823
      %v3842 = vpop.permute.xlu0 %3841
      %3845 = vset.pattern.permute.xlu0 0
      %3846 = vperm.xlu0 %3845, %v3824
      %v3847 = vpop.permute.xlu0 %3846
      %3850 = vset.pattern.permute.xlu0 0
      %3851 = vperm.xlu0 %3850, %v3825
      %v3852 = vpop.permute.xlu0 %3851
      %3855 = vset.pattern.permute.xlu0 0
      %3856 = vperm.xlu0 %3855, %v3826
      %v3857 = vpop.permute.xlu0 %3856
      %3860 = vset.pattern.permute.xlu0 0
      %3861 = vperm.xlu0 %3860, %v3827
      %v3862 = vpop.permute.xlu0 %3861
      %3865 = vset.pattern.permute.xlu0 0
      %3866 = vperm.xlu0 %3865, %v3828
      %v3867 = vpop.permute.xlu0 %3866
      %v3869 = vmul.f32 %v3612, %v3832
      %v3870 = vmul.f32 %v3611, %v3837
      %v3871 = vmul.f32 %v3610, %v3842
      %v3872 = vmul.f32 %v3609, %v3847
      %v3873 = vmul.f32 %v3608, %v3852
      %v3874 = vmul.f32 %v3607, %v3857
      %v3875 = vmul.f32 %v3606, %v3862
      %v3876 = vmul.f32 %v3605, %v3867
      %v3877 = vpack.c.bf16 %v3870, %v3869
      %v3878 = vpack.c.bf16 %v3872, %v3871
      %v3879 = vpack.c.bf16 %v3874, %v3873
      %v3880 = vpack.c.bf16 %v3876, %v3875
      %3881 = vst [vmem:[#allocation2 + $0x18] sm:$0xff] %v3877
      %3882 = vst [vmem:[#allocation2 + $0x60] sm:$0xff] %v3878
      %3883 = vst [vmem:[#allocation2 + $0xa8] sm:$0xff] %v3879
      %3884 = vst [vmem:[#allocation2 + $0xf0] sm:$0xff] %v3880
      %v3885 = vpack.c.bf16 %v3589, %v3588
      %v3886 = vpack.c.bf16 %v3591, %v3590
      %v3887 = vpack.c.bf16 %v3593, %v3592
      %v3888 = vpack.c.bf16 %v3595, %v3594
      %3889 = vst [vmem:[#allocation2 + $0x20] sm:$0xff] %v3885
      %3890 = vst [vmem:[#allocation2 + $0x68] sm:$0xff] %v3886
      %3891 = vst [vmem:[#allocation2 + $0xb0] sm:$0xff] %v3887
      %3892 = vst [vmem:[#allocation2 + $0xf8] sm:$0xff] %v3888
      %v3893 = vld [vmem:[%s1282] sm:$0xff]
      %v3894 = vld [vmem:[%s1282 + $0x8] sm:$0xff]
      %v3895 = vld [vmem:[%s1282 + $0x10] sm:$0xff]
      %v3896 = vld [vmem:[%s1282 + $0x18] sm:$0xff]
      %v3897 = vld [vmem:[%s1282 + $0x20] sm:$0xff]
      %v3898 = vld [vmem:[%s1282 + $0x28] sm:$0xff]
      %v3899 = vld [vmem:[%s1282 + $0x30] sm:$0xff]
      %v3900 = vld [vmem:[%s1282 + $0x38] sm:$0xff]
      %3902 = vset.pattern.permute.xlu0 0
      %3903 = vperm.xlu0 %3902, %v3893
      %v3904 = vpop.permute.xlu0 %3903
      %3907 = vset.pattern.permute.xlu0 0
      %3908 = vperm.xlu0 %3907, %v3894
      %v3909 = vpop.permute.xlu0 %3908
      %3912 = vset.pattern.permute.xlu0 0
      %3913 = vperm.xlu0 %3912, %v3895
      %v3914 = vpop.permute.xlu0 %3913
      %3917 = vset.pattern.permute.xlu0 0
      %3918 = vperm.xlu0 %3917, %v3896
      %v3919 = vpop.permute.xlu0 %3918
      %3922 = vset.pattern.permute.xlu0 0
      %3923 = vperm.xlu0 %3922, %v3897
      %v3924 = vpop.permute.xlu0 %3923
      %3927 = vset.pattern.permute.xlu0 0
      %3928 = vperm.xlu0 %3927, %v3898
      %v3929 = vpop.permute.xlu0 %3928
      %3932 = vset.pattern.permute.xlu0 0
      %3933 = vperm.xlu0 %3932, %v3899
      %v3934 = vpop.permute.xlu0 %3933
      %3937 = vset.pattern.permute.xlu0 0
      %3938 = vperm.xlu0 %3937, %v3900
      %v3939 = vpop.permute.xlu0 %3938
      %v3941 = vmul.f32 %v3755, %v3904
      %v3942 = vmul.f32 %v3754, %v3909
      %v3943 = vmul.f32 %v3753, %v3914
      %v3944 = vmul.f32 %v3752, %v3919
      %v3945 = vmul.f32 %v3751, %v3924
      %v3946 = vmul.f32 %v3750, %v3929
      %v3947 = vmul.f32 %v3749, %v3934
      %v3948 = vmul.f32 %v3756, %v3939
      %v3949 = vpack.c.bf16 %v3942, %v3941
      %v3950 = vpack.c.bf16 %v3944, %v3943
      %v3951 = vpack.c.bf16 %v3946, %v3945
      %v3952 = vpack.c.bf16 %v3948, %v3947
      %3953 = vst [vmem:[#allocation2 + $0x28] sm:$0xff] %v3949
      %3954 = vst [vmem:[#allocation2 + $0x70] sm:$0xff] %v3950
      %3955 = vst [vmem:[#allocation2 + $0xb8] sm:$0xff] %v3951
      %3956 = vst [vmem:[#allocation2 + $0x100] sm:$0xff] %v3952
      %v3957 = vld [vmem:[%s1437] sm:$0xff]
      %v3958 = vld [vmem:[%s1437 + $0x8] sm:$0xff]
      %v3959 = vld [vmem:[%s1437 + $0x10] sm:$0xff]
      %v3960 = vld [vmem:[%s1437 + $0x18] sm:$0xff]
      %v3961 = vld [vmem:[%s1437 + $0x20] sm:$0xff]
      %v3962 = vld [vmem:[%s1437 + $0x28] sm:$0xff]
      %v3963 = vld [vmem:[%s1437 + $0x30] sm:$0xff]
      %v3964 = vld [vmem:[%s1437 + $0x38] sm:$0xff]
      %3966 = vset.pattern.permute.xlu0 0
      %3967 = vperm.xlu0 %3966, %v3957
      %v3968 = vpop.permute.xlu0 %3967
      %3971 = vset.pattern.permute.xlu0 0
      %3972 = vperm.xlu0 %3971, %v3958
      %v3973 = vpop.permute.xlu0 %3972
      %3976 = vset.pattern.permute.xlu0 0
      %3977 = vperm.xlu0 %3976, %v3959
      %v3978 = vpop.permute.xlu0 %3977
      %3981 = vset.pattern.permute.xlu0 0
      %3982 = vperm.xlu0 %3981, %v3960
      %v3983 = vpop.permute.xlu0 %3982
      %3986 = vset.pattern.permute.xlu0 0
      %3987 = vperm.xlu0 %3986, %v3961
      %v3988 = vpop.permute.xlu0 %3987
      %3991 = vset.pattern.permute.xlu0 0
      %3992 = vperm.xlu0 %3991, %v3962
      %v3993 = vpop.permute.xlu0 %3992
      %3996 = vset.pattern.permute.xlu0 0
      %3997 = vperm.xlu0 %3996, %v3963
      %v3998 = vpop.permute.xlu0 %3997
      %4001 = vset.pattern.permute.xlu0 0
      %4002 = vperm.xlu0 %4001, %v3964
      %v4003 = vpop.permute.xlu0 %4002
      %v4005 = vmul.f32 %v3611, %v3968
      %v4006 = vmul.f32 %v3610, %v3973
      %v4007 = vmul.f32 %v3609, %v3978
      %v4008 = vmul.f32 %v3608, %v3983
      %v4009 = vmul.f32 %v3607, %v3988
      %v4010 = vmul.f32 %v3606, %v3993
      %v4011 = vmul.f32 %v3605, %v3998
      %v4012 = vmul.f32 %v3612, %v4003
      %v4013 = vpack.c.bf16 %v4006, %v4005
      %v4014 = vpack.c.bf16 %v4008, %v4007
      %v4015 = vpack.c.bf16 %v4010, %v4009
      %v4016 = vpack.c.bf16 %v4012, %v4011
      %4017 = vst [vmem:[#allocation2 + $0x30] sm:$0xff] %v4013
      %4018 = vst [vmem:[#allocation2 + $0x78] sm:$0xff] %v4014
      %4019 = vst [vmem:[#allocation2 + $0xc0] sm:$0xff] %v4015
      %4020 = vst [vmem:[#allocation2 + $0x108] sm:$0xff] %v4016
      %v4021 = vld [vmem:[%s1592] sm:$0xff]
      %v4022 = vld [vmem:[%s1592 + $0x8] sm:$0xff]
      %v4023 = vld [vmem:[%s1592 + $0x10] sm:$0xff]
      %v4024 = vld [vmem:[%s1592 + $0x18] sm:$0xff]
      %v4025 = vld [vmem:[%s1592 + $0x20] sm:$0xff]
      %v4026 = vld [vmem:[%s1592 + $0x28] sm:$0xff]
      %v4027 = vld [vmem:[%s1592 + $0x30] sm:$0xff]
      %v4028 = vld [vmem:[%s1592 + $0x38] sm:$0xff]
      %4030 = vset.pattern.permute.xlu0 0
      %4031 = vperm.xlu0 %4030, %v4021
      %v4032 = vpop.permute.xlu0 %4031
      %4035 = vset.pattern.permute.xlu0 0
      %4036 = vperm.xlu0 %4035, %v4022
      %v4037 = vpop.permute.xlu0 %4036
      %4040 = vset.pattern.permute.xlu0 0
      %4041 = vperm.xlu0 %4040, %v4023
      %v4042 = vpop.permute.xlu0 %4041
      %4045 = vset.pattern.permute.xlu0 0
      %4046 = vperm.xlu0 %4045, %v4024
      %v4047 = vpop.permute.xlu0 %4046
      %4050 = vset.pattern.permute.xlu0 0
      %4051 = vperm.xlu0 %4050, %v4025
      %v4052 = vpop.permute.xlu0 %4051
      %4055 = vset.pattern.permute.xlu0 0
      %4056 = vperm.xlu0 %4055, %v4026
      %v4057 = vpop.permute.xlu0 %4056
      %4060 = vset.pattern.permute.xlu0 0
      %4061 = vperm.xlu0 %4060, %v4027
      %v4062 = vpop.permute.xlu0 %4061
      %4065 = vset.pattern.permute.xlu0 0
      %4066 = vperm.xlu0 %4065, %v4028
      %v4067 = vpop.permute.xlu0 %4066
      %v4069 = vmul.f32 %v3589, %v4032
      %v4070 = vmul.f32 %v3590, %v4037
      %v4071 = vmul.f32 %v3591, %v4042
      %v4072 = vmul.f32 %v3592, %v4047
      %v4073 = vmul.f32 %v3593, %v4052
      %v4074 = vmul.f32 %v3594, %v4057
      %v4075 = vmul.f32 %v3595, %v4062
      %v4076 = vmul.f32 %v3588, %v4067
      %v4077 = vpack.c.bf16 %v4070, %v4069
      %v4078 = vpack.c.bf16 %v4072, %v4071
      %v4079 = vpack.c.bf16 %v4074, %v4073
      %v4080 = vpack.c.bf16 %v4076, %v4075
      %4081 = vst [vmem:[#allocation2 + $0x38] sm:$0xff] %v4077
      %4082 = vst [vmem:[#allocation2 + $0x80] sm:$0xff] %v4078
      %4083 = vst [vmem:[#allocation2 + $0xc8] sm:$0xff] %v4079
      %4084 = vst [vmem:[#allocation2 + $0x110] sm:$0xff] %v4080
      %v4085 = vld [vmem:[%s1747] sm:$0xff]
      %v4086 = vld [vmem:[%s1747 + $0x8] sm:$0xff]
      %v4087 = vld [vmem:[%s1747 + $0x10] sm:$0xff]
      %v4088 = vld [vmem:[%s1747 + $0x18] sm:$0xff]
      %v4089 = vld [vmem:[%s1747 + $0x20] sm:$0xff]
      %v4090 = vld [vmem:[%s1747 + $0x28] sm:$0xff]
      %v4091 = vld [vmem:[%s1747 + $0x30] sm:$0xff]
      %v4092 = vld [vmem:[%s1747 + $0x38] sm:$0xff]
      %4094 = vset.pattern.permute.xlu0 0
      %4095 = vperm.xlu0 %4094, %v4085
      %v4096 = vpop.permute.xlu0 %4095
      %4099 = vset.pattern.permute.xlu0 0
      %4100 = vperm.xlu0 %4099, %v4086
      %v4101 = vpop.permute.xlu0 %4100
      %4104 = vset.pattern.permute.xlu0 0
      %4105 = vperm.xlu0 %4104, %v4087
      %v4106 = vpop.permute.xlu0 %4105
      %4109 = vset.pattern.permute.xlu0 0
      %4110 = vperm.xlu0 %4109, %v4088
      %v4111 = vpop.permute.xlu0 %4110
      %4114 = vset.pattern.permute.xlu0 0
      %4115 = vperm.xlu0 %4114, %v4089
      %v4116 = vpop.permute.xlu0 %4115
      %4119 = vset.pattern.permute.xlu0 0
      %4120 = vperm.xlu0 %4119, %v4090
      %v4121 = vpop.permute.xlu0 %4120
      %4124 = vset.pattern.permute.xlu0 0
      %4125 = vperm.xlu0 %4124, %v4091
      %v4126 = vpop.permute.xlu0 %4125
      %4129 = vset.pattern.permute.xlu0 0
      %4130 = vperm.xlu0 %4129, %v4092
      %v4131 = vpop.permute.xlu0 %4130
      %v4133 = vmul.f32 %v3754, %v4096
      %v4134 = vmul.f32 %v3753, %v4101
      %v4135 = vmul.f32 %v3752, %v4106
      %v4136 = vmul.f32 %v3751, %v4111
      %v4137 = vmul.f32 %v3750, %v4116
      %v4138 = vmul.f32 %v3749, %v4121
      %v4139 = vmul.f32 %v3756, %v4126
      %v4140 = vmul.f32 %v3755, %v4131
      %v4141 = vpack.c.bf16 %v4134, %v4133
      %v4142 = vpack.c.bf16 %v4136, %v4135
      %v4143 = vpack.c.bf16 %v4138, %v4137
      %v4144 = vpack.c.bf16 %v4140, %v4139
      %4145 = vst [vmem:[#allocation2 + $0x40] sm:$0xff] %v4141
      %4146 = vst [vmem:[#allocation2 + $0x88] sm:$0xff] %v4142
      %4147 = vst [vmem:[#allocation2 + $0xd0] sm:$0xff] %v4143
      %4148 = vst [vmem:[#allocation2 + $0x118] sm:$0xff] %v4144
      %v4149 = vld [vmem:[#allocation2] sm:$0xff]
      %v4150 = vld [vmem:[#allocation2 + $0x8] sm:$0xff]
      %v4151 = vld [vmem:[#allocation2 + $0x10] sm:$0xff]
      %v4152 = vld [vmem:[#allocation2 + $0x18] sm:$0xff]
      %v4153 = vld [vmem:[#allocation2 + $0x20] sm:$0xff]
      %v4154 = vld [vmem:[#allocation2 + $0x28] sm:$0xff]
      %v4155 = vld [vmem:[#allocation2 + $0x30] sm:$0xff]
      %v4156 = vld [vmem:[#allocation2 + $0x38] sm:$0xff]
      %v4157 = vld [vmem:[#allocation2 + $0x40] sm:$0xff]
      %v4158 = vld [vmem:[#allocation2 + $0x48] sm:$0xff]
      %v4159 = vld [vmem:[#allocation2 + $0x50] sm:$0xff]
      %v4160 = vld [vmem:[#allocation2 + $0x58] sm:$0xff]
      %v4161 = vld [vmem:[#allocation2 + $0x60] sm:$0xff]
      %v4162 = vld [vmem:[#allocation2 + $0x68] sm:$0xff]
      %v4163 = vld [vmem:[#allocation2 + $0x70] sm:$0xff]
      %v4164 = vld [vmem:[#allocation2 + $0x78] sm:$0xff]
      %v4165 = vld [vmem:[#allocation2 + $0x80] sm:$0xff]
      %v4166 = vld [vmem:[#allocation2 + $0x88] sm:$0xff]
      %v4167 = vld [vmem:[#allocation2 + $0x90] sm:$0xff]
      %v4168 = vld [vmem:[#allocation2 + $0x98] sm:$0xff]
      %v4169 = vld [vmem:[#allocation2 + $0xa0] sm:$0xff]
      %v4170 = vld [vmem:[#allocation2 + $0xa8] sm:$0xff]
      %v4171 = vld [vmem:[#allocation2 + $0xb0] sm:$0xff]
      %v4172 = vld [vmem:[#allocation2 + $0xb8] sm:$0xff]
      %v4173 = vld [vmem:[#allocation2 + $0xc0] sm:$0xff]
      %v4174 = vld [vmem:[#allocation2 + $0xc8] sm:$0xff]
      %v4175 = vld [vmem:[#allocation2 + $0xd0] sm:$0xff]
      %v4176 = vld [vmem:[#allocation2 + $0xd8] sm:$0xff]
      %v4177 = vld [vmem:[#allocation2 + $0xe0] sm:$0xff]
      %v4178 = vld [vmem:[#allocation2 + $0xe8] sm:$0xff]
      %v4179 = vld [vmem:[#allocation2 + $0xf0] sm:$0xff]
      %v4180 = vld [vmem:[#allocation2 + $0xf8] sm:$0xff]
      %v4181 = vld [vmem:[#allocation2 + $0x100] sm:$0xff]
      %v4182 = vld [vmem:[#allocation2 + $0x108] sm:$0xff]
      %v4183 = vld [vmem:[#allocation2 + $0x110] sm:$0xff]
      %v4184 = vld [vmem:[#allocation2 + $0x118] sm:$0xff]
      %v4185 = vld [vmem:[%s6] sm:$0xf]
      %v4186 = vld [vmem:[%s6 + $0x4] sm:$0xf]
      %v4187 = vld [vmem:[%s6 + $0x8] sm:$0xf]
      %v4188 = vld [vmem:[%s6 + $0xc] sm:$0xf]
      %v4189 = vld [vmem:[%s6 + $0x10] sm:$0xf]
      %v4190 = vld [vmem:[%s6 + $0x14] sm:$0xf]
      %v4191 = vld [vmem:[%s6 + $0x18] sm:$0xf]
      %v4192 = vld [vmem:[%s6 + $0x1c] sm:$0xf]
      %v4193 = vld [vmem:[%s6 + $0x20] sm:$0xf]
      %v4194 = vld [vmem:[%s6 + $0x24] sm:$0xf]
      %v4195 = vld [vmem:[%s6 + $0x28] sm:$0xf]
      %v4196 = vld [vmem:[%s6 + $0x2c] sm:$0xf]
      %v4197 = vld [vmem:[%s6 + $0x30] sm:$0xf]
      %v4198 = vld [vmem:[%s6 + $0x34] sm:$0xf]
      %v4199 = vld [vmem:[%s6 + $0x38] sm:$0xf]
      %v4200 = vld [vmem:[%s6 + $0x3c] sm:$0xf]
      %v4201 = vld [vmem:[%s6 + $0x40] sm:$0xf]
      %v4202 = vld [vmem:[%s6 + $0x44] sm:$0xf]
      %v4203 = vld [vmem:[%s6 + $0x48] sm:$0xf]
      %v4204 = vld [vmem:[%s6 + $0x4c] sm:$0xf]
      %v4205 = vld [vmem:[%s6 + $0x50] sm:$0xf]
      %v4206 = vld [vmem:[%s6 + $0x54] sm:$0xf]
      %v4207 = vld [vmem:[%s6 + $0x58] sm:$0xf]
      %v4208 = vld [vmem:[%s6 + $0x5c] sm:$0xf]
      %v4209 = vld [vmem:[%s6 + $0x60] sm:$0xf]
      %v4210 = vld [vmem:[%s6 + $0x64] sm:$0xf]
      %v4211 = vld [vmem:[%s6 + $0x68] sm:$0xf]
      %v4212 = vld [vmem:[%s6 + $0x6c] sm:$0xf]
      %v4213 = vld [vmem:[%s6 + $0x70] sm:$0xf]
      %v4214 = vld [vmem:[%s6 + $0x74] sm:$0xf]
      %v4215 = vld [vmem:[%s6 + $0x78] sm:$0xf]
      %v4216 = vld [vmem:[%s6 + $0x7c] sm:$0xf]
      %v4217 = vld [vmem:[%s6 + $0x80] sm:$0xf]
      %v4218 = vld [vmem:[%s6 + $0x84] sm:$0xf]
      %v4219 = vld [vmem:[%s6 + $0x88] sm:$0xf]
      %v4220 = vld [vmem:[%s6 + $0x8c] sm:$0xf]
      %v4221 = vld [vmem:[%s6 + $0x90] sm:$0xf]
      %v4222 = vld [vmem:[%s6 + $0x94] sm:$0xf]
      %v4223 = vld [vmem:[%s6 + $0x98] sm:$0xf]
      %v4224 = vld [vmem:[%s6 + $0x9c] sm:$0xf]
      %v4225 = vld [vmem:[%s6 + $0xa0] sm:$0xf]
      %v4226 = vld [vmem:[%s6 + $0xa4] sm:$0xf]
      %v4227 = vld [vmem:[%s6 + $0xa8] sm:$0xf]
      %v4228 = vld [vmem:[%s6 + $0xac] sm:$0xf]
      %v4229 = vld [vmem:[%s6 + $0xb0] sm:$0xf]
      %v4230 = vld [vmem:[%s6 + $0xb4] sm:$0xf]
      %v4231 = vld [vmem:[%s6 + $0xb8] sm:$0xf]
      %v4232 = vld [vmem:[%s6 + $0xbc] sm:$0xf]
      %v4233 = vld [vmem:[%s6 + $0xc0] sm:$0xf]
      %v4234 = vld [vmem:[%s6 + $0xc4] sm:$0xf]
      %v4235 = vld [vmem:[%s6 + $0xc8] sm:$0xf]
      %v4236 = vld [vmem:[%s6 + $0xcc] sm:$0xf]
      %v4237 = vld [vmem:[%s6 + $0xd0] sm:$0xf]
      %v4238 = vld [vmem:[%s6 + $0xd4] sm:$0xf]
      %v4239 = vld [vmem:[%s6 + $0xd8] sm:$0xf]
      %v4240 = vld [vmem:[%s6 + $0xdc] sm:$0xf]
      %v4241 = vld [vmem:[%s6 + $0xe0] sm:$0xf]
      %v4242 = vld [vmem:[%s6 + $0xe4] sm:$0xf]
      %v4243 = vld [vmem:[%s6 + $0xe8] sm:$0xf]
      %v4244 = vld [vmem:[%s6 + $0xec] sm:$0xf]
      %v4245 = vld [vmem:[%s6 + $0xf0] sm:$0xf]
      %v4246 = vld [vmem:[%s6 + $0xf4] sm:$0xf]
      %v4247 = vld [vmem:[%s6 + $0xf8] sm:$0xf]
      %v4248 = vld [vmem:[%s6 + $0xfc] sm:$0xf]
      %v4249 = vld [vmem:[%s6 + $0x100] sm:$0xf]
      %v4250 = vld [vmem:[%s6 + $0x104] sm:$0xf]
      %v4251 = vld [vmem:[%s6 + $0x108] sm:$0xf]
      %v4252 = vld [vmem:[%s6 + $0x10c] sm:$0xf]
      %v4253 = vld [vmem:[%s6 + $0x110] sm:$0xf]
      %v4254 = vld [vmem:[%s6 + $0x114] sm:$0xf]
      %v4255 = vld [vmem:[%s6 + $0x118] sm:$0xf]
      %v4256 = vld [vmem:[%s6 + $0x11c] sm:$0xf]
      %v4257 = vld [vmem:[%s6 + $0x120] sm:$0xf]
      %v4258 = vld [vmem:[%s6 + $0x124] sm:$0xf]
      %v4259 = vld [vmem:[%s6 + $0x128] sm:$0xf]
      %v4260 = vld [vmem:[%s6 + $0x12c] sm:$0xf]
      %v4261 = vld [vmem:[%s6 + $0x130] sm:$0xf]
      %v4262 = vld [vmem:[%s6 + $0x134] sm:$0xf]
      %v4263 = vld [vmem:[%s6 + $0x138] sm:$0xf]
      %v4264 = vld [vmem:[%s6 + $0x13c] sm:$0xf]
      %v4265 = vld [vmem:[%s6 + $0x140] sm:$0xf]
      %v4266 = vld [vmem:[%s6 + $0x144] sm:$0xf]
      %v4267 = vld [vmem:[%s6 + $0x148] sm:$0xf]
      %v4268 = vld [vmem:[%s6 + $0x14c] sm:$0xf]
      %v4269 = vld [vmem:[%s6 + $0x150] sm:$0xf]
      %v4270 = vld [vmem:[%s6 + $0x154] sm:$0xf]
      %v4271 = vld [vmem:[%s6 + $0x158] sm:$0xf]
      %v4272 = vld [vmem:[%s6 + $0x15c] sm:$0xf]
      %v4273 = vld [vmem:[%s6 + $0x160] sm:$0xf]
      %v4274 = vld [vmem:[%s6 + $0x164] sm:$0xf]
      %v4275 = vld [vmem:[%s6 + $0x168] sm:$0xf]
      %v4276 = vld [vmem:[%s6 + $0x16c] sm:$0xf]
      %v4277 = vld [vmem:[%s6 + $0x170] sm:$0xf]
      %v4278 = vld [vmem:[%s6 + $0x174] sm:$0xf]
      %v4279 = vld [vmem:[%s6 + $0x178] sm:$0xf]
      %v4280 = vld [vmem:[%s6 + $0x17c] sm:$0xf]
      %v4281 = vld [vmem:[%s6 + $0x180] sm:$0xf]
      %v4282 = vld [vmem:[%s6 + $0x184] sm:$0xf]
      %v4283 = vld [vmem:[%s6 + $0x188] sm:$0xf]
      %v4284 = vld [vmem:[%s6 + $0x18c] sm:$0xf]
      %v4285 = vld [vmem:[%s6 + $0x190] sm:$0xf]
      %v4286 = vld [vmem:[%s6 + $0x194] sm:$0xf]
      %v4287 = vld [vmem:[%s6 + $0x198] sm:$0xf]
      %v4288 = vld [vmem:[%s6 + $0x19c] sm:$0xf]
      %v4289 = vld [vmem:[%s6 + $0x1a0] sm:$0xf]
      %v4290 = vld [vmem:[%s6 + $0x1a4] sm:$0xf]
      %v4291 = vld [vmem:[%s6 + $0x1a8] sm:$0xf]
      %v4292 = vld [vmem:[%s6 + $0x1ac] sm:$0xf]
      %v4293 = vld [vmem:[%s6 + $0x1b0] sm:$0xf]
      %v4294 = vld [vmem:[%s6 + $0x1b4] sm:$0xf]
      %v4295 = vld [vmem:[%s6 + $0x1b8] sm:$0xf]
      %v4296 = vld [vmem:[%s6 + $0x1bc] sm:$0xf]
      %v4297 = vld [vmem:[%s6 + $0x1c0] sm:$0xf]
      %v4298 = vld [vmem:[%s6 + $0x1c4] sm:$0xf]
      %v4299 = vld [vmem:[%s6 + $0x1c8] sm:$0xf]
      %v4300 = vld [vmem:[%s6 + $0x1cc] sm:$0xf]
      %v4301 = vld [vmem:[%s6 + $0x1d0] sm:$0xf]
      %v4302 = vld [vmem:[%s6 + $0x1d4] sm:$0xf]
      %v4303 = vld [vmem:[%s6 + $0x1d8] sm:$0xf]
      %v4304 = vld [vmem:[%s6 + $0x1dc] sm:$0xf]
      %v4305 = vld [vmem:[%s6 + $0x1e0] sm:$0xf]
      %v4306 = vld [vmem:[%s6 + $0x1e4] sm:$0xf]
      %v4307 = vld [vmem:[%s6 + $0x1e8] sm:$0xf]
      %v4308 = vld [vmem:[%s6 + $0x1ec] sm:$0xf]
      %v4309 = vld [vmem:[%s6 + $0x1f0] sm:$0xf]
      %v4310 = vld [vmem:[%s6 + $0x1f4] sm:$0xf]
      %v4311 = vld [vmem:[%s6 + $0x1f8] sm:$0xf]
      %v4312 = vld [vmem:[%s6 + $0x1fc] sm:$0xf]
      %v4313 = vld [vmem:[%s6 + $0x200] sm:$0xf]
      %v4314 = vld [vmem:[%s6 + $0x204] sm:$0xf]
      %v4315 = vld [vmem:[%s6 + $0x208] sm:$0xf]
      %v4316 = vld [vmem:[%s6 + $0x20c] sm:$0xf]
      %v4317 = vld [vmem:[%s6 + $0x210] sm:$0xf]
      %v4318 = vld [vmem:[%s6 + $0x214] sm:$0xf]
      %v4319 = vld [vmem:[%s6 + $0x218] sm:$0xf]
      %v4320 = vld [vmem:[%s6 + $0x21c] sm:$0xf]
      %v4321 = vld [vmem:[%s6 + $0x220] sm:$0xf]
      %v4322 = vld [vmem:[%s6 + $0x224] sm:$0xf]
      %v4323 = vld [vmem:[%s6 + $0x228] sm:$0xf]
      %v4324 = vld [vmem:[%s6 + $0x22c] sm:$0xf]
      %v4325 = vld [vmem:[%s6 + $0x230] sm:$0xf]
      %v4326 = vld [vmem:[%s6 + $0x234] sm:$0xf]
      %v4327 = vld [vmem:[%s6 + $0x238] sm:$0xf]
      %v4328 = vld [vmem:[%s6 + $0x23c] sm:$0xf]
      %v4329 = vlaneseq
      %v4330 = vshrl.u32 %v4329, 7
      %v4331 = vsub.s32 0, %v4330
      %v4332 = vrot.slane %v3596, %v4331
      %v4477 = vunpack.c.l.b16 %v4185
      %v4478 = vunpack.c.l.b16 %v4186
      %v4479 = vunpack.c.l.b16 %v4187
      %v4480 = vunpack.c.l.b16 %v4188
      %v4481 = vunpack.c.l.b16 %v4189
      %v4482 = vunpack.c.l.b16 %v4190
      %v4483 = vunpack.c.l.b16 %v4191
      %v4484 = vunpack.c.l.b16 %v4192
      %v4485 = vunpack.c.l.b16 %v4193
      %v4486 = vunpack.c.l.b16 %v4194
      %v4487 = vunpack.c.l.b16 %v4195
      %v4488 = vunpack.c.l.b16 %v4196
      %v4489 = vunpack.c.l.b16 %v4197
      %v4490 = vunpack.c.l.b16 %v4198
      %v4491 = vunpack.c.l.b16 %v4199
      %v4492 = vunpack.c.l.b16 %v4200
      %v4493 = vunpack.c.l.b16 %v4201
      %v4494 = vunpack.c.l.b16 %v4202
      %v4495 = vunpack.c.l.b16 %v4203
      %v4496 = vunpack.c.l.b16 %v4204
      %v4497 = vunpack.c.l.b16 %v4205
      %v4498 = vunpack.c.l.b16 %v4206
      %v4499 = vunpack.c.l.b16 %v4207
      %v4500 = vunpack.c.l.b16 %v4208
      %v4501 = vunpack.c.l.b16 %v4209
      %v4502 = vunpack.c.l.b16 %v4210
      %v4503 = vunpack.c.l.b16 %v4211
      %v4504 = vunpack.c.l.b16 %v4212
      %v4505 = vunpack.c.l.b16 %v4213
      %v4506 = vunpack.c.l.b16 %v4214
      %v4507 = vunpack.c.l.b16 %v4215
      %v4508 = vunpack.c.l.b16 %v4216
      %v4509 = vunpack.c.l.b16 %v4217
      %v4510 = vunpack.c.l.b16 %v4218
      %v4511 = vunpack.c.l.b16 %v4219
      %v4512 = vunpack.c.l.b16 %v4220
      %v4513 = vunpack.c.l.b16 %v4221
      %v4514 = vunpack.c.l.b16 %v4222
      %v4515 = vunpack.c.l.b16 %v4223
      %v4516 = vunpack.c.l.b16 %v4224
      %v4517 = vunpack.c.l.b16 %v4225
      %v4518 = vunpack.c.l.b16 %v4226
      %v4519 = vunpack.c.l.b16 %v4227
      %v4520 = vunpack.c.l.b16 %v4228
      %v4521 = vunpack.c.l.b16 %v4229
      %v4522 = vunpack.c.l.b16 %v4230
      %v4523 = vunpack.c.l.b16 %v4231
      %v4524 = vunpack.c.l.b16 %v4232
      %v4525 = vunpack.c.l.b16 %v4233
      %v4526 = vunpack.c.l.b16 %v4234
      %v4527 = vunpack.c.l.b16 %v4235
      %v4528 = vunpack.c.l.b16 %v4236
      %v4529 = vunpack.c.l.b16 %v4237
      %v4530 = vunpack.c.l.b16 %v4238
      %v4531 = vunpack.c.l.b16 %v4239
      %v4532 = vunpack.c.l.b16 %v4240
      %v4533 = vunpack.c.l.b16 %v4241
      %v4534 = vunpack.c.l.b16 %v4242
      %v4535 = vunpack.c.l.b16 %v4243
      %v4536 = vunpack.c.l.b16 %v4244
      %v4537 = vunpack.c.l.b16 %v4245
      %v4538 = vunpack.c.l.b16 %v4246
      %v4539 = vunpack.c.l.b16 %v4247
      %v4540 = vunpack.c.l.b16 %v4248
      %v4541 = vunpack.c.l.b16 %v4249
      %v4542 = vunpack.c.l.b16 %v4250
      %v4543 = vunpack.c.l.b16 %v4251
      %v4544 = vunpack.c.l.b16 %v4252
      %v4545 = vunpack.c.l.b16 %v4253
      %v4546 = vunpack.c.l.b16 %v4254
      %v4547 = vunpack.c.l.b16 %v4255
      %v4548 = vunpack.c.l.b16 %v4256
      %v4549 = vunpack.c.l.b16 %v4257
      %v4550 = vunpack.c.l.b16 %v4258
      %v4551 = vunpack.c.l.b16 %v4259
      %v4552 = vunpack.c.l.b16 %v4260
      %v4553 = vunpack.c.l.b16 %v4261
      %v4554 = vunpack.c.l.b16 %v4262
      %v4555 = vunpack.c.l.b16 %v4263
      %v4556 = vunpack.c.l.b16 %v4264
      %v4557 = vunpack.c.l.b16 %v4265
      %v4558 = vunpack.c.l.b16 %v4266
      %v4559 = vunpack.c.l.b16 %v4267
      %v4560 = vunpack.c.l.b16 %v4268
      %v4561 = vunpack.c.l.b16 %v4269
      %v4562 = vunpack.c.l.b16 %v4270
      %v4563 = vunpack.c.l.b16 %v4271
      %v4564 = vunpack.c.l.b16 %v4272
      %v4565 = vunpack.c.l.b16 %v4273
      %v4566 = vunpack.c.l.b16 %v4274
      %v4567 = vunpack.c.l.b16 %v4275
      %v4568 = vunpack.c.l.b16 %v4276
      %v4569 = vunpack.c.l.b16 %v4277
      %v4570 = vunpack.c.l.b16 %v4278
      %v4571 = vunpack.c.l.b16 %v4279
      %v4572 = vunpack.c.l.b16 %v4280
      %v4573 = vunpack.c.l.b16 %v4281
      %v4574 = vunpack.c.l.b16 %v4282
      %v4575 = vunpack.c.l.b16 %v4283
      %v4576 = vunpack.c.l.b16 %v4284
      %v4577 = vunpack.c.l.b16 %v4285
      %v4578 = vunpack.c.l.b16 %v4286
      %v4579 = vunpack.c.l.b16 %v4287
      %v4580 = vunpack.c.l.b16 %v4288
      %v4581 = vunpack.c.l.b16 %v4289
      %v4582 = vunpack.c.l.b16 %v4290
      %v4583 = vunpack.c.l.b16 %v4291
      %v4584 = vunpack.c.l.b16 %v4292
      %v4585 = vunpack.c.l.b16 %v4293
      %v4586 = vunpack.c.l.b16 %v4294
      %v4587 = vunpack.c.l.b16 %v4295
      %v4588 = vunpack.c.l.b16 %v4296
      %v4589 = vunpack.c.l.b16 %v4297
      %v4590 = vunpack.c.l.b16 %v4298
      %v4591 = vunpack.c.l.b16 %v4299
      %v4592 = vunpack.c.l.b16 %v4300
      %v4593 = vunpack.c.l.b16 %v4301
      %v4594 = vunpack.c.l.b16 %v4302
      %v4595 = vunpack.c.l.b16 %v4303
      %v4596 = vunpack.c.l.b16 %v4304
      %v4597 = vunpack.c.l.b16 %v4305
      %v4598 = vunpack.c.l.b16 %v4306
      %v4599 = vunpack.c.l.b16 %v4307
      %v4600 = vunpack.c.l.b16 %v4308
      %v4601 = vunpack.c.l.b16 %v4309
      %v4602 = vunpack.c.l.b16 %v4310
      %v4603 = vunpack.c.l.b16 %v4311
      %v4604 = vunpack.c.l.b16 %v4312
      %v4605 = vunpack.c.l.b16 %v4313
      %v4606 = vunpack.c.l.b16 %v4314
      %v4607 = vunpack.c.l.b16 %v4315
      %v4608 = vunpack.c.l.b16 %v4316
      %v4609 = vunpack.c.l.b16 %v4317
      %v4610 = vunpack.c.l.b16 %v4318
      %v4611 = vunpack.c.l.b16 %v4319
      %v4612 = vunpack.c.l.b16 %v4320
      %v4613 = vunpack.c.l.b16 %v4321
      %v4614 = vunpack.c.l.b16 %v4322
      %v4615 = vunpack.c.l.b16 %v4323
      %v4616 = vunpack.c.l.b16 %v4324
      %v4617 = vunpack.c.l.b16 %v4325
      %v4618 = vunpack.c.l.b16 %v4326
      %v4619 = vunpack.c.l.b16 %v4327
      %v4620 = vunpack.c.l.b16 %v4328
      %v4621 = vpack.c.b16 %v4478, %v4477
      %v4622 = vpack.c.b16 %v4480, %v4479
      %v4623 = vpack.c.b16 %v4482, %v4481
      %v4624 = vpack.c.b16 %v4484, %v4483
      %v4625 = vpack.c.b16 %v4486, %v4485
      %v4626 = vpack.c.b16 %v4488, %v4487
      %v4627 = vpack.c.b16 %v4490, %v4489
      %v4628 = vpack.c.b16 %v4492, %v4491
      %v4629 = vpack.c.b16 %v4494, %v4493
      %v4630 = vpack.c.b16 %v4496, %v4495
      %v4631 = vpack.c.b16 %v4498, %v4497
      %v4632 = vpack.c.b16 %v4500, %v4499
      %v4633 = vpack.c.b16 %v4502, %v4501
      %v4634 = vpack.c.b16 %v4504, %v4503
      %v4635 = vpack.c.b16 %v4506, %v4505
      %v4636 = vpack.c.b16 %v4508, %v4507
      %v4637 = vpack.c.b16 %v4510, %v4509
      %v4638 = vpack.c.b16 %v4512, %v4511
      %v4639 = vpack.c.b16 %v4514, %v4513
      %v4640 = vpack.c.b16 %v4516, %v4515
      %v4641 = vpack.c.b16 %v4518, %v4517
      %v4642 = vpack.c.b16 %v4520, %v4519
      %v4643 = vpack.c.b16 %v4522, %v4521
      %v4644 = vpack.c.b16 %v4524, %v4523
      %v4645 = vpack.c.b16 %v4526, %v4525
      %v4646 = vpack.c.b16 %v4528, %v4527
      %v4647 = vpack.c.b16 %v4530, %v4529
      %v4648 = vpack.c.b16 %v4532, %v4531
      %v4649 = vpack.c.b16 %v4534, %v4533
      %v4650 = vpack.c.b16 %v4536, %v4535
      %v4651 = vpack.c.b16 %v4538, %v4537
      %v4652 = vpack.c.b16 %v4540, %v4539
      %v4653 = vpack.c.b16 %v4542, %v4541
      %v4654 = vpack.c.b16 %v4544, %v4543
      %v4655 = vpack.c.b16 %v4546, %v4545
      %v4656 = vpack.c.b16 %v4548, %v4547
      %v4657 = vpack.c.b16 %v4550, %v4549
      %v4658 = vpack.c.b16 %v4552, %v4551
      %v4659 = vpack.c.b16 %v4554, %v4553
      %v4660 = vpack.c.b16 %v4556, %v4555
      %v4661 = vpack.c.b16 %v4558, %v4557
      %v4662 = vpack.c.b16 %v4560, %v4559
      %v4663 = vpack.c.b16 %v4562, %v4561
      %v4664 = vpack.c.b16 %v4564, %v4563
      %v4665 = vpack.c.b16 %v4566, %v4565
      %v4666 = vpack.c.b16 %v4568, %v4567
      %v4667 = vpack.c.b16 %v4570, %v4569
      %v4668 = vpack.c.b16 %v4572, %v4571
      %v4669 = vpack.c.b16 %v4574, %v4573
      %v4670 = vpack.c.b16 %v4576, %v4575
      %v4671 = vpack.c.b16 %v4578, %v4577
      %v4672 = vpack.c.b16 %v4580, %v4579
      %v4673 = vpack.c.b16 %v4582, %v4581
      %v4674 = vpack.c.b16 %v4584, %v4583
      %v4675 = vpack.c.b16 %v4586, %v4585
      %v4676 = vpack.c.b16 %v4588, %v4587
      %v4677 = vpack.c.b16 %v4590, %v4589
      %v4678 = vpack.c.b16 %v4592, %v4591
      %v4679 = vpack.c.b16 %v4594, %v4593
      %v4680 = vpack.c.b16 %v4596, %v4595
      %v4681 = vpack.c.b16 %v4598, %v4597
      %v4682 = vpack.c.b16 %v4600, %v4599
      %v4683 = vpack.c.b16 %v4602, %v4601
      %v4684 = vpack.c.b16 %v4604, %v4603
      %v4685 = vpack.c.b16 %v4606, %v4605
      %v4686 = vpack.c.b16 %v4608, %v4607
      %v4687 = vpack.c.b16 %v4610, %v4609
      %v4688 = vpack.c.b16 %v4612, %v4611
      %v4689 = vpack.c.b16 %v4614, %v4613
      %v4690 = vpack.c.b16 %v4616, %v4615
      %v4691 = vpack.c.b16 %v4618, %v4617
      %v4692 = vpack.c.b16 %v4620, %v4619
      %4765 = vmatprep.subr.bf16.mxu0 0
      %4766 = vmatpush1.bf16.msra.mxu0 %v4621
      %4767 = vmatprep.subr.bf16.mxu0 0
      %4768 = vmatpush1.bf16.msra.mxu0 %v4622
      %4769 = vmatprep.subr.bf16.mxu0 0
      %4770 = vmatpush1.bf16.msra.mxu0 %v4623
      %4771 = vmatprep.subr.bf16.mxu0 0
      %4772 = vmatpush1.bf16.msra.mxu0 %v4624
      %4773 = vmatprep.subr.bf16.mxu0 0
      %4774 = vmatpush1.bf16.msra.mxu0 %v4625
      %4775 = vmatprep.subr.bf16.mxu0 0
      %4776 = vmatpush1.bf16.msra.mxu0 %v4626
      %4777 = vmatprep.subr.bf16.mxu0 0
      %4778 = vmatpush1.bf16.msra.mxu0 %v4627
      %4779 = vmatprep.subr.bf16.mxu0 0
      %4780 = vmatpush1.bf16.msra.mxu0 %v4628
      %4781 = vmatprep.subr.bf16.mxu0 0
      %4782 = vmatpush1.bf16.msra.mxu0 %v4629
      %4783 = vmatprep.subr.bf16.mxu0 0
      %4784 = vmatpush1.bf16.msra.mxu0 %v4630
      %4785 = vmatprep.subr.bf16.mxu0 0
      %4786 = vmatpush1.bf16.msra.mxu0 %v4631
      %4787 = vmatprep.subr.bf16.mxu0 0
      %4788 = vmatpush1.bf16.msra.mxu0 %v4632
      %4789 = vmatprep.subr.bf16.mxu0 0
      %4790 = vmatpush1.bf16.msra.mxu0 %v4633
      %4791 = vmatprep.subr.bf16.mxu0 0
      %4792 = vmatpush1.bf16.msra.mxu0 %v4634
      %4793 = vmatprep.subr.bf16.mxu0 0
      %4794 = vmatpush1.bf16.msra.mxu0 %v4635
      %4795 = vmatprep.subr.bf16.mxu0 0
      %4796 = vmatpush1.bf16.msra.mxu0 %v4636
      %4797 = vmatprep.mubr.bf16.mxu0 %v4150
      %4798 = vmatmul.mubr.bf16.gmra.mrb[0].mxu0 %v4149
      %v4799 = vpop.f32.mrb[0].mxu0
      %v4800 = vadd.f32 %v4332, %v4799
      %v4801 = vpop.f32.mrb[0].mxu0
      %v4802 = vpop.f32.mrb[0].mxu0
      %v4803 = vadd.f32 %v4332, %v4802
      %v4804 = vpop.f32.mrb[0].mxu0
      %4805 = vmatprep.mubr.bf16.mxu0 %v4159
      %4806 = vmatmul.mubr.bf16.gmra.mrb[0].mxu0 %v4158
      %v4807 = vpop.f32.mrb[0].mxu0
      %v4808 = vadd.f32 %v4332, %v4807
      %v4809 = vpop.f32.mrb[0].mxu0
      %v4810 = vpop.f32.mrb[0].mxu0
      %v4811 = vadd.f32 %v4332, %v4810
      %v4812 = vpop.f32.mrb[0].mxu0
      %4813 = vmatprep.mubr.bf16.mxu0 %v4168
      %4814 = vmatmul.mubr.bf16.gmra.mrb[0].mxu0 %v4167
      %v4815 = vpop.f32.mrb[0].mxu0
      %v4816 = vadd.f32 %v4332, %v4815
      %v4817 = vpop.f32.mrb[0].mxu0
      %v4818 = vpop.f32.mrb[0].mxu0
      %v4819 = vadd.f32 %v4332, %v4818
      %v4820 = vpop.f32.mrb[0].mxu0
      %4821 = vmatprep.mubr.bf16.mxu0 %v4177
      %4822 = vmatmul.mubr.bf16.gmra.mrb[0].mxu0 %v4176
      %v4823 = vpop.f32.mrb[0].mxu0
      %v4824 = vadd.f32 %v4332, %v4823
      %v4825 = vpop.f32.mrb[0].mxu0
      %v4826 = vpop.f32.mrb[0].mxu0
      %v4827 = vadd.f32 %v4332, %v4826
      %v4828 = vpop.f32.mrb[0].mxu0
      %4829 = vdwg.mxu0
      %4830 = vmatprep.subr.bf16.mxu0 0
      %4831 = vmatpush1.bf16.msra.mxu0 %v4637
      %4832 = vmatprep.subr.bf16.mxu0 0
      %4833 = vmatpush1.bf16.msra.mxu0 %v4638
      %4834 = vmatprep.subr.bf16.mxu0 0
      %4835 = vmatpush1.bf16.msra.mxu0 %v4639
      %4836 = vmatprep.subr.bf16.mxu0 0
      %4837 = vmatpush1.bf16.msra.mxu0 %v4640
      %4838 = vmatprep.subr.bf16.mxu0 0
      %4839 = vmatpush1.bf16.msra.mxu0 %v4641
      %4840 = vmatprep.subr.bf16.mxu0 0
      %4841 = vmatpush1.bf16.msra.mxu0 %v4642
      %4842 = vmatprep.subr.bf16.mxu0 0
      %4843 = vmatpush1.bf16.msra.mxu0 %v4643
      %4844 = vmatprep.subr.bf16.mxu0 0
      %4845 = vmatpush1.bf16.msra.mxu0 %v4644
      %4846 = vmatprep.subr.bf16.mxu0 0
      %4847 = vmatpush1.bf16.msra.mxu0 %v4645
      %4848 = vmatprep.subr.bf16.mxu0 0
      %4849 = vmatpush1.bf16.msra.mxu0 %v4646
      %4850 = vmatprep.subr.bf16.mxu0 0
      %4851 = vmatpush1.bf16.msra.mxu0 %v4647
      %4852 = vmatprep.subr.bf16.mxu0 0
      %4853 = vmatpush1.bf16.msra.mxu0 %v4648
      %4854 = vmatprep.subr.bf16.mxu0 0
      %4855 = vmatpush1.bf16.msra.mxu0 %v4649
      %4856 = vmatprep.subr.bf16.mxu0 0
      %4857 = vmatpush1.bf16.msra.mxu0 %v4650
      %4858 = vmatprep.subr.bf16.mxu0 0
      %4859 = vmatpush1.bf16.msra.mxu0 %v4651
      %4860 = vmatprep.subr.bf16.mxu0 0
      %4861 = vmatpush1.bf16.msra.mxu0 %v4652
      %4862 = vmatprep.mubr.bf16.mxu0 %v4152
      %4863 = vmatmul.mubr.bf16.gmra.mrb[0].mxu0 %v4151
      %v4864 = vpop.f32.mrb[0].mxu0
      %v4865 = vadd.f32 %v4800, %v4864
      %v4866 = vpop.f32.mrb[0].mxu0
      %v4867 = vpop.f32.mrb[0].mxu0
      %v4868 = vadd.f32 %v4803, %v4867
      %v4869 = vpop.f32.mrb[0].mxu0
      %4870 = vmatprep.mubr.bf16.mxu0 %v4161
      %4871 = vmatmul.mubr.bf16.gmra.mrb[0].mxu0 %v4160
      %v4872 = vpop.f32.mrb[0].mxu0
      %v4873 = vadd.f32 %v4808, %v4872
      %v4874 = vpop.f32.mrb[0].mxu0
      %v4875 = vpop.f32.mrb[0].mxu0
      %v4876 = vadd.f32 %v4811, %v4875
      %v4877 = vpop.f32.mrb[0].mxu0
      %4878 = vmatprep.mubr.bf16.mxu0 %v4170
      %4879 = vmatmul.mubr.bf16.gmra.mrb[0].mxu0 %v4169
      %v4880 = vpop.f32.mrb[0].mxu0
      %v4881 = vadd.f32 %v4816, %v4880
      %v4882 = vpop.f32.mrb[0].mxu0
      %v4883 = vpop.f32.mrb[0].mxu0
      %v4884 = vadd.f32 %v4819, %v4883
      %v4885 = vpop.f32.mrb[0].mxu0
      %4886 = vmatprep.mubr.bf16.mxu0 %v4179
      %4887 = vmatmul.mubr.bf16.gmra.mrb[0].mxu0 %v4178
      %v4888 = vpop.f32.mrb[0].mxu0
      %v4889 = vadd.f32 %v4824, %v4888
      %v4890 = vpop.f32.mrb[0].mxu0
      %v4891 = vpop.f32.mrb[0].mxu0
      %v4892 = vadd.f32 %v4827, %v4891
      %v4893 = vpop.f32.mrb[0].mxu0
      %4894 = vdwg.mxu0
      %4895 = vmatprep.subr.bf16.mxu0 0
      %4896 = vmatpush1.bf16.msra.mxu0 %v4653
      %4897 = vmatprep.subr.bf16.mxu0 0
      %4898 = vmatpush1.bf16.msra.mxu0 %v4654
      %4899 = vmatprep.subr.bf16.mxu0 0
      %4900 = vmatpush1.bf16.msra.mxu0 %v4655
      %4901 = vmatprep.subr.bf16.mxu0 0
      %4902 = vmatpush1.bf16.msra.mxu0 %v4656
      %4903 = vmatprep.subr.bf16.mxu0 0
      %4904 = vmatpush1.bf16.msra.mxu0 %v4657
      %4905 = vmatprep.subr.bf16.mxu0 0
      %4906 = vmatpush1.bf16.msra.mxu0 %v4658
      %4907 = vmatprep.subr.bf16.mxu0 0
      %4908 = vmatpush1.bf16.msra.mxu0 %v4659
      %4909 = vmatprep.subr.bf16.mxu0 0
      %4910 = vmatpush1.bf16.msra.mxu0 %v4660
      %4911 = vmatprep.subr.bf16.mxu0 0
      %4912 = vmatpush1.bf16.msra.mxu0 %v4661
      %4913 = vmatprep.subr.bf16.mxu0 0
      %4914 = vmatpush1.bf16.msra.mxu0 %v4662
      %4915 = vmatprep.subr.bf16.mxu0 0
      %4916 = vmatpush1.bf16.msra.mxu0 %v4663
      %4917 = vmatprep.subr.bf16.mxu0 0
      %4918 = vmatpush1.bf16.msra.mxu0 %v4664
      %4919 = vmatprep.subr.bf16.mxu0 0
      %4920 = vmatpush1.bf16.msra.mxu0 %v4665
      %4921 = vmatprep.subr.bf16.mxu0 0
      %4922 = vmatpush1.bf16.msra.mxu0 %v4666
      %4923 = vmatprep.subr.bf16.mxu0 0
      %4924 = vmatpush1.bf16.msra.mxu0 %v4667
      %4925 = vmatprep.subr.bf16.mxu0 0
      %4926 = vmatpush1.bf16.msra.mxu0 %v4668
      %4927 = vmatprep.mubr.bf16.mxu0 %v4154
      %4928 = vmatmul.mubr.bf16.gmra.mrb[0].mxu0 %v4153
      %v4929 = vpop.f32.mrb[0].mxu0
      %v4930 = vadd.f32 %v4865, %v4929
      %v4931 = vpop.f32.mrb[0].mxu0
      %v4932 = vpop.f32.mrb[0].mxu0
      %v4933 = vadd.f32 %v4868, %v4932
      %v4934 = vpop.f32.mrb[0].mxu0
      %4935 = vmatprep.mubr.bf16.mxu0 %v4163
      %4936 = vmatmul.mubr.bf16.gmra.mrb[0].mxu0 %v4162
      %v4937 = vpop.f32.mrb[0].mxu0
      %v4938 = vadd.f32 %v4873, %v4937
      %v4939 = vpop.f32.mrb[0].mxu0
      %v4940 = vpop.f32.mrb[0].mxu0
      %v4941 = vadd.f32 %v4876, %v4940
      %v4942 = vpop.f32.mrb[0].mxu0
      %4943 = vmatprep.mubr.bf16.mxu0 %v4172
      %4944 = vmatmul.mubr.bf16.gmra.mrb[0].mxu0 %v4171
      %v4945 = vpop.f32.mrb[0].mxu0
      %v4946 = vadd.f32 %v4881, %v4945
      %v4947 = vpop.f32.mrb[0].mxu0
      %v4948 = vpop.f32.mrb[0].mxu0
      %v4949 = vadd.f32 %v4884, %v4948
      %v4950 = vpop.f32.mrb[0].mxu0
      %4951 = vmatprep.mubr.bf16.mxu0 %v4181
      %4952 = vmatmul.mubr.bf16.gmra.mrb[0].mxu0 %v4180
      %v4953 = vpop.f32.mrb[0].mxu0
      %v4954 = vadd.f32 %v4889, %v4953
      %v4955 = vpop.f32.mrb[0].mxu0
      %v4956 = vpop.f32.mrb[0].mxu0
      %v4957 = vadd.f32 %v4892, %v4956
      %v4958 = vpop.f32.mrb[0].mxu0
      %4959 = vdwg.mxu0
      %4960 = vmatprep.subr.bf16.mxu0 0
      %4961 = vmatpush1.bf16.msra.mxu0 %v4669
      %4962 = vmatprep.subr.bf16.mxu0 0
      %4963 = vmatpush1.bf16.msra.mxu0 %v4670
      %4964 = vmatprep.subr.bf16.mxu0 0
      %4965 = vmatpush1.bf16.msra.mxu0 %v4671
      %4966 = vmatprep.subr.bf16.mxu0 0
      %4967 = vmatpush1.bf16.msra.mxu0 %v4672
      %4968 = vmatprep.subr.bf16.mxu0 0
      %4969 = vmatpush1.bf16.msra.mxu0 %v4673
      %4970 = vmatprep.subr.bf16.mxu0 0
      %4971 = vmatpush1.bf16.msra.mxu0 %v4674
      %4972 = vmatprep.subr.bf16.mxu0 0
      %4973 = vmatpush1.bf16.msra.mxu0 %v4675
      %4974 = vmatprep.subr.bf16.mxu0 0
      %4975 = vmatpush1.bf16.msra.mxu0 %v4676
      %4976 = vmatprep.subr.bf16.mxu0 0
      %4977 = vmatpush1.bf16.msra.mxu0 %v4677
      %4978 = vmatprep.subr.bf16.mxu0 0
      %4979 = vmatpush1.bf16.msra.mxu0 %v4678
      %4980 = vmatprep.subr.bf16.mxu0 0
      %4981 = vmatpush1.bf16.msra.mxu0 %v4679
      %4982 = vmatprep.subr.bf16.mxu0 0
      %4983 = vmatpush1.bf16.msra.mxu0 %v4680
      %4984 = vmatprep.subr.bf16.mxu0 0
      %4985 = vmatpush1.bf16.msra.mxu0 %v4681
      %4986 = vmatprep.subr.bf16.mxu0 0
      %4987 = vmatpush1.bf16.msra.mxu0 %v4682
      %4988 = vmatprep.subr.bf16.mxu0 0
      %4989 = vmatpush1.bf16.msra.mxu0 %v4683
      %4990 = vmatprep.subr.bf16.mxu0 0
      %4991 = vmatpush1.bf16.msra.mxu0 %v4684
      %4992 = vmatprep.mubr.bf16.mxu0 %v4156
      %4993 = vmatmul.mubr.bf16.gmra.mrb[0].mxu0 %v4155
      %v4994 = vpop.f32.mrb[0].mxu0
      %v4995 = vadd.f32 %v4930, %v4994
      %v4996 = vpop.f32.mrb[0].mxu0
      %v4997 = vpop.f32.mrb[0].mxu0
      %v4998 = vadd.f32 %v4933, %v4997
      %v4999 = vpop.f32.mrb[0].mxu0
      %5000 = vmatprep.mubr.bf16.mxu0 %v4165
      %5001 = vmatmul.mubr.bf16.gmra.mrb[0].mxu0 %v4164
      %v5002 = vpop.f32.mrb[0].mxu0
      %v5003 = vadd.f32 %v4938, %v5002
      %v5004 = vpop.f32.mrb[0].mxu0
      %v5005 = vpop.f32.mrb[0].mxu0
      %v5006 = vadd.f32 %v4941, %v5005
      %v5007 = vpop.f32.mrb[0].mxu0
      %5008 = vmatprep.mubr.bf16.mxu0 %v4174
      %5009 = vmatmul.mubr.bf16.gmra.mrb[0].mxu0 %v4173
      %v5010 = vpop.f32.mrb[0].mxu0
      %v5011 = vadd.f32 %v4946, %v5010
      %v5012 = vpop.f32.mrb[0].mxu0
      %v5013 = vpop.f32.mrb[0].mxu0
      %v5014 = vadd.f32 %v4949, %v5013
      %v5015 = vpop.f32.mrb[0].mxu0
      %5016 = vmatprep.mubr.bf16.mxu0 %v4183
      %5017 = vmatmul.mubr.bf16.gmra.mrb[0].mxu0 %v4182
      %v5018 = vpop.f32.mrb[0].mxu0
      %v5019 = vadd.f32 %v4954, %v5018
      %v5020 = vpop.f32.mrb[0].mxu0
      %v5021 = vpop.f32.mrb[0].mxu0
      %v5022 = vadd.f32 %v4957, %v5021
      %v5023 = vpop.f32.mrb[0].mxu0
      %5024 = vdwg.mxu0
      %5025 = vmatprep.subr.bf16.mxu0 0
      %5026 = vmatpush1.bf16.msra.mxu0 %v4685
      %5027 = vmatprep.subr.bf16.mxu0 0
      %5028 = vmatpush1.bf16.msra.mxu0 %v4686
      %5029 = vmatprep.subr.bf16.mxu0 0
      %5030 = vmatpush1.bf16.msra.mxu0 %v4687
      %5031 = vmatprep.subr.bf16.mxu0 0
      %5032 = vmatpush1.bf16.msra.mxu0 %v4688
      %5033 = vmatprep.subr.bf16.mxu0 0
      %5034 = vmatpush1.bf16.msra.mxu0 %v4689
      %5035 = vmatprep.subr.bf16.mxu0 0
      %5036 = vmatpush1.bf16.msra.mxu0 %v4690
      %5037 = vmatprep.subr.bf16.mxu0 0
      %5038 = vmatpush1.bf16.msra.mxu0 %v4691
      %5039 = vmatprep.subr.bf16.mxu0 0
      %5040 = vmatpush1.bf16.msra.mxu0 %v4692
      %5041 = vmatprep.subr.bf16.mxu0 0
      %5042 = vmatpush1.bf16.msra.mxu0 0
      %5043 = vmatprep.subr.bf16.mxu0 0
      %5044 = vmatpush1.bf16.msra.mxu0 0
      %5045 = vmatprep.subr.bf16.mxu0 0
      %5046 = vmatpush1.bf16.msra.mxu0 0
      %5047 = vmatprep.subr.bf16.mxu0 0
      %5048 = vmatpush1.bf16.msra.mxu0 0
      %5049 = vmatprep.subr.bf16.mxu0 0
      %5050 = vmatpush1.bf16.msra.mxu0 0
      %5051 = vmatprep.subr.bf16.mxu0 0
      %5052 = vmatpush1.bf16.msra.mxu0 0
      %5053 = vmatprep.subr.bf16.mxu0 0
      %5054 = vmatpush1.bf16.msra.mxu0 0
      %5055 = vmatprep.subr.bf16.mxu0 0
      %5056 = vmatpush1.bf16.msra.mxu0 0
      %5057 = vmatprep.mubr.bf16.mxu0 0
      %5058 = vmatmul.mubr.bf16.gmra.mrb[0].mxu0 %v4157
      %v5059 = vpop.f32.mrb[0].mxu0
      %v5060 = vadd.f32 %v4995, %v5059
      %v5061 = vpop.f32.mrb[0].mxu0
      %v5062 = vpop.f32.mrb[0].mxu0
      %v5063 = vadd.f32 %v4998, %v5062
      %v5064 = vpop.f32.mrb[0].mxu0
      %5065 = vmatprep.mubr.bf16.mxu0 0
      %5066 = vmatmul.mubr.bf16.gmra.mrb[0].mxu0 %v4166
      %v5067 = vpop.f32.mrb[0].mxu0
      %v5068 = vadd.f32 %v5003, %v5067
      %v5069 = vpop.f32.mrb[0].mxu0
      %v5070 = vpop.f32.mrb[0].mxu0
      %v5071 = vadd.f32 %v5006, %v5070
      %v5072 = vpop.f32.mrb[0].mxu0
      %5073 = vmatprep.mubr.bf16.mxu0 0
      %5074 = vmatmul.mubr.bf16.gmra.mrb[0].mxu0 %v4175
      %v5075 = vpop.f32.mrb[0].mxu0
      %v5076 = vadd.f32 %v5011, %v5075
      %v5077 = vpop.f32.mrb[0].mxu0
      %v5078 = vpop.f32.mrb[0].mxu0
      %v5079 = vadd.f32 %v5014, %v5078
      %v5080 = vpop.f32.mrb[0].mxu0
      %5081 = vmatprep.mubr.bf16.mxu0 0
      %5082 = vmatmul.mubr.bf16.gmra.mrb[0].mxu0 %v4184
      %v5083 = vpop.f32.mrb[0].mxu0
      %v5084 = vadd.f32 %v5019, %v5083
      %v5085 = vpop.f32.mrb[0].mxu0
      %v5086 = vpop.f32.mrb[0].mxu0
      %v5087 = vadd.f32 %v5022, %v5086
      %v5088 = vpop.f32.mrb[0].mxu0
      %5089 = vdwg.mxu0
      %v5090 = vadd.f32 %v2074, %v5060
      %v5091 = vadd.f32 %v2075, %v5063
      %v5092 = vadd.f32 %v2076, %v5068
      %v5093 = vadd.f32 %v2077, %v5071
      %v5094 = vadd.f32 %v2078, %v5076
      %v5095 = vadd.f32 %v2079, %v5079
      %v5096 = vadd.f32 %v2080, %v5084
      %v5097 = vadd.f32 %v2081, %v5087
      %5098 = vst [vmem:[%s386] sm:$0xff] %v5090
      %5099 = vst [vmem:[%s386 + $0x8] sm:$0xff] %v5091
      %5100 = vst [vmem:[%s386 + $0x10] sm:$0xff] %v5092
      %5101 = vst [vmem:[%s386 + $0x18] sm:$0xff] %v5093
      %5102 = vst [vmem:[%s386 + $0x20] sm:$0xff] %v5094
      %5103 = vst [vmem:[%s386 + $0x28] sm:$0xff] %v5095
      %5104 = vst [vmem:[%s386 + $0x30] sm:$0xff] %v5096
      %5105 = vst [vmem:[%s386 + $0x38] sm:$0xff] %v5097
      %p5106 = scmp.lt.s32.totalorder %s22, 1
      %s5107 = scalar_select %p5106, %s22, 1
      %s5108 = smul.addr %s5107, 8
      %s5109 = smul.addr %s5108, 8
      %s5110 = scalar_lea.vmem %s11, %s5109
      // Predicated region
      $region65: #{resdown_forward.1} parent=63 // pred_check
        %p5111 = pneg %p276
      $region66: #{resdown_forward.1} parent=63 // pred_check_branch
        %5113 = sbr.rel (%p5111) target = $region68
      $region67: #{resdown_forward.1} parent=63 // pred_region
        _
      $region68: #{resdown_forward.1} parent=63 // pred_fallthru
        _
    $region64: #{resdown_forward.1} parent=5 // pred_fallthru
      _
    %p5114 = scmp.le.s32.totalorder 2, %s17
    // Predicated region
    $region69: #{resdown_forward.1} parent=5 // pred_check
      %p5115 = pneg %p5114
    $region70: #{resdown_forward.1} parent=5 // pred_check_branch
      %5117 = sbr.rel (%p5115) target = $region72
    $region71: #{resdown_forward.1} parent=5 // pred_region
      %s5118 = ssub.s32 %s17, 2
      // Predicated region
      $region73: #{resdown_forward.1} parent=71 // pred_check
        %p5119 = pneg %p282
      $region74: #{resdown_forward.1} parent=71 // pred_check_branch
        %5121 = sbr.rel (%p5119) target = $region76
      $region75: #{resdown_forward.1} parent=71 // pred_region
        %p5122 = scmp.lt.s32.totalorder %s23, 1
        %s5123 = scalar_select %p5122, %s23, 1
        %s5124 = smul.addr %s5123, 8
        %s5125 = smul.addr %s5124, 8
        %s5126 = scalar_lea.vmem %s11, %s5125
      $region76: #{resdown_forward.1} parent=71 // pred_fallthru
        _
    $region72: #{resdown_forward.1} parent=5 // pred_fallthru
      _
  $region6: #{resdown_forward.1} parent=0 // loop_footer
    %s21 = sadd.s32 1, %s17
  $region7: #{resdown_forward.1} parent=0 // loop_footer_branch
    %16 = sbr.rel target = $region3
  $region8: #{resdown_forward.1} parent=0 // loop_exit
    _

</llo_original>
